<compile_context>
chip_gen: v5e
topology: v5e:2x2
jax: 0.10.0
libtpu: 0.0.40
codegen_flags: <defaults>
</compile_context>

<pallas_src>
import functools

import jax
import jax.numpy as jnp
from jax import lax  # noqa: F401  (kept for readers extending the kernel)
from jax.experimental import pallas as pl
from jax.experimental.pallas import tpu as pltpu


PARAM_ORDER = [
    "w1", "b1", "w2", "b2", "w3", "b3", "w4", "b4", "w5", "b5",   # encoder
    "wd1", "bd1", "wd2", "bd2", "wd3", "bd3",                     # decoder
    "bn_s", "bn_b",                                               # final BN
]

# Matmul weights stored in bf16 (f32 accumulation on the MXU).  w1 stays f32
# (the K=3 layer runs on the VPU); biases and BN params stay f32.
BF16_WEIGHTS = {"w2", "w3", "w4", "w5", "wd1", "wd2", "wd3"}


def _pointnet_ae_kernel(
    x_ref,                                        # [TB*N, 3]  TB point clouds
    w1, b1, w2, b2, w3, b3, w4, b4, w5, b5,       # conv1x1 weights (BN folded)
    wd1, bd1, wd2, bd2, wd3, bd3,                 # decoder linears
    bn_s, bn_b,                                   # final BatchNorm1d scale/shift
    out_ref,                                      # [TB, N]
    feat_scr,                                     # VMEM scratch [TB, 1024] f32
    *, tb, n,
):
    relu = lambda v: jnp.maximum(v, 0.0)
    dot = functools.partial(jnp.dot, preferred_element_type=jnp.float32)
    bf16 = jnp.bfloat16

    # Hoist weight loads out of the per-sample loop (JAX does not CSE
    # broadcast_in_dim, so keep these reads outside the loop body).
    w1v, b1v = w1[...], b1[...]
    w2v, b2v = w2[...], b2[...]
    w3v, b3v = w3[...], b3[...]
    w4v, b4v = w4[...], b4[...]
    w5v = w5[...]

    # ---- Encoder + fused global max-pool, one sample at a time. -------------
    # Only a [N, 1024] partial product is ever live, so peak VMEM does not
    # scale with TB*N*1024.  (For very large N, add an inner point-chunk loop
    # with a running max over feat_scr.)
    @pl.loop(0, tb)
    def _(s):
        base = pl.multiple_of(s * n, n)
        xs = x_ref[pl.ds(base, n), :]                     # [N, 3] f32

        # Conv1d(3,64,1)+BN+ReLU: K=3 -> VPU broadcast-FMAs, not the MXU.
        # TODO(synk): if the bundle shows the XLU saturating on these lane
        # broadcasts (after the pool fusion), revisit as a padded K=8 matmul.
        h = relu(xs[:, 0:1] * w1v[0:1, :]
                 + xs[:, 1:2] * w1v[1:2, :]
                 + xs[:, 2:3] * w1v[2:3, :]
                 + b1v)                                   # [N, 64]
        # Conv1d(64,64,1)+BN+ReLU            (mlp1)
        h = relu(dot(h.astype(bf16), w2v) + b2v)          # [N, 64]
        # Conv1d(64,64,1)+BN+ReLU            (mlp2)
        h = relu(dot(h.astype(bf16), w3v) + b3v)          # [N, 64]
        # Conv1d(64,128,1)+BN+ReLU
        h = relu(dot(h.astype(bf16), w4v) + b4v)          # [N, 128]
        # Conv1d(128,1024,1)+BN: bias, ReLU and the global max-pool all
        # commute, so pool the raw matmul output; bias/ReLU applied below on
        # the pooled [TB, 1024] features instead of [TB*N, 1024].
        p = dot(h.astype(bf16), w5v)                      # [N, 1024] f32
        feat_scr[pl.ds(s, 1), :] = jnp.max(p, axis=0, keepdims=True)

    # Pooled global features (== relu(max_over_points(h @ w5 + b5))).
    feat = relu(feat_scr[...] + b5[...])                  # [TB, 1024]

    # ---- Decoder (PointNetAutoEncoder.mlp1), batched over TB samples. -------
    d = relu(dot(feat.astype(bf16), wd1[...]) + bd1[...])  # [TB, N/4]
    d = relu(dot(d.astype(bf16), wd2[...]) + bd2[...])     # [TB, N/2]
    d = dot(d.astype(bf16), wd3[...]) + bd3[...]           # [TB, N]
    # Dropout(p=0.3) is identity in inference mode; final BatchNorm1d folded.
    # TODO(synk): training-mode dropout RNG / batch-statistic BN not implemented.
    out_ref[...] = d * bn_s[...] + bn_b[...]


def pointnet_autoencoder(pointcloud, params, *, tb=24):
    """pointcloud: [B, N, 3] float32 -> reshape(-1, N, 3) as in the PyTorch forward."""
    B, N, C = pointcloud.shape
    assert C == 3
    assert N % 8 == 0, "point count must be a multiple of 8 for sublane tiling"
    assert B % tb == 0, "batch must be a multiple of the batch-block size"
    assert tb % 8 == 0, "batch block should be sublane-dense (multiple of 8)"
    # v7x megacore hint: pick tb so that B // tb is even, then the
    # ("parallel",) grid splits evenly across both TensorCores.

    # Flatten points: every 1x1 conv is then a per-point [*, Cin] @ [Cin, Cout].
    x2d = pointcloud.reshape(B * N, 3)
    flat = [params[k] for k in PARAM_ORDER]

    def weight_spec(a):
        ndim = a.ndim
        # Constant block index across the grid -> DMA'd once, kept resident.
        # (Default double-buffering of these weights costs <1 MiB total; switch
        #  to pipeline_mode=pl.Buffered(1) if VMEM ever becomes the constraint.)
        return pl.BlockSpec(a.shape, lambda i: (0,) * ndim)

    grid = (B // tb,)
    in_specs = [pl.BlockSpec((tb * N, 3), lambda i: (i, 0))]
    in_specs += [weight_spec(a) for a in flat]
    out_specs = pl.BlockSpec((tb, N), lambda i: (i, 0))

    kernel = functools.partial(_pointnet_ae_kernel, tb=tb, n=N)
    out = pl.pallas_call(
        kernel,
        grid=grid,
        in_specs=in_specs,
        out_specs=out_specs,
        out_shape=jax.ShapeDtypeStruct((B, N), jnp.float32),
        scratch_shapes=[pltpu.VMEM((tb, 1024), jnp.float32)],
        compiler_params=pltpu.CompilerParams(
            dimension_semantics=("parallel",),
            # Peak ~10-12 MiB at tb=24, N=256: input tile 3 MiB x2 (lane-padded
            # [tb*N,3]), resident weights ~1.5 MiB, per-sample [N,1024] partial
            # ~1 MiB, feat scratch 96 KiB.  32 MiB fits v5e/v6e/v7x comfortably.
            vmem_limit_bytes=32 * 1024 * 1024,
        ),
    )(x2d, *flat)

    # Final reshape from the PyTorch forward: x.reshape(-1, num_points, 3).
    # Note: this mixes samples and requires B % 3 == 0 (a quirk of the reference).
    return out.reshape(-1, N, 3)


def _reference_forward(pointcloud, params):
    """Pure-JAX f32 reference (same folded/rounded weights, f32 arithmetic)."""
    B, N, _ = pointcloud.shape
    p = lambda k: params[k].astype(jnp.float32)
    x = pointcloud.reshape(B * N, 3)
    h = jnp.maximum(x @ p("w1") + p("b1"), 0.0)
    h = jnp.maximum(h @ p("w2") + p("b2"), 0.0)
    h = jnp.maximum(h @ p("w3") + p("b3"), 0.0)
    h = jnp.maximum(h @ p("w4") + p("b4"), 0.0)
    h = jnp.maximum(h @ p("w5") + p("b5"), 0.0)
    feat = jnp.max(h.reshape(B, N, 1024), axis=1)
    d = jnp.maximum(feat @ p("wd1") + p("bd1"), 0.0)
    d = jnp.maximum(d @ p("wd2") + p("bd2"), 0.0)
    d = d @ p("wd3") + p("bd3")
    d = d * p("bn_s") + p("bn_b")
    return d.reshape(-1, N, 3)


def init_params(key, num_points):
    """Deterministic synthetic weights; BN (eval mode) folded into scale/bias."""
    N = num_points
    # nn.Linear(1024, num_points / 4): interpreted as integer division.
    n4, n2 = N // 4, N // 2

    enc_dims = [(3, 64), (64, 64), (64, 64), (64, 128), (128, 1024)]
    dec_dims = [(1024, n4), (n4, n2), (n2, N)]

    keys = iter(jax.random.split(key, 32))
    params = {}

    def bn_fold(k, w, b, n_out, eps):
        kg, kb = jax.random.split(k)
        gamma = 1.0 + 0.05 * jax.random.normal(kg, (n_out,), jnp.float32)
        beta = 0.05 * jax.random.normal(kb, (n_out,), jnp.float32)
        mean = jnp.zeros((n_out,), jnp.float32)
        var = jnp.ones((n_out,), jnp.float32)
        scale = gamma / jnp.sqrt(var + eps)
        wf = w * scale[None, :]
        bf = (b - mean) * scale + beta
        return wf.astype(jnp.float32), bf.reshape(1, n_out).astype(jnp.float32)

    # encoder: Conv1d(cin, cout, 1) weights stored as [cin, cout] (== W[:, :, 0].T)
    for i, (cin, cout) in enumerate(enc_dims):
        w = 0.05 * jax.random.normal(next(keys), (cin, cout), jnp.float32)
        b = 0.05 * jax.random.normal(next(keys), (cout,), jnp.float32)
        params[f"w{i+1}"], params[f"b{i+1}"] = bn_fold(next(keys), w, b, cout, 1e-5)

    # decoder layers 1 & 2: Linear + BN + ReLU (weights stored as [in, out] == W.T)
    for i, (cin, cout) in enumerate(dec_dims[:2]):
        w = 0.05 * jax.random.normal(next(keys), (cin, cout), jnp.float32)
        b = 0.05 * jax.random.normal(next(keys), (cout,), jnp.float32)
        params[f"wd{i+1}"], params[f"bd{i+1}"] = bn_fold(next(keys), w, b, cout, 1e-5)

    # decoder layer 3: plain Linear (Dropout + BN applied afterwards)
    cin, cout = dec_dims[2]
    params["wd3"] = 0.05 * jax.random.normal(next(keys), (cin, cout), jnp.float32)
    params["bd3"] = (0.05 * jax.random.normal(next(keys), (cout,), jnp.float32)).reshape(1, cout)

    # final BatchNorm1d(num_points, num_points * 3) -> eps = num_points * 3
    kg, kb = jax.random.split(next(keys))
    gamma = 1.0 + 0.05 * jax.random.normal(kg, (N,), jnp.float32)
    beta = 0.05 * jax.random.normal(kb, (N,), jnp.float32)
    mean = jnp.zeros((N,), jnp.float32)
    var = jnp.ones((N,), jnp.float32)
    eps = float(N * 3)
    scale = gamma / jnp.sqrt(var + eps)
    params["bn_s"] = scale.reshape(1, N)
    params["bn_b"] = (beta - mean * scale).reshape(1, N)

    # Store all MXU-matmul weights in bf16 (f32 accumulation in the kernel).
    for k in BF16_WEIGHTS:
        params[k] = params[k].astype(jnp.bfloat16)
    return params


if __name__ == "__main__":
    num_points = 256
    # batch: multiple of tb=24 (sublane-dense [tb, N] output tiles), of 3 (the
    # reference's reshape(-1, num_points, 3) requires B % 3 == 0), and chosen
    # so the grid length B//tb = 2 is even (balances v7x's 2 TensorCores).
    batch = 48
    tb = 24

    key = jax.random.PRNGKey(0)
    k_pc, k_params = jax.random.split(key)
    pointcloud = jax.random.normal(k_pc, (batch, num_points, 3), jnp.float32)
    params = init_params(k_params, num_points)

    out = pointnet_autoencoder(pointcloud, params, tb=tb)
    out = jax.block_until_ready(out)

    expected_shape = (batch * num_points // (num_points * 3), num_points, 3)
    assert out.shape == expected_shape, (out.shape, expected_shape)
    assert bool(jnp.all(jnp.isfinite(out)))

    # Validate bf16-operand numerics against an f32 reference that uses the
    # same (bf16-rounded) weights; error normalized by the output scale.
    ref = _reference_forward(pointcloud, params)
    rel_err = float(jnp.max(jnp.abs(out - ref)) / (jnp.max(jnp.abs(ref)) + 1e-6))
    assert rel_err < 5e-2, f"kernel vs reference mismatch: rel_err={rel_err}"

    print("KERNEL_OK")
</pallas_src>

<mosaic_0001>
module attributes {stable_mosaic.version = 11 : i64} {
  func.func @_pointnet_ae_kernel(%arg0: i32, %arg1: memref<6144x3xf32, #tpu.memory_space<vmem>>, %arg2: memref<3x64xf32, #tpu.memory_space<vmem>>, %arg3: memref<1x64xf32, #tpu.memory_space<vmem>>, %arg4: memref<64x64xbf16, #tpu.memory_space<vmem>>, %arg5: memref<1x64xf32, #tpu.memory_space<vmem>>, %arg6: memref<64x64xbf16, #tpu.memory_space<vmem>>, %arg7: memref<1x64xf32, #tpu.memory_space<vmem>>, %arg8: memref<64x128xbf16, #tpu.memory_space<vmem>>, %arg9: memref<1x128xf32, #tpu.memory_space<vmem>>, %arg10: memref<128x1024xbf16, #tpu.memory_space<vmem>>, %arg11: memref<1x1024xf32, #tpu.memory_space<vmem>>, %arg12: memref<1024x64xbf16, #tpu.memory_space<vmem>>, %arg13: memref<1x64xf32, #tpu.memory_space<vmem>>, %arg14: memref<64x128xbf16, #tpu.memory_space<vmem>>, %arg15: memref<1x128xf32, #tpu.memory_space<vmem>>, %arg16: memref<128x256xbf16, #tpu.memory_space<vmem>>, %arg17: memref<1x256xf32, #tpu.memory_space<vmem>>, %arg18: memref<1x256xf32, #tpu.memory_space<vmem>>, %arg19: memref<1x256xf32, #tpu.memory_space<vmem>>, %arg20: memref<24x256xf32, #tpu.memory_space<vmem>>, %arg21: memref<24x1024xf32, #tpu.memory_space<vmem>>) attributes {dimension_semantics = [#tpu.dimension_semantics<parallel>], iteration_bounds = array<i64: 2>, scalar_prefetch = 0 : i64, scratch_operands = 1 : i64, tpu.core_type = #tpu.core_type<tc>, window_params = [{transform_indices = @transform_0, window_bounds = array<i64: 6144, 3>}, {pipeline_mode = #tpu.pipeline_mode<synchronous>, transform_indices = @transform_1, window_bounds = array<i64: 3, 64>}, {pipeline_mode = #tpu.pipeline_mode<synchronous>, transform_indices = @transform_2, window_bounds = array<i64: 1, 64>}, {pipeline_mode = #tpu.pipeline_mode<synchronous>, transform_indices = @transform_3, window_bounds = array<i64: 64, 64>}, {pipeline_mode = #tpu.pipeline_mode<synchronous>, transform_indices = @transform_4, window_bounds = array<i64: 1, 64>}, {pipeline_mode = #tpu.pipeline_mode<synchronous>, transform_indices = @transform_5, window_bounds = array<i64: 64, 64>}, {pipeline_mode = #tpu.pipeline_mode<synchronous>, transform_indices = @transform_6, window_bounds = array<i64: 1, 64>}, {pipeline_mode = #tpu.pipeline_mode<synchronous>, transform_indices = @transform_7, window_bounds = array<i64: 64, 128>}, {pipeline_mode = #tpu.pipeline_mode<synchronous>, transform_indices = @transform_8, window_bounds = array<i64: 1, 128>}, {pipeline_mode = #tpu.pipeline_mode<synchronous>, transform_indices = @transform_9, window_bounds = array<i64: 128, 1024>}, {pipeline_mode = #tpu.pipeline_mode<synchronous>, transform_indices = @transform_10, window_bounds = array<i64: 1, 1024>}, {pipeline_mode = #tpu.pipeline_mode<synchronous>, transform_indices = @transform_11, window_bounds = array<i64: 1024, 64>}, {pipeline_mode = #tpu.pipeline_mode<synchronous>, transform_indices = @transform_12, window_bounds = array<i64: 1, 64>}, {pipeline_mode = #tpu.pipeline_mode<synchronous>, transform_indices = @transform_13, window_bounds = array<i64: 64, 128>}, {pipeline_mode = #tpu.pipeline_mode<synchronous>, transform_indices = @transform_14, window_bounds = array<i64: 1, 128>}, {pipeline_mode = #tpu.pipeline_mode<synchronous>, transform_indices = @transform_15, window_bounds = array<i64: 128, 256>}, {pipeline_mode = #tpu.pipeline_mode<synchronous>, transform_indices = @transform_16, window_bounds = array<i64: 1, 256>}, {pipeline_mode = #tpu.pipeline_mode<synchronous>, transform_indices = @transform_17, window_bounds = array<i64: 1, 256>}, {pipeline_mode = #tpu.pipeline_mode<synchronous>, transform_indices = @transform_18, window_bounds = array<i64: 1, 256>}, {transform_indices = @transform_19, window_bounds = array<i64: 24, 256>}]} {
    %c0 = arith.constant 0 : index
    %c0_0 = arith.constant 0 : index
    %0 = vector.load %arg2[%c0, %c0_0] : memref<3x64xf32, #tpu.memory_space<vmem>>, vector<3x64xf32>
    %c0_1 = arith.constant 0 : index
    %c0_2 = arith.constant 0 : index
    %1 = vector.load %arg3[%c0_1, %c0_2] : memref<1x64xf32, #tpu.memory_space<vmem>>, vector<1x64xf32>
    %c0_3 = arith.constant 0 : index
    %c0_4 = arith.constant 0 : index
    %2 = vector.load %arg4[%c0_3, %c0_4] : memref<64x64xbf16, #tpu.memory_space<vmem>>, vector<64x64xbf16>
    %c0_5 = arith.constant 0 : index
    %c0_6 = arith.constant 0 : index
    %3 = vector.load %arg5[%c0_5, %c0_6] : memref<1x64xf32, #tpu.memory_space<vmem>>, vector<1x64xf32>
    %c0_7 = arith.constant 0 : index
    %c0_8 = arith.constant 0 : index
    %4 = vector.load %arg6[%c0_7, %c0_8] : memref<64x64xbf16, #tpu.memory_space<vmem>>, vector<64x64xbf16>
    %c0_9 = arith.constant 0 : index
    %c0_10 = arith.constant 0 : index
    %5 = vector.load %arg7[%c0_9, %c0_10] : memref<1x64xf32, #tpu.memory_space<vmem>>, vector<1x64xf32>
    %c0_11 = arith.constant 0 : index
    %c0_12 = arith.constant 0 : index
    %6 = vector.load %arg8[%c0_11, %c0_12] : memref<64x128xbf16, #tpu.memory_space<vmem>>, vector<64x128xbf16>
    %c0_13 = arith.constant 0 : index
    %c0_14 = arith.constant 0 : index
    %7 = vector.load %arg9[%c0_13, %c0_14] : memref<1x128xf32, #tpu.memory_space<vmem>>, vector<1x128xf32>
    %c0_15 = arith.constant 0 : index
    %c0_16 = arith.constant 0 : index
    %8 = vector.load %arg10[%c0_15, %c0_16] : memref<128x1024xbf16, #tpu.memory_space<vmem>>, vector<128x1024xbf16>
    %c0_i32 = arith.constant 0 : i32
    %c24_i32 = arith.constant 24 : i32
    %9 = arith.addi %c0_i32, %c24_i32 : i32
    %c1_i32 = arith.constant 1 : i32
    scf.for %arg22 = %c0_i32 to %9 step %c1_i32  : i32 {
      %c1_i32_45 = arith.constant 1 : i32
      %45 = arith.muli %arg22, %c1_i32_45 : i32
      %c0_i32_46 = arith.constant 0 : i32
      %46 = arith.addi %c0_i32_46, %45 : i32
      %c256_i32 = arith.constant 256 : i32
      %47 = arith.muli %46, %c256_i32 : i32
      %48 = tpu.assume_multiple %47, 256 : i32
      %49 = arith.index_cast %48 : i32 to index
      %c0_47 = arith.constant 0 : index
      %50 = vector.load %arg1[%49, %c0_47] : memref<6144x3xf32, #tpu.memory_space<vmem>>, vector<256x3xf32>
      %51 = vector.extract_strided_slice %50 {offsets = [0, 0], sizes = [256, 1], strides = [1, 1]} : vector<256x3xf32> to vector<256x1xf32>
      %52 = vector.extract_strided_slice %0 {offsets = [0, 0], sizes = [1, 64], strides = [1, 1]} : vector<3x64xf32> to vector<1x64xf32>
      %53 = vector.broadcast %51 : vector<256x1xf32> to vector<256x64xf32>
      %54 = vector.broadcast %52 : vector<1x64xf32> to vector<256x64xf32>
      %55 = arith.mulf %53, %54 : vector<256x64xf32>
      %56 = vector.extract_strided_slice %50 {offsets = [0, 1], sizes = [256, 1], strides = [1, 1]} : vector<256x3xf32> to vector<256x1xf32>
      %57 = vector.extract_strided_slice %0 {offsets = [1, 0], sizes = [1, 64], strides = [1, 1]} : vector<3x64xf32> to vector<1x64xf32>
      %58 = vector.broadcast %56 : vector<256x1xf32> to vector<256x64xf32>
      %59 = vector.broadcast %57 : vector<1x64xf32> to vector<256x64xf32>
      %60 = arith.mulf %58, %59 : vector<256x64xf32>
      %61 = arith.addf %55, %60 : vector<256x64xf32>
      %62 = vector.extract_strided_slice %50 {offsets = [0, 2], sizes = [256, 1], strides = [1, 1]} : vector<256x3xf32> to vector<256x1xf32>
      %63 = vector.extract_strided_slice %0 {offsets = [2, 0], sizes = [1, 64], strides = [1, 1]} : vector<3x64xf32> to vector<1x64xf32>
      %64 = vector.broadcast %62 : vector<256x1xf32> to vector<256x64xf32>
      %65 = vector.broadcast %63 : vector<1x64xf32> to vector<256x64xf32>
      %66 = arith.mulf %64, %65 : vector<256x64xf32>
      %67 = arith.addf %61, %66 : vector<256x64xf32>
      %68 = vector.broadcast %1 : vector<1x64xf32> to vector<256x64xf32>
      %69 = arith.addf %67, %68 : vector<256x64xf32>
      %cst_48 = arith.constant 0.000000e+00 : f32
      %70 = vector.broadcast %cst_48 : f32 to vector<256x64xf32>
      %71 = arith.maximumf %69, %70 : vector<256x64xf32>
      %72 = arith.truncf %71 : vector<256x64xf32> to vector<256x64xbf16>
      %cst_49 = arith.constant dense<0.000000e+00> : vector<256x64xf32>
      %73 = tpu.matmul %72, %2, %cst_49 {dimension_numbers = #tpu.dot_dimension_numbers<[1], [0], [0], [1], [0, 0, 1, 1], [], []>} : vector<256x64xbf16>, vector<64x64xbf16>, vector<256x64xf32> -> vector<256x64xf32>
      %74 = vector.broadcast %3 : vector<1x64xf32> to vector<256x64xf32>
      %75 = arith.addf %73, %74 : vector<256x64xf32>
      %cst_50 = arith.constant 0.000000e+00 : f32
      %76 = vector.broadcast %cst_50 : f32 to vector<256x64xf32>
      %77 = arith.maximumf %75, %76 : vector<256x64xf32>
      %78 = arith.truncf %77 : vector<256x64xf32> to vector<256x64xbf16>
      %cst_51 = arith.constant dense<0.000000e+00> : vector<256x64xf32>
      %79 = tpu.matmul %78, %4, %cst_51 {dimension_numbers = #tpu.dot_dimension_numbers<[1], [0], [0], [1], [0, 0, 1, 1], [], []>} : vector<256x64xbf16>, vector<64x64xbf16>, vector<256x64xf32> -> vector<256x64xf32>
      %80 = vector.broadcast %5 : vector<1x64xf32> to vector<256x64xf32>
      %81 = arith.addf %79, %80 : vector<256x64xf32>
      %cst_52 = arith.constant 0.000000e+00 : f32
      %82 = vector.broadcast %cst_52 : f32 to vector<256x64xf32>
      %83 = arith.maximumf %81, %82 : vector<256x64xf32>
      %84 = arith.truncf %83 : vector<256x64xf32> to vector<256x64xbf16>
      %cst_53 = arith.constant dense<0.000000e+00> : vector<256x128xf32>
      %85 = tpu.matmul %84, %6, %cst_53 {dimension_numbers = #tpu.dot_dimension_numbers<[1], [0], [0], [1], [0, 0, 1, 1], [], []>} : vector<256x64xbf16>, vector<64x128xbf16>, vector<256x128xf32> -> vector<256x128xf32>
      %86 = vector.broadcast %7 : vector<1x128xf32> to vector<256x128xf32>
      %87 = arith.addf %85, %86 : vector<256x128xf32>
      %cst_54 = arith.constant 0.000000e+00 : f32
      %88 = vector.broadcast %cst_54 : f32 to vector<256x128xf32>
      %89 = arith.maximumf %87, %88 : vector<256x128xf32>
      %90 = arith.truncf %89 : vector<256x128xf32> to vector<256x128xbf16>
      %cst_55 = arith.constant dense<0.000000e+00> : vector<256x1024xf32>
      %91 = tpu.matmul %90, %8, %cst_55 {dimension_numbers = #tpu.dot_dimension_numbers<[1], [0], [0], [1], [0, 0, 1, 1], [], []>} : vector<256x128xbf16>, vector<128x1024xbf16>, vector<256x1024xf32> -> vector<256x1024xf32>
      %cst_56 = arith.constant dense<0xFF800000> : vector<1024xf32>
      %92 = vector.multi_reduction <maximumf>, %91, %cst_56 [0] : vector<256x1024xf32> to vector<1024xf32>
      %93 = vector.shape_cast %92 : vector<1024xf32> to vector<1x1024xf32>
      %94 = arith.index_cast %46 : i32 to index
      %c0_57 = arith.constant 0 : index
      %95 = vector.load %arg21[%94, %c0_57] : memref<24x1024xf32, #tpu.memory_space<vmem>>, vector<1x1024xf32>
      tpu.vector_store %arg21[%94, %c0_57], %93 {strides = array<i32>} : memref<24x1024xf32, #tpu.memory_space<vmem>>, vector<1x1024xf32>,
    }
    %c24_i32_17 = arith.constant 24 : i32
    %c0_18 = arith.constant 0 : index
    %c0_19 = arith.constant 0 : index
    %10 = vector.load %arg21[%c0_18, %c0_19] : memref<24x1024xf32, #tpu.memory_space<vmem>>, vector<24x1024xf32>
    %c0_20 = arith.constant 0 : index
    %c0_21 = arith.constant 0 : index
    %11 = vector.load %arg11[%c0_20, %c0_21] : memref<1x1024xf32, #tpu.memory_space<vmem>>, vector<1x1024xf32>
    %12 = vector.broadcast %11 : vector<1x1024xf32> to vector<24x1024xf32>
    %13 = arith.addf %10, %12 : vector<24x1024xf32>
    %cst = arith.constant 0.000000e+00 : f32
    %14 = vector.broadcast %cst : f32 to vector<24x1024xf32>
    %15 = arith.maximumf %13, %14 : vector<24x1024xf32>
    %16 = arith.truncf %15 : vector<24x1024xf32> to vector<24x1024xbf16>
    %c0_22 = arith.constant 0 : index
    %c0_23 = arith.constant 0 : index
    %17 = vector.load %arg12[%c0_22, %c0_23] : memref<1024x64xbf16, #tpu.memory_space<vmem>>, vector<1024x64xbf16>
    %cst_24 = arith.constant dense<0.000000e+00> : vector<24x64xf32>
    %18 = tpu.matmul %16, %17, %cst_24 {dimension_numbers = #tpu.dot_dimension_numbers<[1], [0], [0], [1], [0, 0, 1, 1], [], []>} : vector<24x1024xbf16>, vector<1024x64xbf16>, vector<24x64xf32> -> vector<24x64xf32>
    %c0_25 = arith.constant 0 : index
    %c0_26 = arith.constant 0 : index
    %19 = vector.load %arg13[%c0_25, %c0_26] : memref<1x64xf32, #tpu.memory_space<vmem>>, vector<1x64xf32>
    %20 = vector.broadcast %19 : vector<1x64xf32> to vector<24x64xf32>
    %21 = arith.addf %18, %20 : vector<24x64xf32>
    %cst_27 = arith.constant 0.000000e+00 : f32
    %22 = vector.broadcast %cst_27 : f32 to vector<24x64xf32>
    %23 = arith.maximumf %21, %22 : vector<24x64xf32>
    %24 = arith.truncf %23 : vector<24x64xf32> to vector<24x64xbf16>
    %c0_28 = arith.constant 0 : index
    %c0_29 = arith.constant 0 : index
    %25 = vector.load %arg14[%c0_28, %c0_29] : memref<64x128xbf16, #tpu.memory_space<vmem>>, vector<64x128xbf16>
    %cst_30 = arith.constant dense<0.000000e+00> : vector<24x128xf32>
    %26 = tpu.matmul %24, %25, %cst_30 {dimension_numbers = #tpu.dot_dimension_numbers<[1], [0], [0], [1], [0, 0, 1, 1], [], []>} : vector<24x64xbf16>, vector<64x128xbf16>, vector<24x128xf32> -> vector<24x128xf32>
    %c0_31 = arith.constant 0 : index
    %c0_32 = arith.constant 0 : index
    %27 = vector.load %arg15[%c0_31, %c0_32] : memref<1x128xf32, #tpu.memory_space<vmem>>, vector<1x128xf32>
    %28 = vector.broadcast %27 : vector<1x128xf32> to vector<24x128xf32>
    %29 = arith.addf %26, %28 : vector<24x128xf32>
    %cst_33 = arith.constant 0.000000e+00 : f32
    %30 = vector.broadcast %cst_33 : f32 to vector<24x128xf32>
    %31 = arith.maximumf %29, %30 : vector<24x128xf32>
    %32 = arith.truncf %31 : vector<24x128xf32> to vector<24x128xbf16>
    %c0_34 = arith.constant 0 : index
    %c0_35 = arith.constant 0 : index
    %33 = vector.load %arg16[%c0_34, %c0_35] : memref<128x256xbf16, #tpu.memory_space<vmem>>, vector<128x256xbf16>
    %cst_36 = arith.constant dense<0.000000e+00> : vector<24x256xf32>
    %34 = tpu.matmul %32, %33, %cst_36 {dimension_numbers = #tpu.dot_dimension_numbers<[1], [0], [0], [1], [0, 0, 1, 1], [], []>} : vector<24x128xbf16>, vector<128x256xbf16>, vector<24x256xf32> -> vector<24x256xf32>
    %c0_37 = arith.constant 0 : index
    %c0_38 = arith.constant 0 : index
    %35 = vector.load %arg17[%c0_37, %c0_38] : memref<1x256xf32, #tpu.memory_space<vmem>>, vector<1x256xf32>
    %36 = vector.broadcast %35 : vector<1x256xf32> to vector<24x256xf32>
    %37 = arith.addf %34, %36 : vector<24x256xf32>
    %c0_39 = arith.constant 0 : index
    %c0_40 = arith.constant 0 : index
    %38 = vector.load %arg18[%c0_39, %c0_40] : memref<1x256xf32, #tpu.memory_space<vmem>>, vector<1x256xf32>
    %39 = vector.broadcast %38 : vector<1x256xf32> to vector<24x256xf32>
    %40 = arith.mulf %37, %39 : vector<24x256xf32>
    %c0_41 = arith.constant 0 : index
    %c0_42 = arith.constant 0 : index
    %41 = vector.load %arg19[%c0_41, %c0_42] : memref<1x256xf32, #tpu.memory_space<vmem>>, vector<1x256xf32>
    %42 = vector.broadcast %41 : vector<1x256xf32> to vector<24x256xf32>
    %43 = arith.addf %40, %42 : vector<24x256xf32>
    %c0_43 = arith.constant 0 : index
    %c0_44 = arith.constant 0 : index
    %44 = vector.load %arg20[%c0_43, %c0_44] : memref<24x256xf32, #tpu.memory_space<vmem>>, vector<24x256xf32>
    tpu.vector_store %arg20[%c0_43, %c0_44], %43 {strides = array<i32>} : memref<24x256xf32, #tpu.memory_space<vmem>>, vector<24x256xf32>,
    return
  }
  func.func @transform_0(%arg0: i32) -> (i32, i32) {
    %c0_i32 = arith.constant 0 : i32
    %c0_i32_0 = arith.constant 0 : i32
    return %arg0, %c0_i32 : i32, i32
  }
  func.func @transform_1(%arg0: i32) -> (i32, i32) {
    %c0_i32 = arith.constant 0 : i32
    %c0_i32_0 = arith.constant 0 : i32
    %c0_i32_1 = arith.constant 0 : i32
    return %c0_i32, %c0_i32_0 : i32, i32
  }
  func.func @transform_2(%arg0: i32) -> (i32, i32) {
    %c0_i32 = arith.constant 0 : i32
    %c0_i32_0 = arith.constant 0 : i32
    %c0_i32_1 = arith.constant 0 : i32
    return %c0_i32, %c0_i32_0 : i32, i32
  }
  func.func @transform_3(%arg0: i32) -> (i32, i32) {
    %c0_i32 = arith.constant 0 : i32
    %c0_i32_0 = arith.constant 0 : i32
    %c0_i32_1 = arith.constant 0 : i32
    return %c0_i32, %c0_i32_0 : i32, i32
  }
  func.func @transform_4(%arg0: i32) -> (i32, i32) {
    %c0_i32 = arith.constant 0 : i32
    %c0_i32_0 = arith.constant 0 : i32
    %c0_i32_1 = arith.constant 0 : i32
    return %c0_i32, %c0_i32_0 : i32, i32
  }
  func.func @transform_5(%arg0: i32) -> (i32, i32) {
    %c0_i32 = arith.constant 0 : i32
    %c0_i32_0 = arith.constant 0 : i32
    %c0_i32_1 = arith.constant 0 : i32
    return %c0_i32, %c0_i32_0 : i32, i32
  }
  func.func @transform_6(%arg0: i32) -> (i32, i32) {
    %c0_i32 = arith.constant 0 : i32
    %c0_i32_0 = arith.constant 0 : i32
    %c0_i32_1 = arith.constant 0 : i32
    return %c0_i32, %c0_i32_0 : i32, i32
  }
  func.func @transform_7(%arg0: i32) -> (i32, i32) {
    %c0_i32 = arith.constant 0 : i32
    %c0_i32_0 = arith.constant 0 : i32
    %c0_i32_1 = arith.constant 0 : i32
    return %c0_i32, %c0_i32_0 : i32, i32
  }
  func.func @transform_8(%arg0: i32) -> (i32, i32) {
    %c0_i32 = arith.constant 0 : i32
    %c0_i32_0 = arith.constant 0 : i32
    %c0_i32_1 = arith.constant 0 : i32
    return %c0_i32, %c0_i32_0 : i32, i32
  }
  func.func @transform_9(%arg0: i32) -> (i32, i32) {
    %c0_i32 = arith.constant 0 : i32
    %c0_i32_0 = arith.constant 0 : i32
    %c0_i32_1 = arith.constant 0 : i32
    return %c0_i32, %c0_i32_0 : i32, i32
  }
  func.func @transform_10(%arg0: i32) -> (i32, i32) {
    %c0_i32 = arith.constant 0 : i32
    %c0_i32_0 = arith.constant 0 : i32
    %c0_i32_1 = arith.constant 0 : i32
    return %c0_i32, %c0_i32_0 : i32, i32
  }
  func.func @transform_11(%arg0: i32) -> (i32, i32) {
    %c0_i32 = arith.constant 0 : i32
    %c0_i32_0 = arith.constant 0 : i32
    %c0_i32_1 = arith.constant 0 : i32
    return %c0_i32, %c0_i32_0 : i32, i32
  }
  func.func @transform_12(%arg0: i32) -> (i32, i32) {
    %c0_i32 = arith.constant 0 : i32
    %c0_i32_0 = arith.constant 0 : i32
    %c0_i32_1 = arith.constant 0 : i32
    return %c0_i32, %c0_i32_0 : i32, i32
  }
  func.func @transform_13(%arg0: i32) -> (i32, i32) {
    %c0_i32 = arith.constant 0 : i32
    %c0_i32_0 = arith.constant 0 : i32
    %c0_i32_1 = arith.constant 0 : i32
    return %c0_i32, %c0_i32_0 : i32, i32
  }
  func.func @transform_14(%arg0: i32) -> (i32, i32) {
    %c0_i32 = arith.constant 0 : i32
    %c0_i32_0 = arith.constant 0 : i32
    %c0_i32_1 = arith.constant 0 : i32
    return %c0_i32, %c0_i32_0 : i32, i32
  }
  func.func @transform_15(%arg0: i32) -> (i32, i32) {
    %c0_i32 = arith.constant 0 : i32
    %c0_i32_0 = arith.constant 0 : i32
    %c0_i32_1 = arith.constant 0 : i32
    return %c0_i32, %c0_i32_0 : i32, i32
  }
  func.func @transform_16(%arg0: i32) -> (i32, i32) {
    %c0_i32 = arith.constant 0 : i32
    %c0_i32_0 = arith.constant 0 : i32
    %c0_i32_1 = arith.constant 0 : i32
    return %c0_i32, %c0_i32_0 : i32, i32
  }
  func.func @transform_17(%arg0: i32) -> (i32, i32) {
    %c0_i32 = arith.constant 0 : i32
    %c0_i32_0 = arith.constant 0 : i32
    %c0_i32_1 = arith.constant 0 : i32
    return %c0_i32, %c0_i32_0 : i32, i32
  }
  func.func @transform_18(%arg0: i32) -> (i32, i32) {
    %c0_i32 = arith.constant 0 : i32
    %c0_i32_0 = arith.constant 0 : i32
    %c0_i32_1 = arith.constant 0 : i32
    return %c0_i32, %c0_i32_0 : i32, i32
  }
  func.func @transform_19(%arg0: i32) -> (i32, i32) {
    %c0_i32 = arith.constant 0 : i32
    %c0_i32_0 = arith.constant 0 : i32
    return %arg0, %c0_i32 : i32, i32
  }
}

</mosaic_0001>

<llo_original>
// kernel: tpu_custom_call.1
$region0: #{tpu_custom_call.1}
  #allocation0 [shape = 'u32[]', space=smem, size = 0x4, offset = 0x4, fixed_abs, tag = 'smem constant byte address 0x4 - core index']
  #allocation1 [shape = 'u32[72,128]{1,0:T(1,128)}', space=vmem, size = 0x9000, scoped, tag = 'internal scratch']
  #allocation2 [shape = 'f32[24,1024]{1,0:T(8,128)}', space=vmem, size = 0x18000, scoped, tag = 'scratch operand']
  %s0 = inlined_call_operand.vmem [shape: f32[12288,3], index: 0, kind: input, shape index: {}]
  %s1 = inlined_call_operand.vmem [shape: f32[3,64], index: 1, kind: input, shape index: {}]
  %s2 = inlined_call_operand.vmem [shape: f32[1,64], index: 2, kind: input, shape index: {}]
  %s3 = inlined_call_operand.vmem [shape: bf16[64,64], index: 3, kind: input, shape index: {}]
  %s4 = inlined_call_operand.vmem [shape: f32[1,64], index: 4, kind: input, shape index: {}]
  %s5 = inlined_call_operand.vmem [shape: bf16[64,64], index: 5, kind: input, shape index: {}]
  %s6 = inlined_call_operand.vmem [shape: f32[1,64], index: 6, kind: input, shape index: {}]
  %s7 = inlined_call_operand.vmem [shape: bf16[64,128], index: 7, kind: input, shape index: {}]
  %s8 = inlined_call_operand.vmem [shape: f32[1,128], index: 8, kind: input, shape index: {}]
  %s9 = inlined_call_operand.vmem [shape: bf16[128,1024], index: 9, kind: input, shape index: {}]
  %s10 = inlined_call_operand.vmem [shape: f32[1,1024], index: 10, kind: input, shape index: {}]
  %s11 = inlined_call_operand.vmem [shape: bf16[1024,64], index: 11, kind: input, shape index: {}]
  %s12 = inlined_call_operand.vmem [shape: f32[1,64], index: 12, kind: input, shape index: {}]
  %s13 = inlined_call_operand.vmem [shape: bf16[64,128], index: 13, kind: input, shape index: {}]
  %s14 = inlined_call_operand.vmem [shape: f32[1,128], index: 14, kind: input, shape index: {}]
  %s15 = inlined_call_operand.vmem [shape: bf16[128,256], index: 15, kind: input, shape index: {}]
  %s16 = inlined_call_operand.vmem [shape: f32[1,256], index: 16, kind: input, shape index: {}]
  %s17 = inlined_call_operand.vmem [shape: f32[1,256], index: 17, kind: input, shape index: {}]
  %s18 = inlined_call_operand.vmem [shape: f32[1,256], index: 18, kind: input, shape index: {}]
  %s19 = inlined_call_operand.hbm [shape: f32[48,256], index: 19, kind: output, shape index: {}]
  %s20 = sld [smem:[#allocation0]]
  $region116: #{tpu_custom_call.1} parent=0
    _
  %s22 = ssub.s32 1, %s20
  %s23 = scalar_select 0, %s22, %s20
  $region1: #{tpu_custom_call.1} parent=0
    #allocation3 [shape = 'u8[49152]{0}', space=vmem, size = 0xc000, scoped, tag = 'output window, operand 0']
    #allocation4 [shape = 's32[2]{0}', space=sflag, size = 0x8, scoped, tag = 'scoped memory for tpu_custom_call.1']
    %24 = vsyncpa [#allocation4], 0
    %s25 = scalar_lea.sflag [#allocation4], 1
    %26 = vsyncpa %s25, 0
    loop: start=0, step=1, limit=4
    $region2: #{tpu_custom_call.1} parent=1 // loop_pre_header
      _
    $region3: #{tpu_custom_call.1} parent=1 // loop_header
      %s28 = sphi 0, %s32
      %p29 = scmp.ge.s32.totalorder %s28, 4
      %s38 = sphi 0, %s40
      %s41 = sphi 0, %s38
      %s42 = sphi 0, %s41
      %s58 = sphi 0, %s42
      %s62 = sphi 0, %s62
      %s64 = sphi 0, %s62
      %s65 = sphi 0, %s64
      %s79 = sphi 0, %s65
      %s83 = sphi 0, %s83
      %s85 = sphi 0, %s83
      %s86 = sphi 0, %s85
      %s100 = sphi 0, %s86
      %s104 = sphi 0, %s104
      %s106 = sphi 0, %s104
      %s107 = sphi 0, %s106
      %s121 = sphi 0, %s107
      %s125 = sphi 0, %s125
      %s127 = sphi 0, %s125
      %s128 = sphi 0, %s127
      %s142 = sphi 0, %s128
      %s146 = sphi 0, %s146
      %s148 = sphi 0, %s146
      %s149 = sphi 0, %s148
      %s163 = sphi 0, %s149
      %s167 = sphi 0, %s167
      %s169 = sphi 0, %s167
      %s170 = sphi 0, %s169
      %s184 = sphi 0, %s170
      %s188 = sphi 0, %s188
      %s190 = sphi 0, %s188
      %s191 = sphi 0, %s190
      %s205 = sphi 0, %s191
      %s209 = sphi 0, %s209
      %s211 = sphi 0, %s209
      %s212 = sphi 0, %s211
      %s226 = sphi 0, %s212
      %s230 = sphi 0, %s230
      %s232 = sphi 0, %s230
      %s233 = sphi 0, %s232
      %s247 = sphi 0, %s233
      %s251 = sphi 0, %s251
      %s253 = sphi 0, %s251
      %s254 = sphi 0, %s253
      %s268 = sphi 0, %s254
      %s272 = sphi 0, %s272
      %s274 = sphi 0, %s272
      %s275 = sphi 0, %s274
      %s289 = sphi 0, %s275
      %s293 = sphi 0, %s293
      %s295 = sphi 0, %s293
      %s296 = sphi 0, %s295
      %s310 = sphi 0, %s296
      %s314 = sphi 0, %s314
      %s316 = sphi 0, %s314
      %s317 = sphi 0, %s316
      %s331 = sphi 0, %s317
      %s335 = sphi 0, %s335
      %s337 = sphi 0, %s335
      %s338 = sphi 0, %s337
      %s352 = sphi 0, %s338
      %s356 = sphi 0, %s356
      %s358 = sphi 0, %s356
      %s359 = sphi 0, %s358
      %s373 = sphi 0, %s359
      %s377 = sphi 0, %s377
      %s379 = sphi 0, %s377
      %s380 = sphi 0, %s379
      %s394 = sphi 0, %s380
      %s398 = sphi 0, %s398
      %s400 = sphi 0, %s398
      %s401 = sphi 0, %s400
      %s415 = sphi 0, %s401
      %s419 = sphi 0, %s419
      %s421 = sphi 0, %s419
      %s422 = sphi 0, %s421
      %s436 = sphi 0, %s422
      %s442 = sphi 0, %s444
      %s445 = sphi 0, %s442
      %s446 = sphi 0, %s445
      %s462 = sphi 0, %s446
    $region4: #{tpu_custom_call.1} parent=1 // loop_header_branch
      %31 = sbr.rel (%p29) target = $region8
    $region5: #{tpu_custom_call.1} parent=1 // loop_body
      %s33 = ssub.s32 %s28, 1
      %s34 = ssub.s32 %s28, 2
      %s35 = sadd.s32 %s28, 1
      %s36 = ssub.s32 %s28, %s35
      %p37 = scmp.eq.s32.totalorder %s36, 0
      %s39 = sadd.s32 %s38, 1
      %s40 = scalar_select %p37, %s38, %s39
      %p43 = pneg %p37
      %p44 = scmp.eq.s32.totalorder %s28, 1
      %p45 = por %p43, %p44
      %p46 = scmp.ne.s32.totalorder %s38, %s41
      %p47 = scmp.eq.s32.totalorder %s28, 0
      %p48 = por %p46, %p47
      %p49 = scmp.ne.s32.totalorder %s38, %s41
      %p50 = scmp.eq.s32.totalorder %s33, 1
      %p51 = por %p49, %p50
      %p52 = scmp.ne.s32.totalorder %s41, %s42
      %p53 = scmp.eq.s32.totalorder %s33, 0
      %p54 = por %p52, %p53
      %p55 = scmp.ne.s32.totalorder %s41, %s42
      %p56 = scmp.eq.s32.totalorder %s34, 1
      %p57 = por %p55, %p56
      %p59 = scmp.ne.s32.totalorder %s42, %s58
      %p60 = scmp.eq.s32.totalorder %s34, 0
      %p61 = por %p59, %p60
      %s63 = sadd.s32 %s62, 1
      %p66 = scmp.eq.s32.totalorder %s28, 1
      %p67 = scmp.ne.s32.totalorder %s62, %s64
      %p68 = scmp.eq.s32.totalorder %s28, 0
      %p69 = por %p67, %p68
      %p70 = scmp.ne.s32.totalorder %s62, %s64
      %p71 = scmp.eq.s32.totalorder %s33, 1
      %p72 = por %p70, %p71
      %p73 = scmp.ne.s32.totalorder %s64, %s65
      %p74 = scmp.eq.s32.totalorder %s33, 0
      %p75 = por %p73, %p74
      %p76 = scmp.ne.s32.totalorder %s64, %s65
      %p77 = scmp.eq.s32.totalorder %s34, 1
      %p78 = por %p76, %p77
      %p80 = scmp.ne.s32.totalorder %s65, %s79
      %p81 = scmp.eq.s32.totalorder %s34, 0
      %p82 = por %p80, %p81
      %s84 = sadd.s32 %s83, 1
      %p87 = scmp.eq.s32.totalorder %s28, 1
      %p88 = scmp.ne.s32.totalorder %s83, %s85
      %p89 = scmp.eq.s32.totalorder %s28, 0
      %p90 = por %p88, %p89
      %p91 = scmp.ne.s32.totalorder %s83, %s85
      %p92 = scmp.eq.s32.totalorder %s33, 1
      %p93 = por %p91, %p92
      %p94 = scmp.ne.s32.totalorder %s85, %s86
      %p95 = scmp.eq.s32.totalorder %s33, 0
      %p96 = por %p94, %p95
      %p97 = scmp.ne.s32.totalorder %s85, %s86
      %p98 = scmp.eq.s32.totalorder %s34, 1
      %p99 = por %p97, %p98
      %p101 = scmp.ne.s32.totalorder %s86, %s100
      %p102 = scmp.eq.s32.totalorder %s34, 0
      %p103 = por %p101, %p102
      %s105 = sadd.s32 %s104, 1
      %p108 = scmp.eq.s32.totalorder %s28, 1
      %p109 = scmp.ne.s32.totalorder %s104, %s106
      %p110 = scmp.eq.s32.totalorder %s28, 0
      %p111 = por %p109, %p110
      %p112 = scmp.ne.s32.totalorder %s104, %s106
      %p113 = scmp.eq.s32.totalorder %s33, 1
      %p114 = por %p112, %p113
      %p115 = scmp.ne.s32.totalorder %s106, %s107
      %p116 = scmp.eq.s32.totalorder %s33, 0
      %p117 = por %p115, %p116
      %p118 = scmp.ne.s32.totalorder %s106, %s107
      %p119 = scmp.eq.s32.totalorder %s34, 1
      %p120 = por %p118, %p119
      %p122 = scmp.ne.s32.totalorder %s107, %s121
      %p123 = scmp.eq.s32.totalorder %s34, 0
      %p124 = por %p122, %p123
      %s126 = sadd.s32 %s125, 1
      %p129 = scmp.eq.s32.totalorder %s28, 1
      %p130 = scmp.ne.s32.totalorder %s125, %s127
      %p131 = scmp.eq.s32.totalorder %s28, 0
      %p132 = por %p130, %p131
      %p133 = scmp.ne.s32.totalorder %s125, %s127
      %p134 = scmp.eq.s32.totalorder %s33, 1
      %p135 = por %p133, %p134
      %p136 = scmp.ne.s32.totalorder %s127, %s128
      %p137 = scmp.eq.s32.totalorder %s33, 0
      %p138 = por %p136, %p137
      %p139 = scmp.ne.s32.totalorder %s127, %s128
      %p140 = scmp.eq.s32.totalorder %s34, 1
      %p141 = por %p139, %p140
      %p143 = scmp.ne.s32.totalorder %s128, %s142
      %p144 = scmp.eq.s32.totalorder %s34, 0
      %p145 = por %p143, %p144
      %s147 = sadd.s32 %s146, 1
      %p150 = scmp.eq.s32.totalorder %s28, 1
      %p151 = scmp.ne.s32.totalorder %s146, %s148
      %p152 = scmp.eq.s32.totalorder %s28, 0
      %p153 = por %p151, %p152
      %p154 = scmp.ne.s32.totalorder %s146, %s148
      %p155 = scmp.eq.s32.totalorder %s33, 1
      %p156 = por %p154, %p155
      %p157 = scmp.ne.s32.totalorder %s148, %s149
      %p158 = scmp.eq.s32.totalorder %s33, 0
      %p159 = por %p157, %p158
      %p160 = scmp.ne.s32.totalorder %s148, %s149
      %p161 = scmp.eq.s32.totalorder %s34, 1
      %p162 = por %p160, %p161
      %p164 = scmp.ne.s32.totalorder %s149, %s163
      %p165 = scmp.eq.s32.totalorder %s34, 0
      %p166 = por %p164, %p165
      %s168 = sadd.s32 %s167, 1
      %p171 = scmp.eq.s32.totalorder %s28, 1
      %p172 = scmp.ne.s32.totalorder %s167, %s169
      %p173 = scmp.eq.s32.totalorder %s28, 0
      %p174 = por %p172, %p173
      %p175 = scmp.ne.s32.totalorder %s167, %s169
      %p176 = scmp.eq.s32.totalorder %s33, 1
      %p177 = por %p175, %p176
      %p178 = scmp.ne.s32.totalorder %s169, %s170
      %p179 = scmp.eq.s32.totalorder %s33, 0
      %p180 = por %p178, %p179
      %p181 = scmp.ne.s32.totalorder %s169, %s170
      %p182 = scmp.eq.s32.totalorder %s34, 1
      %p183 = por %p181, %p182
      %p185 = scmp.ne.s32.totalorder %s170, %s184
      %p186 = scmp.eq.s32.totalorder %s34, 0
      %p187 = por %p185, %p186
      %s189 = sadd.s32 %s188, 1
      %p192 = scmp.eq.s32.totalorder %s28, 1
      %p193 = scmp.ne.s32.totalorder %s188, %s190
      %p194 = scmp.eq.s32.totalorder %s28, 0
      %p195 = por %p193, %p194
      %p196 = scmp.ne.s32.totalorder %s188, %s190
      %p197 = scmp.eq.s32.totalorder %s33, 1
      %p198 = por %p196, %p197
      %p199 = scmp.ne.s32.totalorder %s190, %s191
      %p200 = scmp.eq.s32.totalorder %s33, 0
      %p201 = por %p199, %p200
      %p202 = scmp.ne.s32.totalorder %s190, %s191
      %p203 = scmp.eq.s32.totalorder %s34, 1
      %p204 = por %p202, %p203
      %p206 = scmp.ne.s32.totalorder %s191, %s205
      %p207 = scmp.eq.s32.totalorder %s34, 0
      %p208 = por %p206, %p207
      %s210 = sadd.s32 %s209, 1
      %p213 = scmp.eq.s32.totalorder %s28, 1
      %p214 = scmp.ne.s32.totalorder %s209, %s211
      %p215 = scmp.eq.s32.totalorder %s28, 0
      %p216 = por %p214, %p215
      %p217 = scmp.ne.s32.totalorder %s209, %s211
      %p218 = scmp.eq.s32.totalorder %s33, 1
      %p219 = por %p217, %p218
      %p220 = scmp.ne.s32.totalorder %s211, %s212
      %p221 = scmp.eq.s32.totalorder %s33, 0
      %p222 = por %p220, %p221
      %p223 = scmp.ne.s32.totalorder %s211, %s212
      %p224 = scmp.eq.s32.totalorder %s34, 1
      %p225 = por %p223, %p224
      %p227 = scmp.ne.s32.totalorder %s212, %s226
      %p228 = scmp.eq.s32.totalorder %s34, 0
      %p229 = por %p227, %p228
      %s231 = sadd.s32 %s230, 1
      %p234 = scmp.eq.s32.totalorder %s28, 1
      %p235 = scmp.ne.s32.totalorder %s230, %s232
      %p236 = scmp.eq.s32.totalorder %s28, 0
      %p237 = por %p235, %p236
      %p238 = scmp.ne.s32.totalorder %s230, %s232
      %p239 = scmp.eq.s32.totalorder %s33, 1
      %p240 = por %p238, %p239
      %p241 = scmp.ne.s32.totalorder %s232, %s233
      %p242 = scmp.eq.s32.totalorder %s33, 0
      %p243 = por %p241, %p242
      %p244 = scmp.ne.s32.totalorder %s232, %s233
      %p245 = scmp.eq.s32.totalorder %s34, 1
      %p246 = por %p244, %p245
      %p248 = scmp.ne.s32.totalorder %s233, %s247
      %p249 = scmp.eq.s32.totalorder %s34, 0
      %p250 = por %p248, %p249
      %s252 = sadd.s32 %s251, 1
      %p255 = scmp.eq.s32.totalorder %s28, 1
      %p256 = scmp.ne.s32.totalorder %s251, %s253
      %p257 = scmp.eq.s32.totalorder %s28, 0
      %p258 = por %p256, %p257
      %p259 = scmp.ne.s32.totalorder %s251, %s253
      %p260 = scmp.eq.s32.totalorder %s33, 1
      %p261 = por %p259, %p260
      %p262 = scmp.ne.s32.totalorder %s253, %s254
      %p263 = scmp.eq.s32.totalorder %s33, 0
      %p264 = por %p262, %p263
      %p265 = scmp.ne.s32.totalorder %s253, %s254
      %p266 = scmp.eq.s32.totalorder %s34, 1
      %p267 = por %p265, %p266
      %p269 = scmp.ne.s32.totalorder %s254, %s268
      %p270 = scmp.eq.s32.totalorder %s34, 0
      %p271 = por %p269, %p270
      %s273 = sadd.s32 %s272, 1
      %p276 = scmp.eq.s32.totalorder %s28, 1
      %p277 = scmp.ne.s32.totalorder %s272, %s274
      %p278 = scmp.eq.s32.totalorder %s28, 0
      %p279 = por %p277, %p278
      %p280 = scmp.ne.s32.totalorder %s272, %s274
      %p281 = scmp.eq.s32.totalorder %s33, 1
      %p282 = por %p280, %p281
      %p283 = scmp.ne.s32.totalorder %s274, %s275
      %p284 = scmp.eq.s32.totalorder %s33, 0
      %p285 = por %p283, %p284
      %p286 = scmp.ne.s32.totalorder %s274, %s275
      %p287 = scmp.eq.s32.totalorder %s34, 1
      %p288 = por %p286, %p287
      %p290 = scmp.ne.s32.totalorder %s275, %s289
      %p291 = scmp.eq.s32.totalorder %s34, 0
      %p292 = por %p290, %p291
      %s294 = sadd.s32 %s293, 1
      %p297 = scmp.eq.s32.totalorder %s28, 1
      %p298 = scmp.ne.s32.totalorder %s293, %s295
      %p299 = scmp.eq.s32.totalorder %s28, 0
      %p300 = por %p298, %p299
      %p301 = scmp.ne.s32.totalorder %s293, %s295
      %p302 = scmp.eq.s32.totalorder %s33, 1
      %p303 = por %p301, %p302
      %p304 = scmp.ne.s32.totalorder %s295, %s296
      %p305 = scmp.eq.s32.totalorder %s33, 0
      %p306 = por %p304, %p305
      %p307 = scmp.ne.s32.totalorder %s295, %s296
      %p308 = scmp.eq.s32.totalorder %s34, 1
      %p309 = por %p307, %p308
      %p311 = scmp.ne.s32.totalorder %s296, %s310
      %p312 = scmp.eq.s32.totalorder %s34, 0
      %p313 = por %p311, %p312
      %s315 = sadd.s32 %s314, 1
      %p318 = scmp.eq.s32.totalorder %s28, 1
      %p319 = scmp.ne.s32.totalorder %s314, %s316
      %p320 = scmp.eq.s32.totalorder %s28, 0
      %p321 = por %p319, %p320
      %p322 = scmp.ne.s32.totalorder %s314, %s316
      %p323 = scmp.eq.s32.totalorder %s33, 1
      %p324 = por %p322, %p323
      %p325 = scmp.ne.s32.totalorder %s316, %s317
      %p326 = scmp.eq.s32.totalorder %s33, 0
      %p327 = por %p325, %p326
      %p328 = scmp.ne.s32.totalorder %s316, %s317
      %p329 = scmp.eq.s32.totalorder %s34, 1
      %p330 = por %p328, %p329
      %p332 = scmp.ne.s32.totalorder %s317, %s331
      %p333 = scmp.eq.s32.totalorder %s34, 0
      %p334 = por %p332, %p333
      %s336 = sadd.s32 %s335, 1
      %p339 = scmp.eq.s32.totalorder %s28, 1
      %p340 = scmp.ne.s32.totalorder %s335, %s337
      %p341 = scmp.eq.s32.totalorder %s28, 0
      %p342 = por %p340, %p341
      %p343 = scmp.ne.s32.totalorder %s335, %s337
      %p344 = scmp.eq.s32.totalorder %s33, 1
      %p345 = por %p343, %p344
      %p346 = scmp.ne.s32.totalorder %s337, %s338
      %p347 = scmp.eq.s32.totalorder %s33, 0
      %p348 = por %p346, %p347
      %p349 = scmp.ne.s32.totalorder %s337, %s338
      %p350 = scmp.eq.s32.totalorder %s34, 1
      %p351 = por %p349, %p350
      %p353 = scmp.ne.s32.totalorder %s338, %s352
      %p354 = scmp.eq.s32.totalorder %s34, 0
      %p355 = por %p353, %p354
      %s357 = sadd.s32 %s356, 1
      %p360 = scmp.eq.s32.totalorder %s28, 1
      %p361 = scmp.ne.s32.totalorder %s356, %s358
      %p362 = scmp.eq.s32.totalorder %s28, 0
      %p363 = por %p361, %p362
      %p364 = scmp.ne.s32.totalorder %s356, %s358
      %p365 = scmp.eq.s32.totalorder %s33, 1
      %p366 = por %p364, %p365
      %p367 = scmp.ne.s32.totalorder %s358, %s359
      %p368 = scmp.eq.s32.totalorder %s33, 0
      %p369 = por %p367, %p368
      %p370 = scmp.ne.s32.totalorder %s358, %s359
      %p371 = scmp.eq.s32.totalorder %s34, 1
      %p372 = por %p370, %p371
      %p374 = scmp.ne.s32.totalorder %s359, %s373
      %p375 = scmp.eq.s32.totalorder %s34, 0
      %p376 = por %p374, %p375
      %s378 = sadd.s32 %s377, 1
      %p381 = scmp.eq.s32.totalorder %s28, 1
      %p382 = scmp.ne.s32.totalorder %s377, %s379
      %p383 = scmp.eq.s32.totalorder %s28, 0
      %p384 = por %p382, %p383
      %p385 = scmp.ne.s32.totalorder %s377, %s379
      %p386 = scmp.eq.s32.totalorder %s33, 1
      %p387 = por %p385, %p386
      %p388 = scmp.ne.s32.totalorder %s379, %s380
      %p389 = scmp.eq.s32.totalorder %s33, 0
      %p390 = por %p388, %p389
      %p391 = scmp.ne.s32.totalorder %s379, %s380
      %p392 = scmp.eq.s32.totalorder %s34, 1
      %p393 = por %p391, %p392
      %p395 = scmp.ne.s32.totalorder %s380, %s394
      %p396 = scmp.eq.s32.totalorder %s34, 0
      %p397 = por %p395, %p396
      %s399 = sadd.s32 %s398, 1
      %p402 = scmp.eq.s32.totalorder %s28, 1
      %p403 = scmp.ne.s32.totalorder %s398, %s400
      %p404 = scmp.eq.s32.totalorder %s28, 0
      %p405 = por %p403, %p404
      %p406 = scmp.ne.s32.totalorder %s398, %s400
      %p407 = scmp.eq.s32.totalorder %s33, 1
      %p408 = por %p406, %p407
      %p409 = scmp.ne.s32.totalorder %s400, %s401
      %p410 = scmp.eq.s32.totalorder %s33, 0
      %p411 = por %p409, %p410
      %p412 = scmp.ne.s32.totalorder %s400, %s401
      %p413 = scmp.eq.s32.totalorder %s34, 1
      %p414 = por %p412, %p413
      %p416 = scmp.ne.s32.totalorder %s401, %s415
      %p417 = scmp.eq.s32.totalorder %s34, 0
      %p418 = por %p416, %p417
      %s420 = sadd.s32 %s419, 1
      %p423 = scmp.eq.s32.totalorder %s28, 1
      %p424 = scmp.ne.s32.totalorder %s419, %s421
      %p425 = scmp.eq.s32.totalorder %s28, 0
      %p426 = por %p424, %p425
      %p427 = scmp.ne.s32.totalorder %s419, %s421
      %p428 = scmp.eq.s32.totalorder %s33, 1
      %p429 = por %p427, %p428
      %p430 = scmp.ne.s32.totalorder %s421, %s422
      %p431 = scmp.eq.s32.totalorder %s33, 0
      %p432 = por %p430, %p431
      %p433 = scmp.ne.s32.totalorder %s421, %s422
      %p434 = scmp.eq.s32.totalorder %s34, 1
      %p435 = por %p433, %p434
      %p437 = scmp.ne.s32.totalorder %s422, %s436
      %p438 = scmp.eq.s32.totalorder %s34, 0
      %p439 = por %p437, %p438
      %s440 = ssub.s32 %s28, %s35
      %p441 = scmp.eq.s32.totalorder %s440, 0
      %s443 = sadd.s32 %s442, 1
      %s444 = scalar_select %p441, %s442, %s443
      %p447 = pneg %p441
      %p448 = scmp.eq.s32.totalorder %s28, 1
      %p449 = por %p447, %p448
      %p450 = scmp.ne.s32.totalorder %s442, %s445
      %p451 = scmp.eq.s32.totalorder %s28, 0
      %p452 = por %p450, %p451
      %p453 = scmp.ne.s32.totalorder %s442, %s445
      %p454 = scmp.eq.s32.totalorder %s33, 1
      %p455 = por %p453, %p454
      %p456 = scmp.ne.s32.totalorder %s445, %s446
      %p457 = scmp.eq.s32.totalorder %s33, 0
      %p458 = por %p456, %p457
      %p459 = scmp.ne.s32.totalorder %s445, %s446
      %p460 = scmp.eq.s32.totalorder %s34, 1
      %p461 = por %p459, %p460
      %p463 = scmp.ne.s32.totalorder %s446, %s462
      %p464 = scmp.eq.s32.totalorder %s34, 0
      %p465 = por %p463, %p464
      %p466 = scmp.le.s32.totalorder 1, %s28
      %p467 = scmp.lt.s32.totalorder %s28, 3
      %p468 = pnand %p466, %p467
      %p469 = pneg %p468
      // Predicated region
      $region9: #{tpu_custom_call.1} parent=5 // pred_check
        _
      $region10: #{tpu_custom_call.1} parent=5 // pred_check_branch
        %471 = sbr.rel (%p468) target = $region12
      $region11: #{tpu_custom_call.1} parent=5 // pred_region
        %s472 = ssub.s32 %s28, 1
        // Predicated region
        $region13: #{tpu_custom_call.1} parent=11 // pred_check
          %p473 = pneg %p75
        $region14: #{tpu_custom_call.1} parent=11 // pred_check_branch
          %475 = sbr.rel (%p473) target = $region16
        $region15: #{tpu_custom_call.1} parent=11 // pred_region
          _
        $region16: #{tpu_custom_call.1} parent=11 // pred_fallthru
          _
        // Predicated region
        $region17: #{tpu_custom_call.1} parent=11 // pred_check
          %p476 = pneg %p96
        $region18: #{tpu_custom_call.1} parent=11 // pred_check_branch
          %478 = sbr.rel (%p476) target = $region20
        $region19: #{tpu_custom_call.1} parent=11 // pred_region
          _
        $region20: #{tpu_custom_call.1} parent=11 // pred_fallthru
          _
        // Predicated region
        $region21: #{tpu_custom_call.1} parent=11 // pred_check
          %p479 = pneg %p117
        $region22: #{tpu_custom_call.1} parent=11 // pred_check_branch
          %481 = sbr.rel (%p479) target = $region24
        $region23: #{tpu_custom_call.1} parent=11 // pred_region
          _
        $region24: #{tpu_custom_call.1} parent=11 // pred_fallthru
          _
        // Predicated region
        $region25: #{tpu_custom_call.1} parent=11 // pred_check
          %p482 = pneg %p138
        $region26: #{tpu_custom_call.1} parent=11 // pred_check_branch
          %484 = sbr.rel (%p482) target = $region28
        $region27: #{tpu_custom_call.1} parent=11 // pred_region
          _
        $region28: #{tpu_custom_call.1} parent=11 // pred_fallthru
          _
        // Predicated region
        $region29: #{tpu_custom_call.1} parent=11 // pred_check
          %p485 = pneg %p159
        $region30: #{tpu_custom_call.1} parent=11 // pred_check_branch
          %487 = sbr.rel (%p485) target = $region32
        $region31: #{tpu_custom_call.1} parent=11 // pred_region
          _
        $region32: #{tpu_custom_call.1} parent=11 // pred_fallthru
          _
        // Predicated region
        $region33: #{tpu_custom_call.1} parent=11 // pred_check
          %p488 = pneg %p180
        $region34: #{tpu_custom_call.1} parent=11 // pred_check_branch
          %490 = sbr.rel (%p488) target = $region36
        $region35: #{tpu_custom_call.1} parent=11 // pred_region
          _
        $region36: #{tpu_custom_call.1} parent=11 // pred_fallthru
          _
        // Predicated region
        $region37: #{tpu_custom_call.1} parent=11 // pred_check
          %p491 = pneg %p201
        $region38: #{tpu_custom_call.1} parent=11 // pred_check_branch
          %493 = sbr.rel (%p491) target = $region40
        $region39: #{tpu_custom_call.1} parent=11 // pred_region
          _
        $region40: #{tpu_custom_call.1} parent=11 // pred_fallthru
          _
        // Predicated region
        $region41: #{tpu_custom_call.1} parent=11 // pred_check
          %p494 = pneg %p222
        $region42: #{tpu_custom_call.1} parent=11 // pred_check_branch
          %496 = sbr.rel (%p494) target = $region44
        $region43: #{tpu_custom_call.1} parent=11 // pred_region
          _
        $region44: #{tpu_custom_call.1} parent=11 // pred_fallthru
          _
        // Predicated region
        $region45: #{tpu_custom_call.1} parent=11 // pred_check
          %p497 = pneg %p243
        $region46: #{tpu_custom_call.1} parent=11 // pred_check_branch
          %499 = sbr.rel (%p497) target = $region48
        $region47: #{tpu_custom_call.1} parent=11 // pred_region
          _
        $region48: #{tpu_custom_call.1} parent=11 // pred_fallthru
          _
        // Predicated region
        $region49: #{tpu_custom_call.1} parent=11 // pred_check
          %p500 = pneg %p264
        $region50: #{tpu_custom_call.1} parent=11 // pred_check_branch
          %502 = sbr.rel (%p500) target = $region52
        $region51: #{tpu_custom_call.1} parent=11 // pred_region
          _
        $region52: #{tpu_custom_call.1} parent=11 // pred_fallthru
          _
        // Predicated region
        $region53: #{tpu_custom_call.1} parent=11 // pred_check
          %p503 = pneg %p285
        $region54: #{tpu_custom_call.1} parent=11 // pred_check_branch
          %505 = sbr.rel (%p503) target = $region56
        $region55: #{tpu_custom_call.1} parent=11 // pred_region
          _
        $region56: #{tpu_custom_call.1} parent=11 // pred_fallthru
          _
        // Predicated region
        $region57: #{tpu_custom_call.1} parent=11 // pred_check
          %p506 = pneg %p306
        $region58: #{tpu_custom_call.1} parent=11 // pred_check_branch
          %508 = sbr.rel (%p506) target = $region60
        $region59: #{tpu_custom_call.1} parent=11 // pred_region
          _
        $region60: #{tpu_custom_call.1} parent=11 // pred_fallthru
          _
        // Predicated region
        $region61: #{tpu_custom_call.1} parent=11 // pred_check
          %p509 = pneg %p327
        $region62: #{tpu_custom_call.1} parent=11 // pred_check_branch
          %511 = sbr.rel (%p509) target = $region64
        $region63: #{tpu_custom_call.1} parent=11 // pred_region
          _
        $region64: #{tpu_custom_call.1} parent=11 // pred_fallthru
          _
        // Predicated region
        $region65: #{tpu_custom_call.1} parent=11 // pred_check
          %p512 = pneg %p348
        $region66: #{tpu_custom_call.1} parent=11 // pred_check_branch
          %514 = sbr.rel (%p512) target = $region68
        $region67: #{tpu_custom_call.1} parent=11 // pred_region
          _
        $region68: #{tpu_custom_call.1} parent=11 // pred_fallthru
          _
        // Predicated region
        $region69: #{tpu_custom_call.1} parent=11 // pred_check
          %p515 = pneg %p369
        $region70: #{tpu_custom_call.1} parent=11 // pred_check_branch
          %517 = sbr.rel (%p515) target = $region72
        $region71: #{tpu_custom_call.1} parent=11 // pred_region
          _
        $region72: #{tpu_custom_call.1} parent=11 // pred_fallthru
          _
        // Predicated region
        $region73: #{tpu_custom_call.1} parent=11 // pred_check
          %p518 = pneg %p390
        $region74: #{tpu_custom_call.1} parent=11 // pred_check_branch
          %520 = sbr.rel (%p518) target = $region76
        $region75: #{tpu_custom_call.1} parent=11 // pred_region
          _
        $region76: #{tpu_custom_call.1} parent=11 // pred_fallthru
          _
        // Predicated region
        $region77: #{tpu_custom_call.1} parent=11 // pred_check
          %p521 = pneg %p411
        $region78: #{tpu_custom_call.1} parent=11 // pred_check_branch
          %523 = sbr.rel (%p521) target = $region80
        $region79: #{tpu_custom_call.1} parent=11 // pred_region
          _
        $region80: #{tpu_custom_call.1} parent=11 // pred_fallthru
          _
        // Predicated region
        $region81: #{tpu_custom_call.1} parent=11 // pred_check
          %p524 = pneg %p432
        $region82: #{tpu_custom_call.1} parent=11 // pred_check_branch
          %526 = sbr.rel (%p524) target = $region84
        $region83: #{tpu_custom_call.1} parent=11 // pred_region
          _
        $region84: #{tpu_custom_call.1} parent=11 // pred_fallthru
          _
      $region12: #{tpu_custom_call.1} parent=5 // pred_fallthru
        _
      %p527 = scmp.lt.s32.totalorder %s28, 2
      // Predicated region
      $region85: #{tpu_custom_call.1} parent=5 // pred_check
        %p528 = pneg %p527
      $region86: #{tpu_custom_call.1} parent=5 // pred_check_branch
        %530 = sbr.rel (%p528) target = $region88
      $region87: #{tpu_custom_call.1} parent=5 // pred_region
        // Predicated region
        $region89: #{tpu_custom_call.1} parent=87 // pred_check
          %p531 = pneg %p48
        $region90: #{tpu_custom_call.1} parent=87 // pred_check_branch
          %533 = sbr.rel (%p531) target = $region92
        $region91: #{tpu_custom_call.1} parent=87 // pred_region
          %s534 = smul.u32 768, %s28
          %p535 = scmp.lt.s32.totalorder %s534, 1535
          %s536 = scalar_select %p535, %s534, 1535
          %s537 = smul.addr %s536, 8
          %s538 = scalar_lea.vmem %s0, %s537
          %s539 = smul.u32 768, %s28
        $region92: #{tpu_custom_call.1} parent=87 // pred_fallthru
          _
      $region88: #{tpu_custom_call.1} parent=5 // pred_fallthru
        _
      %p540 = scmp.le.s32.totalorder 1, %s28
      %p541 = scmp.lt.s32.totalorder %s28, 3
      %p542 = pnand %p540, %p541
      %p543 = pneg %p542
      // Predicated region
      $region93: #{tpu_custom_call.1} parent=5 // pred_check
        _
      $region94: #{tpu_custom_call.1} parent=5 // pred_check_branch
        %545 = sbr.rel (%p542) target = $region96
      $region95: #{tpu_custom_call.1} parent=5 // pred_region
        %s546 = ssub.s32 %s28, 1
        %s547 = smul.u32 768, %s33
        %p548 = scmp.lt.s32.totalorder %s547, 1535
        %s549 = scalar_select %p548, %s547, 1535
        %s550 = smul.addr %s549, 8
        %s551 = scalar_lea.vmem %s0, %s550
        %p552 = pneg %p54
        %p553 = pneg %p51
        %p554 = pneg %p75
        %p555 = pneg %p72
        %p556 = pneg %p96
        %p557 = pneg %p93
        %p558 = pneg %p117
        %p559 = pneg %p114
        %p560 = pneg %p138
        %p561 = pneg %p135
        %p562 = pneg %p159
        %p563 = pneg %p156
        %p564 = pneg %p180
        %p565 = pneg %p177
        %p566 = pneg %p201
        %p567 = pneg %p198
        %p568 = pneg %p222
        %p569 = pneg %p219
        %p570 = pneg %p243
        %p571 = pneg %p240
        %p572 = pneg %p264
        %p573 = pneg %p261
        %p574 = pneg %p285
        %p575 = pneg %p282
        %p576 = pneg %p306
        %p577 = pneg %p303
        %p578 = pneg %p327
        %p579 = pneg %p324
        %p580 = pneg %p348
        %p581 = pneg %p345
        %p582 = pneg %p369
        %p583 = pneg %p366
        %p584 = pneg %p390
        %p585 = pneg %p387
        %p586 = pneg %p411
        %p587 = pneg %p408
        %p588 = pneg %p432
        %p589 = pneg %p429
        %p590 = pneg %p458
        %p591 = pneg %p455
        %s592 = sand.u32 %s445, 1
        %s593 = scalar_lea.sflag [#allocation4], %s592
        %s594 = sand.u32 %s445, 1
        %s595 = smul.addr %s594, 48
        %s596 = scalar_lea.vmem [#allocation3], %s595
        %s597 = smul.u32 768, %s33
        %p598 = scmp.lt.s32.totalorder %s597, 1535
        %s599 = scalar_select %p598, %s597, 1535
        %s600 = smul.addr %s599, 8
        %s601 = scalar_lea.vmem %s0, %s600
        %s602 = smul.u32 768, %s33
        %s603 = smul.u32 3, %s33
        %v605 = vld [vmem:[%s1] sm:$0x7]
        %v606 = vld [vmem:[%s2] sm:$0x1]
        %v607 = vld [vmem:[%s3] sm:$0xf]
        %v608 = vld [vmem:[%s3 + $0x4] sm:$0xf]
        %v609 = vld [vmem:[%s3 + $0x8] sm:$0xf]
        %v610 = vld [vmem:[%s3 + $0xc] sm:$0xf]
        %v611 = vld [vmem:[%s3 + $0x10] sm:$0xf]
        %v612 = vld [vmem:[%s3 + $0x14] sm:$0xf]
        %v613 = vld [vmem:[%s3 + $0x18] sm:$0xf]
        %v614 = vld [vmem:[%s3 + $0x1c] sm:$0xf]
        %v615 = vld [vmem:[%s4] sm:$0x1]
        %v616 = vld [vmem:[%s5] sm:$0xf]
        %v617 = vld [vmem:[%s5 + $0x4] sm:$0xf]
        %v618 = vld [vmem:[%s5 + $0x8] sm:$0xf]
        %v619 = vld [vmem:[%s5 + $0xc] sm:$0xf]
        %v620 = vld [vmem:[%s5 + $0x10] sm:$0xf]
        %v621 = vld [vmem:[%s5 + $0x14] sm:$0xf]
        %v622 = vld [vmem:[%s5 + $0x18] sm:$0xf]
        %v623 = vld [vmem:[%s5 + $0x1c] sm:$0xf]
        %v624 = vld [vmem:[%s6] sm:$0x1]
        %v625 = vld [vmem:[%s7] sm:$0xf]
        %v626 = vld [vmem:[%s7 + $0x4] sm:$0xf]
        %v627 = vld [vmem:[%s7 + $0x8] sm:$0xf]
        %v628 = vld [vmem:[%s7 + $0xc] sm:$0xf]
        %v629 = vld [vmem:[%s7 + $0x10] sm:$0xf]
        %v630 = vld [vmem:[%s7 + $0x14] sm:$0xf]
        %v631 = vld [vmem:[%s7 + $0x18] sm:$0xf]
        %v632 = vld [vmem:[%s7 + $0x1c] sm:$0xf]
        %v633 = vld [vmem:[%s8] sm:$0x1]
        %v634 = vld [vmem:[%s9] sm:$0xff]
        %v635 = vld [vmem:[%s9 + $0x8] sm:$0xff]
        %v636 = vld [vmem:[%s9 + $0x10] sm:$0xff]
        %v637 = vld [vmem:[%s9 + $0x18] sm:$0xff]
        %v638 = vld [vmem:[%s9 + $0x20] sm:$0xff]
        %v639 = vld [vmem:[%s9 + $0x28] sm:$0xff]
        %v640 = vld [vmem:[%s9 + $0x30] sm:$0xff]
        %v641 = vld [vmem:[%s9 + $0x38] sm:$0xff]
        %v642 = vld [vmem:[%s9 + $0x40] sm:$0xff]
        %v643 = vld [vmem:[%s9 + $0x48] sm:$0xff]
        %v644 = vld [vmem:[%s9 + $0x50] sm:$0xff]
        %v645 = vld [vmem:[%s9 + $0x58] sm:$0xff]
        %v646 = vld [vmem:[%s9 + $0x60] sm:$0xff]
        %v647 = vld [vmem:[%s9 + $0x68] sm:$0xff]
        %v648 = vld [vmem:[%s9 + $0x70] sm:$0xff]
        %v649 = vld [vmem:[%s9 + $0x78] sm:$0xff]
        %v650 = vld [vmem:[%s9 + $0x80] sm:$0xff]
        %v651 = vld [vmem:[%s9 + $0x88] sm:$0xff]
        %v652 = vld [vmem:[%s9 + $0x90] sm:$0xff]
        %v653 = vld [vmem:[%s9 + $0x98] sm:$0xff]
        %v654 = vld [vmem:[%s9 + $0xa0] sm:$0xff]
        %v655 = vld [vmem:[%s9 + $0xa8] sm:$0xff]
        %v656 = vld [vmem:[%s9 + $0xb0] sm:$0xff]
        %v657 = vld [vmem:[%s9 + $0xb8] sm:$0xff]
        %v658 = vld [vmem:[%s9 + $0xc0] sm:$0xff]
        %v659 = vld [vmem:[%s9 + $0xc8] sm:$0xff]
        %v660 = vld [vmem:[%s9 + $0xd0] sm:$0xff]
        %v661 = vld [vmem:[%s9 + $0xd8] sm:$0xff]
        %v662 = vld [vmem:[%s9 + $0xe0] sm:$0xff]
        %v663 = vld [vmem:[%s9 + $0xe8] sm:$0xff]
        %v664 = vld [vmem:[%s9 + $0xf0] sm:$0xff]
        %v665 = vld [vmem:[%s9 + $0xf8] sm:$0xff]
        %v666 = vld [vmem:[%s9 + $0x100] sm:$0xff]
        %v667 = vld [vmem:[%s9 + $0x108] sm:$0xff]
        %v668 = vld [vmem:[%s9 + $0x110] sm:$0xff]
        %v669 = vld [vmem:[%s9 + $0x118] sm:$0xff]
        %v670 = vld [vmem:[%s9 + $0x120] sm:$0xff]
        %v671 = vld [vmem:[%s9 + $0x128] sm:$0xff]
        %v672 = vld [vmem:[%s9 + $0x130] sm:$0xff]
        %v673 = vld [vmem:[%s9 + $0x138] sm:$0xff]
        %v674 = vld [vmem:[%s9 + $0x140] sm:$0xff]
        %v675 = vld [vmem:[%s9 + $0x148] sm:$0xff]
        %v676 = vld [vmem:[%s9 + $0x150] sm:$0xff]
        %v677 = vld [vmem:[%s9 + $0x158] sm:$0xff]
        %v678 = vld [vmem:[%s9 + $0x160] sm:$0xff]
        %v679 = vld [vmem:[%s9 + $0x168] sm:$0xff]
        %v680 = vld [vmem:[%s9 + $0x170] sm:$0xff]
        %v681 = vld [vmem:[%s9 + $0x178] sm:$0xff]
        %v682 = vld [vmem:[%s9 + $0x180] sm:$0xff]
        %v683 = vld [vmem:[%s9 + $0x188] sm:$0xff]
        %v684 = vld [vmem:[%s9 + $0x190] sm:$0xff]
        %v685 = vld [vmem:[%s9 + $0x198] sm:$0xff]
        %v686 = vld [vmem:[%s9 + $0x1a0] sm:$0xff]
        %v687 = vld [vmem:[%s9 + $0x1a8] sm:$0xff]
        %v688 = vld [vmem:[%s9 + $0x1b0] sm:$0xff]
        %v689 = vld [vmem:[%s9 + $0x1b8] sm:$0xff]
        %v690 = vld [vmem:[%s9 + $0x1c0] sm:$0xff]
        %v691 = vld [vmem:[%s9 + $0x1c8] sm:$0xff]
        %v692 = vld [vmem:[%s9 + $0x1d0] sm:$0xff]
        %v693 = vld [vmem:[%s9 + $0x1d8] sm:$0xff]
        %v694 = vld [vmem:[%s9 + $0x1e0] sm:$0xff]
        %v695 = vld [vmem:[%s9 + $0x1e8] sm:$0xff]
        %v696 = vld [vmem:[%s9 + $0x1f0] sm:$0xff]
        %v697 = vld [vmem:[%s9 + $0x1f8] sm:$0xff]
        loop: start=0, step=1, limit=24
        $region97: #{tpu_custom_call.1} parent=95 // loop_pre_header
          _
        $region98: #{tpu_custom_call.1} parent=95 // loop_header
          %s699 = sphi 0, %s703
          %p700 = scmp.ge.s32.totalorder %s699, 24
        $region99: #{tpu_custom_call.1} parent=95 // loop_header_branch
          %702 = sbr.rel (%p700) target = $region103
        $region100: #{tpu_custom_call.1} parent=95 // loop_body
          %s704 = smul.u32 %s699, 256
          %s705 = scalar_lea.vmem %s601, %s704
          %v706 = vld [vmem:[%s705] sm:$0xff]
          %v707 = vld [vmem:[%s705 + $0x8] sm:$0xff]
          %v708 = vld [vmem:[%s705 + $0x10] sm:$0xff]
          %v709 = vld [vmem:[%s705 + $0x18] sm:$0xff]
          %v710 = vld [vmem:[%s705 + $0x20] sm:$0xff]
          %v711 = vld [vmem:[%s705 + $0x28] sm:$0xff]
          %v712 = vld [vmem:[%s705 + $0x30] sm:$0xff]
          %v713 = vld [vmem:[%s705 + $0x38] sm:$0xff]
          %v714 = vld [vmem:[%s705 + $0x40] sm:$0xff]
          %v715 = vld [vmem:[%s705 + $0x48] sm:$0xff]
          %v716 = vld [vmem:[%s705 + $0x50] sm:$0xff]
          %v717 = vld [vmem:[%s705 + $0x58] sm:$0xff]
          %v718 = vld [vmem:[%s705 + $0x60] sm:$0xff]
          %v719 = vld [vmem:[%s705 + $0x68] sm:$0xff]
          %v720 = vld [vmem:[%s705 + $0x70] sm:$0xff]
          %v721 = vld [vmem:[%s705 + $0x78] sm:$0xff]
          %v722 = vld [vmem:[%s705 + $0x80] sm:$0xff]
          %v723 = vld [vmem:[%s705 + $0x88] sm:$0xff]
          %v724 = vld [vmem:[%s705 + $0x90] sm:$0xff]
          %v725 = vld [vmem:[%s705 + $0x98] sm:$0xff]
          %v726 = vld [vmem:[%s705 + $0xa0] sm:$0xff]
          %v727 = vld [vmem:[%s705 + $0xa8] sm:$0xff]
          %v728 = vld [vmem:[%s705 + $0xb0] sm:$0xff]
          %v729 = vld [vmem:[%s705 + $0xb8] sm:$0xff]
          %v730 = vld [vmem:[%s705 + $0xc0] sm:$0xff]
          %v731 = vld [vmem:[%s705 + $0xc8] sm:$0xff]
          %v732 = vld [vmem:[%s705 + $0xd0] sm:$0xff]
          %v733 = vld [vmem:[%s705 + $0xd8] sm:$0xff]
          %v734 = vld [vmem:[%s705 + $0xe0] sm:$0xff]
          %v735 = vld [vmem:[%s705 + $0xe8] sm:$0xff]
          %v736 = vld [vmem:[%s705 + $0xf0] sm:$0xff]
          %v737 = vld [vmem:[%s705 + $0xf8] sm:$0xff]
          %739 = vset.pattern.permute.xlu0 0
          %740 = vperm.xlu0 %739, %v706
          %v741 = vpop.permute.xlu0 %740
          %744 = vset.pattern.permute.xlu0 0
          %745 = vperm.xlu0 %744, %v707
          %v746 = vpop.permute.xlu0 %745
          %749 = vset.pattern.permute.xlu0 0
          %750 = vperm.xlu0 %749, %v708
          %v751 = vpop.permute.xlu0 %750
          %754 = vset.pattern.permute.xlu0 0
          %755 = vperm.xlu0 %754, %v709
          %v756 = vpop.permute.xlu0 %755
          %759 = vset.pattern.permute.xlu0 0
          %760 = vperm.xlu0 %759, %v710
          %v761 = vpop.permute.xlu0 %760
          %764 = vset.pattern.permute.xlu0 0
          %765 = vperm.xlu0 %764, %v711
          %v766 = vpop.permute.xlu0 %765
          %769 = vset.pattern.permute.xlu0 0
          %770 = vperm.xlu0 %769, %v712
          %v771 = vpop.permute.xlu0 %770
          %774 = vset.pattern.permute.xlu0 0
          %775 = vperm.xlu0 %774, %v713
          %v776 = vpop.permute.xlu0 %775
          %779 = vset.pattern.permute.xlu0 0
          %780 = vperm.xlu0 %779, %v714
          %v781 = vpop.permute.xlu0 %780
          %784 = vset.pattern.permute.xlu0 0
          %785 = vperm.xlu0 %784, %v715
          %v786 = vpop.permute.xlu0 %785
          %789 = vset.pattern.permute.xlu0 0
          %790 = vperm.xlu0 %789, %v716
          %v791 = vpop.permute.xlu0 %790
          %794 = vset.pattern.permute.xlu0 0
          %795 = vperm.xlu0 %794, %v717
          %v796 = vpop.permute.xlu0 %795
          %799 = vset.pattern.permute.xlu0 0
          %800 = vperm.xlu0 %799, %v718
          %v801 = vpop.permute.xlu0 %800
          %804 = vset.pattern.permute.xlu0 0
          %805 = vperm.xlu0 %804, %v719
          %v806 = vpop.permute.xlu0 %805
          %809 = vset.pattern.permute.xlu0 0
          %810 = vperm.xlu0 %809, %v720
          %v811 = vpop.permute.xlu0 %810
          %814 = vset.pattern.permute.xlu0 0
          %815 = vperm.xlu0 %814, %v721
          %v816 = vpop.permute.xlu0 %815
          %819 = vset.pattern.permute.xlu0 0
          %820 = vperm.xlu0 %819, %v722
          %v821 = vpop.permute.xlu0 %820
          %824 = vset.pattern.permute.xlu0 0
          %825 = vperm.xlu0 %824, %v723
          %v826 = vpop.permute.xlu0 %825
          %829 = vset.pattern.permute.xlu0 0
          %830 = vperm.xlu0 %829, %v724
          %v831 = vpop.permute.xlu0 %830
          %834 = vset.pattern.permute.xlu0 0
          %835 = vperm.xlu0 %834, %v725
          %v836 = vpop.permute.xlu0 %835
          %839 = vset.pattern.permute.xlu0 0
          %840 = vperm.xlu0 %839, %v726
          %v841 = vpop.permute.xlu0 %840
          %844 = vset.pattern.permute.xlu0 0
          %845 = vperm.xlu0 %844, %v727
          %v846 = vpop.permute.xlu0 %845
          %849 = vset.pattern.permute.xlu0 0
          %850 = vperm.xlu0 %849, %v728
          %v851 = vpop.permute.xlu0 %850
          %854 = vset.pattern.permute.xlu0 0
          %855 = vperm.xlu0 %854, %v729
          %v856 = vpop.permute.xlu0 %855
          %859 = vset.pattern.permute.xlu0 0
          %860 = vperm.xlu0 %859, %v730
          %v861 = vpop.permute.xlu0 %860
          %864 = vset.pattern.permute.xlu0 0
          %865 = vperm.xlu0 %864, %v731
          %v866 = vpop.permute.xlu0 %865
          %869 = vset.pattern.permute.xlu0 0
          %870 = vperm.xlu0 %869, %v732
          %v871 = vpop.permute.xlu0 %870
          %874 = vset.pattern.permute.xlu0 0
          %875 = vperm.xlu0 %874, %v733
          %v876 = vpop.permute.xlu0 %875
          %879 = vset.pattern.permute.xlu0 0
          %880 = vperm.xlu0 %879, %v734
          %v881 = vpop.permute.xlu0 %880
          %884 = vset.pattern.permute.xlu0 0
          %885 = vperm.xlu0 %884, %v735
          %v886 = vpop.permute.xlu0 %885
          %889 = vset.pattern.permute.xlu0 0
          %890 = vperm.xlu0 %889, %v736
          %v891 = vpop.permute.xlu0 %890
          %894 = vset.pattern.permute.xlu0 0
          %895 = vperm.xlu0 %894, %v737
          %v896 = vpop.permute.xlu0 %895
          %v898 = vperm.slane %v605, 0
          %v899 = vmul.f32 %v741, %v898
          %v900 = vmul.f32 %v746, %v898
          %v901 = vmul.f32 %v751, %v898
          %v902 = vmul.f32 %v756, %v898
          %v903 = vmul.f32 %v761, %v898
          %v904 = vmul.f32 %v766, %v898
          %v905 = vmul.f32 %v771, %v898
          %v906 = vmul.f32 %v776, %v898
          %v907 = vmul.f32 %v781, %v898
          %v908 = vmul.f32 %v786, %v898
          %v909 = vmul.f32 %v791, %v898
          %v910 = vmul.f32 %v796, %v898
          %v911 = vmul.f32 %v801, %v898
          %v912 = vmul.f32 %v806, %v898
          %v913 = vmul.f32 %v811, %v898
          %v914 = vmul.f32 %v816, %v898
          %v915 = vmul.f32 %v821, %v898
          %v916 = vmul.f32 %v826, %v898
          %v917 = vmul.f32 %v831, %v898
          %v918 = vmul.f32 %v836, %v898
          %v919 = vmul.f32 %v841, %v898
          %v920 = vmul.f32 %v846, %v898
          %v921 = vmul.f32 %v851, %v898
          %v922 = vmul.f32 %v856, %v898
          %v923 = vmul.f32 %v861, %v898
          %v924 = vmul.f32 %v866, %v898
          %v925 = vmul.f32 %v871, %v898
          %v926 = vmul.f32 %v876, %v898
          %v927 = vmul.f32 %v881, %v898
          %v928 = vmul.f32 %v886, %v898
          %v929 = vmul.f32 %v891, %v898
          %v930 = vmul.f32 %v896, %v898
          %931 = vset.pattern.permute.xlu0 1
          %932 = vperm.xlu0 %931, %v706
          %v933 = vpop.permute.xlu0 %932
          %935 = vset.pattern.permute.xlu0 1
          %936 = vperm.xlu0 %935, %v707
          %v937 = vpop.permute.xlu0 %936
          %939 = vset.pattern.permute.xlu0 1
          %940 = vperm.xlu0 %939, %v708
          %v941 = vpop.permute.xlu0 %940
          %943 = vset.pattern.permute.xlu0 1
          %944 = vperm.xlu0 %943, %v709
          %v945 = vpop.permute.xlu0 %944
          %947 = vset.pattern.permute.xlu0 1
          %948 = vperm.xlu0 %947, %v710
          %v949 = vpop.permute.xlu0 %948
          %951 = vset.pattern.permute.xlu0 1
          %952 = vperm.xlu0 %951, %v711
          %v953 = vpop.permute.xlu0 %952
          %955 = vset.pattern.permute.xlu0 1
          %956 = vperm.xlu0 %955, %v712
          %v957 = vpop.permute.xlu0 %956
          %959 = vset.pattern.permute.xlu0 1
          %960 = vperm.xlu0 %959, %v713
          %v961 = vpop.permute.xlu0 %960
          %963 = vset.pattern.permute.xlu0 1
          %964 = vperm.xlu0 %963, %v714
          %v965 = vpop.permute.xlu0 %964
          %967 = vset.pattern.permute.xlu0 1
          %968 = vperm.xlu0 %967, %v715
          %v969 = vpop.permute.xlu0 %968
          %971 = vset.pattern.permute.xlu0 1
          %972 = vperm.xlu0 %971, %v716
          %v973 = vpop.permute.xlu0 %972
          %975 = vset.pattern.permute.xlu0 1
          %976 = vperm.xlu0 %975, %v717
          %v977 = vpop.permute.xlu0 %976
          %979 = vset.pattern.permute.xlu0 1
          %980 = vperm.xlu0 %979, %v718
          %v981 = vpop.permute.xlu0 %980
          %983 = vset.pattern.permute.xlu0 1
          %984 = vperm.xlu0 %983, %v719
          %v985 = vpop.permute.xlu0 %984
          %987 = vset.pattern.permute.xlu0 1
          %988 = vperm.xlu0 %987, %v720
          %v989 = vpop.permute.xlu0 %988
          %991 = vset.pattern.permute.xlu0 1
          %992 = vperm.xlu0 %991, %v721
          %v993 = vpop.permute.xlu0 %992
          %995 = vset.pattern.permute.xlu0 1
          %996 = vperm.xlu0 %995, %v722
          %v997 = vpop.permute.xlu0 %996
          %999 = vset.pattern.permute.xlu0 1
          %1000 = vperm.xlu0 %999, %v723
          %v1001 = vpop.permute.xlu0 %1000
          %1003 = vset.pattern.permute.xlu0 1
          %1004 = vperm.xlu0 %1003, %v724
          %v1005 = vpop.permute.xlu0 %1004
          %1007 = vset.pattern.permute.xlu0 1
          %1008 = vperm.xlu0 %1007, %v725
          %v1009 = vpop.permute.xlu0 %1008
          %1011 = vset.pattern.permute.xlu0 1
          %1012 = vperm.xlu0 %1011, %v726
          %v1013 = vpop.permute.xlu0 %1012
          %1015 = vset.pattern.permute.xlu0 1
          %1016 = vperm.xlu0 %1015, %v727
          %v1017 = vpop.permute.xlu0 %1016
          %1019 = vset.pattern.permute.xlu0 1
          %1020 = vperm.xlu0 %1019, %v728
          %v1021 = vpop.permute.xlu0 %1020
          %1023 = vset.pattern.permute.xlu0 1
          %1024 = vperm.xlu0 %1023, %v729
          %v1025 = vpop.permute.xlu0 %1024
          %1027 = vset.pattern.permute.xlu0 1
          %1028 = vperm.xlu0 %1027, %v730
          %v1029 = vpop.permute.xlu0 %1028
          %1031 = vset.pattern.permute.xlu0 1
          %1032 = vperm.xlu0 %1031, %v731
          %v1033 = vpop.permute.xlu0 %1032
          %1035 = vset.pattern.permute.xlu0 1
          %1036 = vperm.xlu0 %1035, %v732
          %v1037 = vpop.permute.xlu0 %1036
          %1039 = vset.pattern.permute.xlu0 1
          %1040 = vperm.xlu0 %1039, %v733
          %v1041 = vpop.permute.xlu0 %1040
          %1043 = vset.pattern.permute.xlu0 1
          %1044 = vperm.xlu0 %1043, %v734
          %v1045 = vpop.permute.xlu0 %1044
          %1047 = vset.pattern.permute.xlu0 1
          %1048 = vperm.xlu0 %1047, %v735
          %v1049 = vpop.permute.xlu0 %1048
          %1051 = vset.pattern.permute.xlu0 1
          %1052 = vperm.xlu0 %1051, %v736
          %v1053 = vpop.permute.xlu0 %1052
          %1055 = vset.pattern.permute.xlu0 1
          %1056 = vperm.xlu0 %1055, %v737
          %v1057 = vpop.permute.xlu0 %1056
          %v1059 = vperm.slane %v605, 1
          %v1060 = vmul.f32 %v933, %v1059
          %v1061 = vmul.f32 %v937, %v1059
          %v1062 = vmul.f32 %v941, %v1059
          %v1063 = vmul.f32 %v945, %v1059
          %v1064 = vmul.f32 %v949, %v1059
          %v1065 = vmul.f32 %v953, %v1059
          %v1066 = vmul.f32 %v957, %v1059
          %v1067 = vmul.f32 %v961, %v1059
          %v1068 = vmul.f32 %v965, %v1059
          %v1069 = vmul.f32 %v969, %v1059
          %v1070 = vmul.f32 %v973, %v1059
          %v1071 = vmul.f32 %v977, %v1059
          %v1072 = vmul.f32 %v981, %v1059
          %v1073 = vmul.f32 %v985, %v1059
          %v1074 = vmul.f32 %v989, %v1059
          %v1075 = vmul.f32 %v993, %v1059
          %v1076 = vmul.f32 %v997, %v1059
          %v1077 = vmul.f32 %v1001, %v1059
          %v1078 = vmul.f32 %v1005, %v1059
          %v1079 = vmul.f32 %v1009, %v1059
          %v1080 = vmul.f32 %v1013, %v1059
          %v1081 = vmul.f32 %v1017, %v1059
          %v1082 = vmul.f32 %v1021, %v1059
          %v1083 = vmul.f32 %v1025, %v1059
          %v1084 = vmul.f32 %v1029, %v1059
          %v1085 = vmul.f32 %v1033, %v1059
          %v1086 = vmul.f32 %v1037, %v1059
          %v1087 = vmul.f32 %v1041, %v1059
          %v1088 = vmul.f32 %v1045, %v1059
          %v1089 = vmul.f32 %v1049, %v1059
          %v1090 = vmul.f32 %v1053, %v1059
          %v1091 = vmul.f32 %v1057, %v1059
          %v1092 = vadd.f32 %v899, %v1060
          %v1093 = vadd.f32 %v900, %v1061
          %v1094 = vadd.f32 %v901, %v1062
          %v1095 = vadd.f32 %v902, %v1063
          %v1096 = vadd.f32 %v903, %v1064
          %v1097 = vadd.f32 %v904, %v1065
          %v1098 = vadd.f32 %v905, %v1066
          %v1099 = vadd.f32 %v906, %v1067
          %v1100 = vadd.f32 %v907, %v1068
          %v1101 = vadd.f32 %v908, %v1069
          %v1102 = vadd.f32 %v909, %v1070
          %v1103 = vadd.f32 %v910, %v1071
          %v1104 = vadd.f32 %v911, %v1072
          %v1105 = vadd.f32 %v912, %v1073
          %v1106 = vadd.f32 %v913, %v1074
          %v1107 = vadd.f32 %v914, %v1075
          %v1108 = vadd.f32 %v915, %v1076
          %v1109 = vadd.f32 %v916, %v1077
          %v1110 = vadd.f32 %v917, %v1078
          %v1111 = vadd.f32 %v918, %v1079
          %v1112 = vadd.f32 %v919, %v1080
          %v1113 = vadd.f32 %v920, %v1081
          %v1114 = vadd.f32 %v921, %v1082
          %v1115 = vadd.f32 %v922, %v1083
          %v1116 = vadd.f32 %v923, %v1084
          %v1117 = vadd.f32 %v924, %v1085
          %v1118 = vadd.f32 %v925, %v1086
          %v1119 = vadd.f32 %v926, %v1087
          %v1120 = vadd.f32 %v927, %v1088
          %v1121 = vadd.f32 %v928, %v1089
          %v1122 = vadd.f32 %v929, %v1090
          %v1123 = vadd.f32 %v930, %v1091
          %1124 = vset.pattern.permute.xlu0 2
          %1125 = vperm.xlu0 %1124, %v706
          %v1126 = vpop.permute.xlu0 %1125
          %1128 = vset.pattern.permute.xlu0 2
          %1129 = vperm.xlu0 %1128, %v707
          %v1130 = vpop.permute.xlu0 %1129
          %1132 = vset.pattern.permute.xlu0 2
          %1133 = vperm.xlu0 %1132, %v708
          %v1134 = vpop.permute.xlu0 %1133
          %1136 = vset.pattern.permute.xlu0 2
          %1137 = vperm.xlu0 %1136, %v709
          %v1138 = vpop.permute.xlu0 %1137
          %1140 = vset.pattern.permute.xlu0 2
          %1141 = vperm.xlu0 %1140, %v710
          %v1142 = vpop.permute.xlu0 %1141
          %1144 = vset.pattern.permute.xlu0 2
          %1145 = vperm.xlu0 %1144, %v711
          %v1146 = vpop.permute.xlu0 %1145
          %1148 = vset.pattern.permute.xlu0 2
          %1149 = vperm.xlu0 %1148, %v712
          %v1150 = vpop.permute.xlu0 %1149
          %1152 = vset.pattern.permute.xlu0 2
          %1153 = vperm.xlu0 %1152, %v713
          %v1154 = vpop.permute.xlu0 %1153
          %1156 = vset.pattern.permute.xlu0 2
          %1157 = vperm.xlu0 %1156, %v714
          %v1158 = vpop.permute.xlu0 %1157
          %1160 = vset.pattern.permute.xlu0 2
          %1161 = vperm.xlu0 %1160, %v715
          %v1162 = vpop.permute.xlu0 %1161
          %1164 = vset.pattern.permute.xlu0 2
          %1165 = vperm.xlu0 %1164, %v716
          %v1166 = vpop.permute.xlu0 %1165
          %1168 = vset.pattern.permute.xlu0 2
          %1169 = vperm.xlu0 %1168, %v717
          %v1170 = vpop.permute.xlu0 %1169
          %1172 = vset.pattern.permute.xlu0 2
          %1173 = vperm.xlu0 %1172, %v718
          %v1174 = vpop.permute.xlu0 %1173
          %1176 = vset.pattern.permute.xlu0 2
          %1177 = vperm.xlu0 %1176, %v719
          %v1178 = vpop.permute.xlu0 %1177
          %1180 = vset.pattern.permute.xlu0 2
          %1181 = vperm.xlu0 %1180, %v720
          %v1182 = vpop.permute.xlu0 %1181
          %1184 = vset.pattern.permute.xlu0 2
          %1185 = vperm.xlu0 %1184, %v721
          %v1186 = vpop.permute.xlu0 %1185
          %1188 = vset.pattern.permute.xlu0 2
          %1189 = vperm.xlu0 %1188, %v722
          %v1190 = vpop.permute.xlu0 %1189
          %1192 = vset.pattern.permute.xlu0 2
          %1193 = vperm.xlu0 %1192, %v723
          %v1194 = vpop.permute.xlu0 %1193
          %1196 = vset.pattern.permute.xlu0 2
          %1197 = vperm.xlu0 %1196, %v724
          %v1198 = vpop.permute.xlu0 %1197
          %1200 = vset.pattern.permute.xlu0 2
          %1201 = vperm.xlu0 %1200, %v725
          %v1202 = vpop.permute.xlu0 %1201
          %1204 = vset.pattern.permute.xlu0 2
          %1205 = vperm.xlu0 %1204, %v726
          %v1206 = vpop.permute.xlu0 %1205
          %1208 = vset.pattern.permute.xlu0 2
          %1209 = vperm.xlu0 %1208, %v727
          %v1210 = vpop.permute.xlu0 %1209
          %1212 = vset.pattern.permute.xlu0 2
          %1213 = vperm.xlu0 %1212, %v728
          %v1214 = vpop.permute.xlu0 %1213
          %1216 = vset.pattern.permute.xlu0 2
          %1217 = vperm.xlu0 %1216, %v729
          %v1218 = vpop.permute.xlu0 %1217
          %1220 = vset.pattern.permute.xlu0 2
          %1221 = vperm.xlu0 %1220, %v730
          %v1222 = vpop.permute.xlu0 %1221
          %1224 = vset.pattern.permute.xlu0 2
          %1225 = vperm.xlu0 %1224, %v731
          %v1226 = vpop.permute.xlu0 %1225
          %1228 = vset.pattern.permute.xlu0 2
          %1229 = vperm.xlu0 %1228, %v732
          %v1230 = vpop.permute.xlu0 %1229
          %1232 = vset.pattern.permute.xlu0 2
          %1233 = vperm.xlu0 %1232, %v733
          %v1234 = vpop.permute.xlu0 %1233
          %1236 = vset.pattern.permute.xlu0 2
          %1237 = vperm.xlu0 %1236, %v734
          %v1238 = vpop.permute.xlu0 %1237
          %1240 = vset.pattern.permute.xlu0 2
          %1241 = vperm.xlu0 %1240, %v735
          %v1242 = vpop.permute.xlu0 %1241
          %1244 = vset.pattern.permute.xlu0 2
          %1245 = vperm.xlu0 %1244, %v736
          %v1246 = vpop.permute.xlu0 %1245
          %1248 = vset.pattern.permute.xlu0 2
          %1249 = vperm.xlu0 %1248, %v737
          %v1250 = vpop.permute.xlu0 %1249
          %v1252 = vperm.slane %v605, 2
          %v1253 = vmul.f32 %v1126, %v1252
          %v1254 = vmul.f32 %v1130, %v1252
          %v1255 = vmul.f32 %v1134, %v1252
          %v1256 = vmul.f32 %v1138, %v1252
          %v1257 = vmul.f32 %v1142, %v1252
          %v1258 = vmul.f32 %v1146, %v1252
          %v1259 = vmul.f32 %v1150, %v1252
          %v1260 = vmul.f32 %v1154, %v1252
          %v1261 = vmul.f32 %v1158, %v1252
          %v1262 = vmul.f32 %v1162, %v1252
          %v1263 = vmul.f32 %v1166, %v1252
          %v1264 = vmul.f32 %v1170, %v1252
          %v1265 = vmul.f32 %v1174, %v1252
          %v1266 = vmul.f32 %v1178, %v1252
          %v1267 = vmul.f32 %v1182, %v1252
          %v1268 = vmul.f32 %v1186, %v1252
          %v1269 = vmul.f32 %v1190, %v1252
          %v1270 = vmul.f32 %v1194, %v1252
          %v1271 = vmul.f32 %v1198, %v1252
          %v1272 = vmul.f32 %v1202, %v1252
          %v1273 = vmul.f32 %v1206, %v1252
          %v1274 = vmul.f32 %v1210, %v1252
          %v1275 = vmul.f32 %v1214, %v1252
          %v1276 = vmul.f32 %v1218, %v1252
          %v1277 = vmul.f32 %v1222, %v1252
          %v1278 = vmul.f32 %v1226, %v1252
          %v1279 = vmul.f32 %v1230, %v1252
          %v1280 = vmul.f32 %v1234, %v1252
          %v1281 = vmul.f32 %v1238, %v1252
          %v1282 = vmul.f32 %v1242, %v1252
          %v1283 = vmul.f32 %v1246, %v1252
          %v1284 = vmul.f32 %v1250, %v1252
          %v1285 = vadd.f32 %v1092, %v1253
          %v1286 = vadd.f32 %v1093, %v1254
          %v1287 = vadd.f32 %v1094, %v1255
          %v1288 = vadd.f32 %v1095, %v1256
          %v1289 = vadd.f32 %v1096, %v1257
          %v1290 = vadd.f32 %v1097, %v1258
          %v1291 = vadd.f32 %v1098, %v1259
          %v1292 = vadd.f32 %v1099, %v1260
          %v1293 = vadd.f32 %v1100, %v1261
          %v1294 = vadd.f32 %v1101, %v1262
          %v1295 = vadd.f32 %v1102, %v1263
          %v1296 = vadd.f32 %v1103, %v1264
          %v1297 = vadd.f32 %v1104, %v1265
          %v1298 = vadd.f32 %v1105, %v1266
          %v1299 = vadd.f32 %v1106, %v1267
          %v1300 = vadd.f32 %v1107, %v1268
          %v1301 = vadd.f32 %v1108, %v1269
          %v1302 = vadd.f32 %v1109, %v1270
          %v1303 = vadd.f32 %v1110, %v1271
          %v1304 = vadd.f32 %v1111, %v1272
          %v1305 = vadd.f32 %v1112, %v1273
          %v1306 = vadd.f32 %v1113, %v1274
          %v1307 = vadd.f32 %v1114, %v1275
          %v1308 = vadd.f32 %v1115, %v1276
          %v1309 = vadd.f32 %v1116, %v1277
          %v1310 = vadd.f32 %v1117, %v1278
          %v1311 = vadd.f32 %v1118, %v1279
          %v1312 = vadd.f32 %v1119, %v1280
          %v1313 = vadd.f32 %v1120, %v1281
          %v1314 = vadd.f32 %v1121, %v1282
          %v1315 = vadd.f32 %v1122, %v1283
          %v1316 = vadd.f32 %v1123, %v1284
          %v1318 = vperm.slane %v606, 0
          %v1320 = vadd.f32 %v1285, %v1318
          %v1321 = vadd.f32 %v1286, %v1318
          %v1322 = vadd.f32 %v1287, %v1318
          %v1323 = vadd.f32 %v1288, %v1318
          %v1324 = vadd.f32 %v1289, %v1318
          %v1325 = vadd.f32 %v1290, %v1318
          %v1326 = vadd.f32 %v1291, %v1318
          %v1327 = vadd.f32 %v1292, %v1318
          %v1328 = vadd.f32 %v1293, %v1318
          %v1329 = vadd.f32 %v1294, %v1318
          %v1330 = vadd.f32 %v1295, %v1318
          %v1331 = vadd.f32 %v1296, %v1318
          %v1332 = vadd.f32 %v1297, %v1318
          %v1333 = vadd.f32 %v1298, %v1318
          %v1334 = vadd.f32 %v1299, %v1318
          %v1335 = vadd.f32 %v1300, %v1318
          %v1336 = vadd.f32 %v1301, %v1318
          %v1337 = vadd.f32 %v1302, %v1318
          %v1338 = vadd.f32 %v1303, %v1318
          %v1339 = vadd.f32 %v1304, %v1318
          %v1340 = vadd.f32 %v1305, %v1318
          %v1341 = vadd.f32 %v1306, %v1318
          %v1342 = vadd.f32 %v1307, %v1318
          %v1343 = vadd.f32 %v1308, %v1318
          %v1344 = vadd.f32 %v1309, %v1318
          %v1345 = vadd.f32 %v1310, %v1318
          %v1346 = vadd.f32 %v1311, %v1318
          %v1347 = vadd.f32 %v1312, %v1318
          %v1348 = vadd.f32 %v1313, %v1318
          %v1349 = vadd.f32 %v1314, %v1318
          %v1350 = vadd.f32 %v1315, %v1318
          %v1351 = vadd.f32 %v1316, %v1318
          %v1352 = vmax.f32 %v1320, 0.0
          %v1353 = vmax.f32 %v1321, 0.0
          %v1354 = vmax.f32 %v1322, 0.0
          %v1355 = vmax.f32 %v1323, 0.0
          %v1356 = vmax.f32 %v1324, 0.0
          %v1357 = vmax.f32 %v1325, 0.0
          %v1358 = vmax.f32 %v1326, 0.0
          %v1359 = vmax.f32 %v1327, 0.0
          %v1360 = vmax.f32 %v1328, 0.0
          %v1361 = vmax.f32 %v1329, 0.0
          %v1362 = vmax.f32 %v1330, 0.0
          %v1363 = vmax.f32 %v1331, 0.0
          %v1364 = vmax.f32 %v1332, 0.0
          %v1365 = vmax.f32 %v1333, 0.0
          %v1366 = vmax.f32 %v1334, 0.0
          %v1367 = vmax.f32 %v1335, 0.0
          %v1368 = vmax.f32 %v1336, 0.0
          %v1369 = vmax.f32 %v1337, 0.0
          %v1370 = vmax.f32 %v1338, 0.0
          %v1371 = vmax.f32 %v1339, 0.0
          %v1372 = vmax.f32 %v1340, 0.0
          %v1373 = vmax.f32 %v1341, 0.0
          %v1374 = vmax.f32 %v1342, 0.0
          %v1375 = vmax.f32 %v1343, 0.0
          %v1376 = vmax.f32 %v1344, 0.0
          %v1377 = vmax.f32 %v1345, 0.0
          %v1378 = vmax.f32 %v1346, 0.0
          %v1379 = vmax.f32 %v1347, 0.0
          %v1380 = vmax.f32 %v1348, 0.0
          %v1381 = vmax.f32 %v1349, 0.0
          %v1382 = vmax.f32 %v1350, 0.0
          %v1383 = vmax.f32 %v1351, 0.0
          %v1384 = vpack.c.bf16 %v1353, %v1352
          %v1385 = vpack.c.bf16 %v1355, %v1354
          %v1386 = vpack.c.bf16 %v1357, %v1356
          %v1387 = vpack.c.bf16 %v1359, %v1358
          %v1388 = vpack.c.bf16 %v1361, %v1360
          %v1389 = vpack.c.bf16 %v1363, %v1362
          %v1390 = vpack.c.bf16 %v1365, %v1364
          %v1391 = vpack.c.bf16 %v1367, %v1366
          %v1392 = vpack.c.bf16 %v1369, %v1368
          %v1393 = vpack.c.bf16 %v1371, %v1370
          %v1394 = vpack.c.bf16 %v1373, %v1372
          %v1395 = vpack.c.bf16 %v1375, %v1374
          %v1396 = vpack.c.bf16 %v1377, %v1376
          %v1397 = vpack.c.bf16 %v1379, %v1378
          %v1398 = vpack.c.bf16 %v1381, %v1380
          %v1399 = vpack.c.bf16 %v1383, %v1382
          %v1401 = vperm.slane %v615, 0
          %v1411 = vunpack.c.l.b16 %v607
          %v1412 = vunpack.c.l.b16 %v608
          %v1413 = vunpack.c.l.b16 %v609
          %v1414 = vunpack.c.l.b16 %v610
          %v1415 = vunpack.c.l.b16 %v611
          %v1416 = vunpack.c.l.b16 %v612
          %v1417 = vunpack.c.l.b16 %v613
          %v1418 = vunpack.c.l.b16 %v614
          %v1419 = vpack.c.b16 %v1412, %v1411
          %v1420 = vpack.c.b16 %v1414, %v1413
          %v1421 = vpack.c.b16 %v1416, %v1415
          %v1422 = vpack.c.b16 %v1418, %v1417
          %vm1427 = vcmask 523264
          %v1429 = vsel %vm1427, %v1384, 0
          %v1432 = vsel %vm1427, %v1385, 0
          %v1435 = vsel %vm1427, %v1386, 0
          %v1438 = vsel %vm1427, %v1387, 0
          %v1441 = vsel %vm1427, %v1388, 0
          %v1444 = vsel %vm1427, %v1389, 0
          %v1447 = vsel %vm1427, %v1390, 0
          %v1450 = vsel %vm1427, %v1391, 0
          %v1453 = vsel %vm1427, %v1392, 0
          %v1456 = vsel %vm1427, %v1393, 0
          %v1459 = vsel %vm1427, %v1394, 0
          %v1462 = vsel %vm1427, %v1395, 0
          %v1465 = vsel %vm1427, %v1396, 0
          %v1468 = vsel %vm1427, %v1397, 0
          %v1471 = vsel %vm1427, %v1398, 0
          %v1474 = vsel %vm1427, %v1399, 0
          %1476 = vmatpush.bf16.msra.mxu0 0
          %1477 = vmatpush.bf16.msra.mxu0 0
          %1478 = vmatpush.bf16.msra.mxu0 0
          %1479 = vmatpush.bf16.msra.mxu0 0
          %1480 = vmatpush.bf16.msra.mxu0 %v1422
          %1481 = vmatpush.bf16.msra.mxu0 %v1421
          %1482 = vmatpush.bf16.msra.mxu0 %v1420
          %1483 = vmatpush.bf16.msra.mxu0 %v1419
          %1484 = vmatmul.bf16.gmra.mxu0 %v1429
          %v1485 = vpop.f32.mrf.mxu0
          %v1486 = vadd.f32 %v1401, %v1485
          %v1487 = vpop.f32.mrf.mxu0
          %v1488 = vadd.f32 %v1401, %v1487
          %1489 = vmatmul.bf16.gmra.mxu0 %v1432
          %v1490 = vpop.f32.mrf.mxu0
          %v1491 = vadd.f32 %v1401, %v1490
          %v1492 = vpop.f32.mrf.mxu0
          %v1493 = vadd.f32 %v1401, %v1492
          %1494 = vmatmul.bf16.gmra.mxu0 %v1435
          %v1495 = vpop.f32.mrf.mxu0
          %v1496 = vadd.f32 %v1401, %v1495
          %v1497 = vpop.f32.mrf.mxu0
          %v1498 = vadd.f32 %v1401, %v1497
          %1499 = vmatmul.bf16.gmra.mxu0 %v1438
          %v1500 = vpop.f32.mrf.mxu0
          %v1501 = vadd.f32 %v1401, %v1500
          %v1502 = vpop.f32.mrf.mxu0
          %v1503 = vadd.f32 %v1401, %v1502
          %1504 = vmatmul.bf16.gmra.mxu0 %v1441
          %v1505 = vpop.f32.mrf.mxu0
          %v1506 = vadd.f32 %v1401, %v1505
          %v1507 = vpop.f32.mrf.mxu0
          %v1508 = vadd.f32 %v1401, %v1507
          %1509 = vmatmul.bf16.gmra.mxu0 %v1444
          %v1510 = vpop.f32.mrf.mxu0
          %v1511 = vadd.f32 %v1401, %v1510
          %v1512 = vpop.f32.mrf.mxu0
          %v1513 = vadd.f32 %v1401, %v1512
          %1514 = vmatmul.bf16.gmra.mxu0 %v1447
          %v1515 = vpop.f32.mrf.mxu0
          %v1516 = vadd.f32 %v1401, %v1515
          %v1517 = vpop.f32.mrf.mxu0
          %v1518 = vadd.f32 %v1401, %v1517
          %1519 = vmatmul.bf16.gmra.mxu0 %v1450
          %v1520 = vpop.f32.mrf.mxu0
          %v1521 = vadd.f32 %v1401, %v1520
          %v1522 = vpop.f32.mrf.mxu0
          %v1523 = vadd.f32 %v1401, %v1522
          %1524 = vmatmul.bf16.gmra.mxu0 %v1453
          %v1525 = vpop.f32.mrf.mxu0
          %v1526 = vadd.f32 %v1401, %v1525
          %v1527 = vpop.f32.mrf.mxu0
          %v1528 = vadd.f32 %v1401, %v1527
          %1529 = vmatmul.bf16.gmra.mxu0 %v1456
          %v1530 = vpop.f32.mrf.mxu0
          %v1531 = vadd.f32 %v1401, %v1530
          %v1532 = vpop.f32.mrf.mxu0
          %v1533 = vadd.f32 %v1401, %v1532
          %1534 = vmatmul.bf16.gmra.mxu0 %v1459
          %v1535 = vpop.f32.mrf.mxu0
          %v1536 = vadd.f32 %v1401, %v1535
          %v1537 = vpop.f32.mrf.mxu0
          %v1538 = vadd.f32 %v1401, %v1537
          %1539 = vmatmul.bf16.gmra.mxu0 %v1462
          %v1540 = vpop.f32.mrf.mxu0
          %v1541 = vadd.f32 %v1401, %v1540
          %v1542 = vpop.f32.mrf.mxu0
          %v1543 = vadd.f32 %v1401, %v1542
          %1544 = vmatmul.bf16.gmra.mxu0 %v1465
          %v1545 = vpop.f32.mrf.mxu0
          %v1546 = vadd.f32 %v1401, %v1545
          %v1547 = vpop.f32.mrf.mxu0
          %v1548 = vadd.f32 %v1401, %v1547
          %1549 = vmatmul.bf16.gmra.mxu0 %v1468
          %v1550 = vpop.f32.mrf.mxu0
          %v1551 = vadd.f32 %v1401, %v1550
          %v1552 = vpop.f32.mrf.mxu0
          %v1553 = vadd.f32 %v1401, %v1552
          %1554 = vmatmul.bf16.gmra.mxu0 %v1471
          %v1555 = vpop.f32.mrf.mxu0
          %v1556 = vadd.f32 %v1401, %v1555
          %v1557 = vpop.f32.mrf.mxu0
          %v1558 = vadd.f32 %v1401, %v1557
          %1559 = vmatmul.bf16.gmra.mxu0 %v1474
          %v1560 = vpop.f32.mrf.mxu0
          %v1561 = vadd.f32 %v1401, %v1560
          %v1562 = vpop.f32.mrf.mxu0
          %v1563 = vadd.f32 %v1401, %v1562
          %1564 = vdwg.mxu0
          %v1565 = vmax.f32 %v1486, 0.0
          %v1566 = vmax.f32 %v1488, 0.0
          %v1567 = vmax.f32 %v1491, 0.0
          %v1568 = vmax.f32 %v1493, 0.0
          %v1569 = vmax.f32 %v1496, 0.0
          %v1570 = vmax.f32 %v1498, 0.0
          %v1571 = vmax.f32 %v1501, 0.0
          %v1572 = vmax.f32 %v1503, 0.0
          %v1573 = vmax.f32 %v1506, 0.0
          %v1574 = vmax.f32 %v1508, 0.0
          %v1575 = vmax.f32 %v1511, 0.0
          %v1576 = vmax.f32 %v1513, 0.0
          %v1577 = vmax.f32 %v1516, 0.0
          %v1578 = vmax.f32 %v1518, 0.0
          %v1579 = vmax.f32 %v1521, 0.0
          %v1580 = vmax.f32 %v1523, 0.0
          %v1581 = vmax.f32 %v1526, 0.0
          %v1582 = vmax.f32 %v1528, 0.0
          %v1583 = vmax.f32 %v1531, 0.0
          %v1584 = vmax.f32 %v1533, 0.0
          %v1585 = vmax.f32 %v1536, 0.0
          %v1586 = vmax.f32 %v1538, 0.0
          %v1587 = vmax.f32 %v1541, 0.0
          %v1588 = vmax.f32 %v1543, 0.0
          %v1589 = vmax.f32 %v1546, 0.0
          %v1590 = vmax.f32 %v1548, 0.0
          %v1591 = vmax.f32 %v1551, 0.0
          %v1592 = vmax.f32 %v1553, 0.0
          %v1593 = vmax.f32 %v1556, 0.0
          %v1594 = vmax.f32 %v1558, 0.0
          %v1595 = vmax.f32 %v1561, 0.0
          %v1596 = vmax.f32 %v1563, 0.0
          %v1597 = vpack.c.bf16 %v1566, %v1565
          %v1598 = vpack.c.bf16 %v1568, %v1567
          %v1599 = vpack.c.bf16 %v1570, %v1569
          %v1600 = vpack.c.bf16 %v1572, %v1571
          %v1601 = vpack.c.bf16 %v1574, %v1573
          %v1602 = vpack.c.bf16 %v1576, %v1575
          %v1603 = vpack.c.bf16 %v1578, %v1577
          %v1604 = vpack.c.bf16 %v1580, %v1579
          %v1605 = vpack.c.bf16 %v1582, %v1581
          %v1606 = vpack.c.bf16 %v1584, %v1583
          %v1607 = vpack.c.bf16 %v1586, %v1585
          %v1608 = vpack.c.bf16 %v1588, %v1587
          %v1609 = vpack.c.bf16 %v1590, %v1589
          %v1610 = vpack.c.bf16 %v1592, %v1591
          %v1611 = vpack.c.bf16 %v1594, %v1593
          %v1612 = vpack.c.bf16 %v1596, %v1595
          %v1614 = vperm.slane %v624, 0
          %v1624 = vunpack.c.l.b16 %v616
          %v1625 = vunpack.c.l.b16 %v617
          %v1626 = vunpack.c.l.b16 %v618
          %v1627 = vunpack.c.l.b16 %v619
          %v1628 = vunpack.c.l.b16 %v620
          %v1629 = vunpack.c.l.b16 %v621
          %v1630 = vunpack.c.l.b16 %v622
          %v1631 = vunpack.c.l.b16 %v623
          %v1632 = vpack.c.b16 %v1625, %v1624
          %v1633 = vpack.c.b16 %v1627, %v1626
          %v1634 = vpack.c.b16 %v1629, %v1628
          %v1635 = vpack.c.b16 %v1631, %v1630
          %v1641 = vsel %vm1427, %v1597, 0
          %v1644 = vsel %vm1427, %v1598, 0
          %v1647 = vsel %vm1427, %v1599, 0
          %v1650 = vsel %vm1427, %v1600, 0
          %v1653 = vsel %vm1427, %v1601, 0
          %v1656 = vsel %vm1427, %v1602, 0
          %v1659 = vsel %vm1427, %v1603, 0
          %v1662 = vsel %vm1427, %v1604, 0
          %v1665 = vsel %vm1427, %v1605, 0
          %v1668 = vsel %vm1427, %v1606, 0
          %v1671 = vsel %vm1427, %v1607, 0
          %v1674 = vsel %vm1427, %v1608, 0
          %v1677 = vsel %vm1427, %v1609, 0
          %v1680 = vsel %vm1427, %v1610, 0
          %v1683 = vsel %vm1427, %v1611, 0
          %v1686 = vsel %vm1427, %v1612, 0
          %1688 = vmatpush.bf16.msra.mxu0 0
          %1689 = vmatpush.bf16.msra.mxu0 0
          %1690 = vmatpush.bf16.msra.mxu0 0
          %1691 = vmatpush.bf16.msra.mxu0 0
          %1692 = vmatpush.bf16.msra.mxu0 %v1635
          %1693 = vmatpush.bf16.msra.mxu0 %v1634
          %1694 = vmatpush.bf16.msra.mxu0 %v1633
          %1695 = vmatpush.bf16.msra.mxu0 %v1632
          %1696 = vmatmul.bf16.gmra.mxu0 %v1641
          %v1697 = vpop.f32.mrf.mxu0
          %v1698 = vadd.f32 %v1614, %v1697
          %v1699 = vpop.f32.mrf.mxu0
          %v1700 = vadd.f32 %v1614, %v1699
          %1701 = vmatmul.bf16.gmra.mxu0 %v1644
          %v1702 = vpop.f32.mrf.mxu0
          %v1703 = vadd.f32 %v1614, %v1702
          %v1704 = vpop.f32.mrf.mxu0
          %v1705 = vadd.f32 %v1614, %v1704
          %1706 = vmatmul.bf16.gmra.mxu0 %v1647
          %v1707 = vpop.f32.mrf.mxu0
          %v1708 = vadd.f32 %v1614, %v1707
          %v1709 = vpop.f32.mrf.mxu0
          %v1710 = vadd.f32 %v1614, %v1709
          %1711 = vmatmul.bf16.gmra.mxu0 %v1650
          %v1712 = vpop.f32.mrf.mxu0
          %v1713 = vadd.f32 %v1614, %v1712
          %v1714 = vpop.f32.mrf.mxu0
          %v1715 = vadd.f32 %v1614, %v1714
          %1716 = vmatmul.bf16.gmra.mxu0 %v1653
          %v1717 = vpop.f32.mrf.mxu0
          %v1718 = vadd.f32 %v1614, %v1717
          %v1719 = vpop.f32.mrf.mxu0
          %v1720 = vadd.f32 %v1614, %v1719
          %1721 = vmatmul.bf16.gmra.mxu0 %v1656
          %v1722 = vpop.f32.mrf.mxu0
          %v1723 = vadd.f32 %v1614, %v1722
          %v1724 = vpop.f32.mrf.mxu0
          %v1725 = vadd.f32 %v1614, %v1724
          %1726 = vmatmul.bf16.gmra.mxu0 %v1659
          %v1727 = vpop.f32.mrf.mxu0
          %v1728 = vadd.f32 %v1614, %v1727
          %v1729 = vpop.f32.mrf.mxu0
          %v1730 = vadd.f32 %v1614, %v1729
          %1731 = vmatmul.bf16.gmra.mxu0 %v1662
          %v1732 = vpop.f32.mrf.mxu0
          %v1733 = vadd.f32 %v1614, %v1732
          %v1734 = vpop.f32.mrf.mxu0
          %v1735 = vadd.f32 %v1614, %v1734
          %1736 = vmatmul.bf16.gmra.mxu0 %v1665
          %v1737 = vpop.f32.mrf.mxu0
          %v1738 = vadd.f32 %v1614, %v1737
          %v1739 = vpop.f32.mrf.mxu0
          %v1740 = vadd.f32 %v1614, %v1739
          %1741 = vmatmul.bf16.gmra.mxu0 %v1668
          %v1742 = vpop.f32.mrf.mxu0
          %v1743 = vadd.f32 %v1614, %v1742
          %v1744 = vpop.f32.mrf.mxu0
          %v1745 = vadd.f32 %v1614, %v1744
          %1746 = vmatmul.bf16.gmra.mxu0 %v1671
          %v1747 = vpop.f32.mrf.mxu0
          %v1748 = vadd.f32 %v1614, %v1747
          %v1749 = vpop.f32.mrf.mxu0
          %v1750 = vadd.f32 %v1614, %v1749
          %1751 = vmatmul.bf16.gmra.mxu0 %v1674
          %v1752 = vpop.f32.mrf.mxu0
          %v1753 = vadd.f32 %v1614, %v1752
          %v1754 = vpop.f32.mrf.mxu0
          %v1755 = vadd.f32 %v1614, %v1754
          %1756 = vmatmul.bf16.gmra.mxu0 %v1677
          %v1757 = vpop.f32.mrf.mxu0
          %v1758 = vadd.f32 %v1614, %v1757
          %v1759 = vpop.f32.mrf.mxu0
          %v1760 = vadd.f32 %v1614, %v1759
          %1761 = vmatmul.bf16.gmra.mxu0 %v1680
          %v1762 = vpop.f32.mrf.mxu0
          %v1763 = vadd.f32 %v1614, %v1762
          %v1764 = vpop.f32.mrf.mxu0
          %v1765 = vadd.f32 %v1614, %v1764
          %1766 = vmatmul.bf16.gmra.mxu0 %v1683
          %v1767 = vpop.f32.mrf.mxu0
          %v1768 = vadd.f32 %v1614, %v1767
          %v1769 = vpop.f32.mrf.mxu0
          %v1770 = vadd.f32 %v1614, %v1769
          %1771 = vmatmul.bf16.gmra.mxu0 %v1686
          %v1772 = vpop.f32.mrf.mxu0
          %v1773 = vadd.f32 %v1614, %v1772
          %v1774 = vpop.f32.mrf.mxu0
          %v1775 = vadd.f32 %v1614, %v1774
          %1776 = vdwg.mxu0
          %v1777 = vmax.f32 %v1698, 0.0
          %v1778 = vmax.f32 %v1700, 0.0
          %v1779 = vmax.f32 %v1703, 0.0
          %v1780 = vmax.f32 %v1705, 0.0
          %v1781 = vmax.f32 %v1708, 0.0
          %v1782 = vmax.f32 %v1710, 0.0
          %v1783 = vmax.f32 %v1713, 0.0
          %v1784 = vmax.f32 %v1715, 0.0
          %v1785 = vmax.f32 %v1718, 0.0
          %v1786 = vmax.f32 %v1720, 0.0
          %v1787 = vmax.f32 %v1723, 0.0
          %v1788 = vmax.f32 %v1725, 0.0
          %v1789 = vmax.f32 %v1728, 0.0
          %v1790 = vmax.f32 %v1730, 0.0
          %v1791 = vmax.f32 %v1733, 0.0
          %v1792 = vmax.f32 %v1735, 0.0
          %v1793 = vmax.f32 %v1738, 0.0
          %v1794 = vmax.f32 %v1740, 0.0
          %v1795 = vmax.f32 %v1743, 0.0
          %v1796 = vmax.f32 %v1745, 0.0
          %v1797 = vmax.f32 %v1748, 0.0
          %v1798 = vmax.f32 %v1750, 0.0
          %v1799 = vmax.f32 %v1753, 0.0
          %v1800 = vmax.f32 %v1755, 0.0
          %v1801 = vmax.f32 %v1758, 0.0
          %v1802 = vmax.f32 %v1760, 0.0
          %v1803 = vmax.f32 %v1763, 0.0
          %v1804 = vmax.f32 %v1765, 0.0
          %v1805 = vmax.f32 %v1768, 0.0
          %v1806 = vmax.f32 %v1770, 0.0
          %v1807 = vmax.f32 %v1773, 0.0
          %v1808 = vmax.f32 %v1775, 0.0
          %v1809 = vpack.c.bf16 %v1778, %v1777
          %v1810 = vpack.c.bf16 %v1780, %v1779
          %v1811 = vpack.c.bf16 %v1782, %v1781
          %v1812 = vpack.c.bf16 %v1784, %v1783
          %v1813 = vpack.c.bf16 %v1786, %v1785
          %v1814 = vpack.c.bf16 %v1788, %v1787
          %v1815 = vpack.c.bf16 %v1790, %v1789
          %v1816 = vpack.c.bf16 %v1792, %v1791
          %v1817 = vpack.c.bf16 %v1794, %v1793
          %v1818 = vpack.c.bf16 %v1796, %v1795
          %v1819 = vpack.c.bf16 %v1798, %v1797
          %v1820 = vpack.c.bf16 %v1800, %v1799
          %v1821 = vpack.c.bf16 %v1802, %v1801
          %v1822 = vpack.c.bf16 %v1804, %v1803
          %v1823 = vpack.c.bf16 %v1806, %v1805
          %v1824 = vpack.c.bf16 %v1808, %v1807
          %v1826 = vperm.slane %v633, 0
          %v1836 = vunpack.c.l.b16 %v625
          %v1837 = vunpack.c.l.b16 %v626
          %v1838 = vunpack.c.l.b16 %v627
          %v1839 = vunpack.c.l.b16 %v628
          %v1840 = vunpack.c.l.b16 %v629
          %v1841 = vunpack.c.l.b16 %v630
          %v1842 = vunpack.c.l.b16 %v631
          %v1843 = vunpack.c.l.b16 %v632
          %v1844 = vpack.c.b16 %v1837, %v1836
          %v1845 = vpack.c.b16 %v1839, %v1838
          %v1846 = vpack.c.b16 %v1841, %v1840
          %v1847 = vpack.c.b16 %v1843, %v1842
          %v1853 = vsel %vm1427, %v1809, 0
          %v1856 = vsel %vm1427, %v1810, 0
          %v1859 = vsel %vm1427, %v1811, 0
          %v1862 = vsel %vm1427, %v1812, 0
          %v1865 = vsel %vm1427, %v1813, 0
          %v1868 = vsel %vm1427, %v1814, 0
          %v1871 = vsel %vm1427, %v1815, 0
          %v1874 = vsel %vm1427, %v1816, 0
          %v1877 = vsel %vm1427, %v1817, 0
          %v1880 = vsel %vm1427, %v1818, 0
          %v1883 = vsel %vm1427, %v1819, 0
          %v1886 = vsel %vm1427, %v1820, 0
          %v1889 = vsel %vm1427, %v1821, 0
          %v1892 = vsel %vm1427, %v1822, 0
          %v1895 = vsel %vm1427, %v1823, 0
          %v1898 = vsel %vm1427, %v1824, 0
          %1900 = vmatpush.bf16.msra.mxu0 0
          %1901 = vmatpush.bf16.msra.mxu0 0
          %1902 = vmatpush.bf16.msra.mxu0 0
          %1903 = vmatpush.bf16.msra.mxu0 0
          %1904 = vmatpush.bf16.msra.mxu0 %v1847
          %1905 = vmatpush.bf16.msra.mxu0 %v1846
          %1906 = vmatpush.bf16.msra.mxu0 %v1845
          %1907 = vmatpush.bf16.msra.mxu0 %v1844
          %1908 = vmatmul.bf16.gmra.mxu0 %v1853
          %v1909 = vpop.f32.mrf.mxu0
          %v1910 = vadd.f32 %v1826, %v1909
          %v1911 = vpop.f32.mrf.mxu0
          %v1912 = vadd.f32 %v1826, %v1911
          %1913 = vmatmul.bf16.gmra.mxu0 %v1856
          %v1914 = vpop.f32.mrf.mxu0
          %v1915 = vadd.f32 %v1826, %v1914
          %v1916 = vpop.f32.mrf.mxu0
          %v1917 = vadd.f32 %v1826, %v1916
          %1918 = vmatmul.bf16.gmra.mxu0 %v1859
          %v1919 = vpop.f32.mrf.mxu0
          %v1920 = vadd.f32 %v1826, %v1919
          %v1921 = vpop.f32.mrf.mxu0
          %v1922 = vadd.f32 %v1826, %v1921
          %1923 = vmatmul.bf16.gmra.mxu0 %v1862
          %v1924 = vpop.f32.mrf.mxu0
          %v1925 = vadd.f32 %v1826, %v1924
          %v1926 = vpop.f32.mrf.mxu0
          %v1927 = vadd.f32 %v1826, %v1926
          %1928 = vmatmul.bf16.gmra.mxu0 %v1865
          %v1929 = vpop.f32.mrf.mxu0
          %v1930 = vadd.f32 %v1826, %v1929
          %v1931 = vpop.f32.mrf.mxu0
          %v1932 = vadd.f32 %v1826, %v1931
          %1933 = vmatmul.bf16.gmra.mxu0 %v1868
          %v1934 = vpop.f32.mrf.mxu0
          %v1935 = vadd.f32 %v1826, %v1934
          %v1936 = vpop.f32.mrf.mxu0
          %v1937 = vadd.f32 %v1826, %v1936
          %1938 = vmatmul.bf16.gmra.mxu0 %v1871
          %v1939 = vpop.f32.mrf.mxu0
          %v1940 = vadd.f32 %v1826, %v1939
          %v1941 = vpop.f32.mrf.mxu0
          %v1942 = vadd.f32 %v1826, %v1941
          %1943 = vmatmul.bf16.gmra.mxu0 %v1874
          %v1944 = vpop.f32.mrf.mxu0
          %v1945 = vadd.f32 %v1826, %v1944
          %v1946 = vpop.f32.mrf.mxu0
          %v1947 = vadd.f32 %v1826, %v1946
          %1948 = vmatmul.bf16.gmra.mxu0 %v1877
          %v1949 = vpop.f32.mrf.mxu0
          %v1950 = vadd.f32 %v1826, %v1949
          %v1951 = vpop.f32.mrf.mxu0
          %v1952 = vadd.f32 %v1826, %v1951
          %1953 = vmatmul.bf16.gmra.mxu0 %v1880
          %v1954 = vpop.f32.mrf.mxu0
          %v1955 = vadd.f32 %v1826, %v1954
          %v1956 = vpop.f32.mrf.mxu0
          %v1957 = vadd.f32 %v1826, %v1956
          %1958 = vmatmul.bf16.gmra.mxu0 %v1883
          %v1959 = vpop.f32.mrf.mxu0
          %v1960 = vadd.f32 %v1826, %v1959
          %v1961 = vpop.f32.mrf.mxu0
          %v1962 = vadd.f32 %v1826, %v1961
          %1963 = vmatmul.bf16.gmra.mxu0 %v1886
          %v1964 = vpop.f32.mrf.mxu0
          %v1965 = vadd.f32 %v1826, %v1964
          %v1966 = vpop.f32.mrf.mxu0
          %v1967 = vadd.f32 %v1826, %v1966
          %1968 = vmatmul.bf16.gmra.mxu0 %v1889
          %v1969 = vpop.f32.mrf.mxu0
          %v1970 = vadd.f32 %v1826, %v1969
          %v1971 = vpop.f32.mrf.mxu0
          %v1972 = vadd.f32 %v1826, %v1971
          %1973 = vmatmul.bf16.gmra.mxu0 %v1892
          %v1974 = vpop.f32.mrf.mxu0
          %v1975 = vadd.f32 %v1826, %v1974
          %v1976 = vpop.f32.mrf.mxu0
          %v1977 = vadd.f32 %v1826, %v1976
          %1978 = vmatmul.bf16.gmra.mxu0 %v1895
          %v1979 = vpop.f32.mrf.mxu0
          %v1980 = vadd.f32 %v1826, %v1979
          %v1981 = vpop.f32.mrf.mxu0
          %v1982 = vadd.f32 %v1826, %v1981
          %1983 = vmatmul.bf16.gmra.mxu0 %v1898
          %v1984 = vpop.f32.mrf.mxu0
          %v1985 = vadd.f32 %v1826, %v1984
          %v1986 = vpop.f32.mrf.mxu0
          %v1987 = vadd.f32 %v1826, %v1986
          %1988 = vdwg.mxu0
          %v1989 = vmax.f32 %v1910, 0.0
          %v1990 = vmax.f32 %v1912, 0.0
          %v1991 = vmax.f32 %v1915, 0.0
          %v1992 = vmax.f32 %v1917, 0.0
          %v1993 = vmax.f32 %v1920, 0.0
          %v1994 = vmax.f32 %v1922, 0.0
          %v1995 = vmax.f32 %v1925, 0.0
          %v1996 = vmax.f32 %v1927, 0.0
          %v1997 = vmax.f32 %v1930, 0.0
          %v1998 = vmax.f32 %v1932, 0.0
          %v1999 = vmax.f32 %v1935, 0.0
          %v2000 = vmax.f32 %v1937, 0.0
          %v2001 = vmax.f32 %v1940, 0.0
          %v2002 = vmax.f32 %v1942, 0.0
          %v2003 = vmax.f32 %v1945, 0.0
          %v2004 = vmax.f32 %v1947, 0.0
          %v2005 = vmax.f32 %v1950, 0.0
          %v2006 = vmax.f32 %v1952, 0.0
          %v2007 = vmax.f32 %v1955, 0.0
          %v2008 = vmax.f32 %v1957, 0.0
          %v2009 = vmax.f32 %v1960, 0.0
          %v2010 = vmax.f32 %v1962, 0.0
          %v2011 = vmax.f32 %v1965, 0.0
          %v2012 = vmax.f32 %v1967, 0.0
          %v2013 = vmax.f32 %v1970, 0.0
          %v2014 = vmax.f32 %v1972, 0.0
          %v2015 = vmax.f32 %v1975, 0.0
          %v2016 = vmax.f32 %v1977, 0.0
          %v2017 = vmax.f32 %v1980, 0.0
          %v2018 = vmax.f32 %v1982, 0.0
          %v2019 = vmax.f32 %v1985, 0.0
          %v2020 = vmax.f32 %v1987, 0.0
          %v2021 = vpack.c.bf16 %v1990, %v1989
          %v2022 = vpack.c.bf16 %v1992, %v1991
          %v2023 = vpack.c.bf16 %v1994, %v1993
          %v2024 = vpack.c.bf16 %v1996, %v1995
          %v2025 = vpack.c.bf16 %v1998, %v1997
          %v2026 = vpack.c.bf16 %v2000, %v1999
          %v2027 = vpack.c.bf16 %v2002, %v2001
          %v2028 = vpack.c.bf16 %v2004, %v2003
          %v2029 = vpack.c.bf16 %v2006, %v2005
          %v2030 = vpack.c.bf16 %v2008, %v2007
          %v2031 = vpack.c.bf16 %v2010, %v2009
          %v2032 = vpack.c.bf16 %v2012, %v2011
          %v2033 = vpack.c.bf16 %v2014, %v2013
          %v2034 = vpack.c.bf16 %v2016, %v2015
          %v2035 = vpack.c.bf16 %v2018, %v2017
          %v2036 = vpack.c.bf16 %v2020, %v2019
          %v2101 = vunpack.c.l.b16 %v634
          %v2102 = vunpack.c.h.b16 %v634
          %v2103 = vunpack.c.l.b16 %v635
          %v2104 = vunpack.c.h.b16 %v635
          %v2105 = vunpack.c.l.b16 %v636
          %v2106 = vunpack.c.h.b16 %v636
          %v2107 = vunpack.c.l.b16 %v637
          %v2108 = vunpack.c.h.b16 %v637
          %v2109 = vunpack.c.l.b16 %v638
          %v2110 = vunpack.c.h.b16 %v638
          %v2111 = vunpack.c.l.b16 %v639
          %v2112 = vunpack.c.h.b16 %v639
          %v2113 = vunpack.c.l.b16 %v640
          %v2114 = vunpack.c.h.b16 %v640
          %v2115 = vunpack.c.l.b16 %v641
          %v2116 = vunpack.c.h.b16 %v641
          %v2117 = vunpack.c.l.b16 %v642
          %v2118 = vunpack.c.h.b16 %v642
          %v2119 = vunpack.c.l.b16 %v643
          %v2120 = vunpack.c.h.b16 %v643
          %v2121 = vunpack.c.l.b16 %v644
          %v2122 = vunpack.c.h.b16 %v644
          %v2123 = vunpack.c.l.b16 %v645
          %v2124 = vunpack.c.h.b16 %v645
          %v2125 = vunpack.c.l.b16 %v646
          %v2126 = vunpack.c.h.b16 %v646
          %v2127 = vunpack.c.l.b16 %v647
          %v2128 = vunpack.c.h.b16 %v647
          %v2129 = vunpack.c.l.b16 %v648
          %v2130 = vunpack.c.h.b16 %v648
          %v2131 = vunpack.c.l.b16 %v649
          %v2132 = vunpack.c.h.b16 %v649
          %v2133 = vunpack.c.l.b16 %v650
          %v2134 = vunpack.c.h.b16 %v650
          %v2135 = vunpack.c.l.b16 %v651
          %v2136 = vunpack.c.h.b16 %v651
          %v2137 = vunpack.c.l.b16 %v652
          %v2138 = vunpack.c.h.b16 %v652
          %v2139 = vunpack.c.l.b16 %v653
          %v2140 = vunpack.c.h.b16 %v653
          %v2141 = vunpack.c.l.b16 %v654
          %v2142 = vunpack.c.h.b16 %v654
          %v2143 = vunpack.c.l.b16 %v655
          %v2144 = vunpack.c.h.b16 %v655
          %v2145 = vunpack.c.l.b16 %v656
          %v2146 = vunpack.c.h.b16 %v656
          %v2147 = vunpack.c.l.b16 %v657
          %v2148 = vunpack.c.h.b16 %v657
          %v2149 = vunpack.c.l.b16 %v658
          %v2150 = vunpack.c.h.b16 %v658
          %v2151 = vunpack.c.l.b16 %v659
          %v2152 = vunpack.c.h.b16 %v659
          %v2153 = vunpack.c.l.b16 %v660
          %v2154 = vunpack.c.h.b16 %v660
          %v2155 = vunpack.c.l.b16 %v661
          %v2156 = vunpack.c.h.b16 %v661
          %v2157 = vunpack.c.l.b16 %v662
          %v2158 = vunpack.c.h.b16 %v662
          %v2159 = vunpack.c.l.b16 %v663
          %v2160 = vunpack.c.h.b16 %v663
          %v2161 = vunpack.c.l.b16 %v664
          %v2162 = vunpack.c.h.b16 %v664
          %v2163 = vunpack.c.l.b16 %v665
          %v2164 = vunpack.c.h.b16 %v665
          %v2165 = vunpack.c.l.b16 %v666
          %v2166 = vunpack.c.h.b16 %v666
          %v2167 = vunpack.c.l.b16 %v667
          %v2168 = vunpack.c.h.b16 %v667
          %v2169 = vunpack.c.l.b16 %v668
          %v2170 = vunpack.c.h.b16 %v668
          %v2171 = vunpack.c.l.b16 %v669
          %v2172 = vunpack.c.h.b16 %v669
          %v2173 = vunpack.c.l.b16 %v670
          %v2174 = vunpack.c.h.b16 %v670
          %v2175 = vunpack.c.l.b16 %v671
          %v2176 = vunpack.c.h.b16 %v671
          %v2177 = vunpack.c.l.b16 %v672
          %v2178 = vunpack.c.h.b16 %v672
          %v2179 = vunpack.c.l.b16 %v673
          %v2180 = vunpack.c.h.b16 %v673
          %v2181 = vunpack.c.l.b16 %v674
          %v2182 = vunpack.c.h.b16 %v674
          %v2183 = vunpack.c.l.b16 %v675
          %v2184 = vunpack.c.h.b16 %v675
          %v2185 = vunpack.c.l.b16 %v676
          %v2186 = vunpack.c.h.b16 %v676
          %v2187 = vunpack.c.l.b16 %v677
          %v2188 = vunpack.c.h.b16 %v677
          %v2189 = vunpack.c.l.b16 %v678
          %v2190 = vunpack.c.h.b16 %v678
          %v2191 = vunpack.c.l.b16 %v679
          %v2192 = vunpack.c.h.b16 %v679
          %v2193 = vunpack.c.l.b16 %v680
          %v2194 = vunpack.c.h.b16 %v680
          %v2195 = vunpack.c.l.b16 %v681
          %v2196 = vunpack.c.h.b16 %v681
          %v2197 = vunpack.c.l.b16 %v682
          %v2198 = vunpack.c.h.b16 %v682
          %v2199 = vunpack.c.l.b16 %v683
          %v2200 = vunpack.c.h.b16 %v683
          %v2201 = vunpack.c.l.b16 %v684
          %v2202 = vunpack.c.h.b16 %v684
          %v2203 = vunpack.c.l.b16 %v685
          %v2204 = vunpack.c.h.b16 %v685
          %v2205 = vunpack.c.l.b16 %v686
          %v2206 = vunpack.c.h.b16 %v686
          %v2207 = vunpack.c.l.b16 %v687
          %v2208 = vunpack.c.h.b16 %v687
          %v2209 = vunpack.c.l.b16 %v688
          %v2210 = vunpack.c.h.b16 %v688
          %v2211 = vunpack.c.l.b16 %v689
          %v2212 = vunpack.c.h.b16 %v689
          %v2213 = vunpack.c.l.b16 %v690
          %v2214 = vunpack.c.h.b16 %v690
          %v2215 = vunpack.c.l.b16 %v691
          %v2216 = vunpack.c.h.b16 %v691
          %v2217 = vunpack.c.l.b16 %v692
          %v2218 = vunpack.c.h.b16 %v692
          %v2219 = vunpack.c.l.b16 %v693
          %v2220 = vunpack.c.h.b16 %v693
          %v2221 = vunpack.c.l.b16 %v694
          %v2222 = vunpack.c.h.b16 %v694
          %v2223 = vunpack.c.l.b16 %v695
          %v2224 = vunpack.c.h.b16 %v695
          %v2225 = vunpack.c.l.b16 %v696
          %v2226 = vunpack.c.h.b16 %v696
          %v2227 = vunpack.c.l.b16 %v697
          %v2228 = vunpack.c.h.b16 %v697
          %v2229 = vpack.c.b16 %v2109, %v2101
          %v2230 = vpack.c.b16 %v2110, %v2102
          %v2231 = vpack.c.b16 %v2111, %v2103
          %v2232 = vpack.c.b16 %v2112, %v2104
          %v2233 = vpack.c.b16 %v2113, %v2105
          %v2234 = vpack.c.b16 %v2114, %v2106
          %v2235 = vpack.c.b16 %v2115, %v2107
          %v2236 = vpack.c.b16 %v2116, %v2108
          %v2237 = vpack.c.b16 %v2125, %v2117
          %v2238 = vpack.c.b16 %v2126, %v2118
          %v2239 = vpack.c.b16 %v2127, %v2119
          %v2240 = vpack.c.b16 %v2128, %v2120
          %v2241 = vpack.c.b16 %v2129, %v2121
          %v2242 = vpack.c.b16 %v2130, %v2122
          %v2243 = vpack.c.b16 %v2131, %v2123
          %v2244 = vpack.c.b16 %v2132, %v2124
          %v2245 = vpack.c.b16 %v2141, %v2133
          %v2246 = vpack.c.b16 %v2142, %v2134
          %v2247 = vpack.c.b16 %v2143, %v2135
          %v2248 = vpack.c.b16 %v2144, %v2136
          %v2249 = vpack.c.b16 %v2145, %v2137
          %v2250 = vpack.c.b16 %v2146, %v2138
          %v2251 = vpack.c.b16 %v2147, %v2139
          %v2252 = vpack.c.b16 %v2148, %v2140
          %v2253 = vpack.c.b16 %v2157, %v2149
          %v2254 = vpack.c.b16 %v2158, %v2150
          %v2255 = vpack.c.b16 %v2159, %v2151
          %v2256 = vpack.c.b16 %v2160, %v2152
          %v2257 = vpack.c.b16 %v2161, %v2153
          %v2258 = vpack.c.b16 %v2162, %v2154
          %v2259 = vpack.c.b16 %v2163, %v2155
          %v2260 = vpack.c.b16 %v2164, %v2156
          %v2261 = vpack.c.b16 %v2173, %v2165
          %v2262 = vpack.c.b16 %v2174, %v2166
          %v2263 = vpack.c.b16 %v2175, %v2167
          %v2264 = vpack.c.b16 %v2176, %v2168
          %v2265 = vpack.c.b16 %v2177, %v2169
          %v2266 = vpack.c.b16 %v2178, %v2170
          %v2267 = vpack.c.b16 %v2179, %v2171
          %v2268 = vpack.c.b16 %v2180, %v2172
          %v2269 = vpack.c.b16 %v2189, %v2181
          %v2270 = vpack.c.b16 %v2190, %v2182
          %v2271 = vpack.c.b16 %v2191, %v2183
          %v2272 = vpack.c.b16 %v2192, %v2184
          %v2273 = vpack.c.b16 %v2193, %v2185
          %v2274 = vpack.c.b16 %v2194, %v2186
          %v2275 = vpack.c.b16 %v2195, %v2187
          %v2276 = vpack.c.b16 %v2196, %v2188
          %v2277 = vpack.c.b16 %v2205, %v2197
          %v2278 = vpack.c.b16 %v2206, %v2198
          %v2279 = vpack.c.b16 %v2207, %v2199
          %v2280 = vpack.c.b16 %v2208, %v2200
          %v2281 = vpack.c.b16 %v2209, %v2201
          %v2282 = vpack.c.b16 %v2210, %v2202
          %v2283 = vpack.c.b16 %v2211, %v2203
          %v2284 = vpack.c.b16 %v2212, %v2204
          %v2285 = vpack.c.b16 %v2221, %v2213
          %v2286 = vpack.c.b16 %v2222, %v2214
          %v2287 = vpack.c.b16 %v2223, %v2215
          %v2288 = vpack.c.b16 %v2224, %v2216
          %v2289 = vpack.c.b16 %v2225, %v2217
          %v2290 = vpack.c.b16 %v2226, %v2218
          %v2291 = vpack.c.b16 %v2227, %v2219
          %v2292 = vpack.c.b16 %v2228, %v2220
          %2357 = vmatpush.bf16.msra.mxu0 %v2285
          %2358 = vmatpush.bf16.msra.mxu0 %v2277
          %2359 = vmatpush.bf16.msra.mxu0 %v2269
          %2360 = vmatpush.bf16.msra.mxu0 %v2261
          %2361 = vmatpush.bf16.msra.mxu0 %v2253
          %2362 = vmatpush.bf16.msra.mxu0 %v2245
          %2363 = vmatpush.bf16.msra.mxu0 %v2237
          %2364 = vmatpush.bf16.msra.mxu0 %v2229
          %2365 = vmatmul.bf16.gmra.mxu0 %v2021
          %v2366 = vpop.f32.mrf.mxu0
          %v2367 = vadd.f32 0.0, %v2366
          %v2368 = vpop.f32.mrf.mxu0
          %v2369 = vadd.f32 0.0, %v2368
          %2370 = vmatmul.bf16.gmra.mxu0 %v2022
          %v2371 = vpop.f32.mrf.mxu0
          %v2372 = vadd.f32 0.0, %v2371
          %v2373 = vpop.f32.mrf.mxu0
          %v2374 = vadd.f32 0.0, %v2373
          %2375 = vmatmul.bf16.gmra.mxu0 %v2023
          %v2376 = vpop.f32.mrf.mxu0
          %v2377 = vadd.f32 0.0, %v2376
          %v2378 = vpop.f32.mrf.mxu0
          %v2379 = vadd.f32 0.0, %v2378
          %2380 = vmatmul.bf16.gmra.mxu0 %v2024
          %v2381 = vpop.f32.mrf.mxu0
          %v2382 = vadd.f32 0.0, %v2381
          %v2383 = vpop.f32.mrf.mxu0
          %v2384 = vadd.f32 0.0, %v2383
          %2385 = vmatmul.bf16.gmra.mxu0 %v2025
          %v2386 = vpop.f32.mrf.mxu0
          %v2387 = vadd.f32 0.0, %v2386
          %v2388 = vpop.f32.mrf.mxu0
          %v2389 = vadd.f32 0.0, %v2388
          %2390 = vmatmul.bf16.gmra.mxu0 %v2026
          %v2391 = vpop.f32.mrf.mxu0
          %v2392 = vadd.f32 0.0, %v2391
          %v2393 = vpop.f32.mrf.mxu0
          %v2394 = vadd.f32 0.0, %v2393
          %2395 = vmatmul.bf16.gmra.mxu0 %v2027
          %v2396 = vpop.f32.mrf.mxu0
          %v2397 = vadd.f32 0.0, %v2396
          %v2398 = vpop.f32.mrf.mxu0
          %v2399 = vadd.f32 0.0, %v2398
          %2400 = vmatmul.bf16.gmra.mxu0 %v2028
          %v2401 = vpop.f32.mrf.mxu0
          %v2402 = vadd.f32 0.0, %v2401
          %v2403 = vpop.f32.mrf.mxu0
          %v2404 = vadd.f32 0.0, %v2403
          %2405 = vmatmul.bf16.gmra.mxu0 %v2029
          %v2406 = vpop.f32.mrf.mxu0
          %v2407 = vadd.f32 0.0, %v2406
          %v2408 = vpop.f32.mrf.mxu0
          %v2409 = vadd.f32 0.0, %v2408
          %2410 = vmatmul.bf16.gmra.mxu0 %v2030
          %v2411 = vpop.f32.mrf.mxu0
          %v2412 = vadd.f32 0.0, %v2411
          %v2413 = vpop.f32.mrf.mxu0
          %v2414 = vadd.f32 0.0, %v2413
          %2415 = vmatmul.bf16.gmra.mxu0 %v2031
          %v2416 = vpop.f32.mrf.mxu0
          %v2417 = vadd.f32 0.0, %v2416
          %v2418 = vpop.f32.mrf.mxu0
          %v2419 = vadd.f32 0.0, %v2418
          %2420 = vmatmul.bf16.gmra.mxu0 %v2032
          %v2421 = vpop.f32.mrf.mxu0
          %v2422 = vadd.f32 0.0, %v2421
          %v2423 = vpop.f32.mrf.mxu0
          %v2424 = vadd.f32 0.0, %v2423
          %2425 = vmatmul.bf16.gmra.mxu0 %v2033
          %v2426 = vpop.f32.mrf.mxu0
          %v2427 = vadd.f32 0.0, %v2426
          %v2428 = vpop.f32.mrf.mxu0
          %v2429 = vadd.f32 0.0, %v2428
          %2430 = vmatmul.bf16.gmra.mxu0 %v2034
          %v2431 = vpop.f32.mrf.mxu0
          %v2432 = vadd.f32 0.0, %v2431
          %v2433 = vpop.f32.mrf.mxu0
          %v2434 = vadd.f32 0.0, %v2433
          %2435 = vmatmul.bf16.gmra.mxu0 %v2035
          %v2436 = vpop.f32.mrf.mxu0
          %v2437 = vadd.f32 0.0, %v2436
          %v2438 = vpop.f32.mrf.mxu0
          %v2439 = vadd.f32 0.0, %v2438
          %2440 = vmatmul.bf16.gmra.mxu0 %v2036
          %v2441 = vpop.f32.mrf.mxu0
          %v2442 = vadd.f32 0.0, %v2441
          %v2443 = vpop.f32.mrf.mxu0
          %v2444 = vadd.f32 0.0, %v2443
          %2445 = vdwg.mxu0
          %2446 = vmatpush.bf16.msra.mxu0 %v2286
          %2447 = vmatpush.bf16.msra.mxu0 %v2278
          %2448 = vmatpush.bf16.msra.mxu0 %v2270
          %2449 = vmatpush.bf16.msra.mxu0 %v2262
          %2450 = vmatpush.bf16.msra.mxu0 %v2254
          %2451 = vmatpush.bf16.msra.mxu0 %v2246
          %2452 = vmatpush.bf16.msra.mxu0 %v2238
          %2453 = vmatpush.bf16.msra.mxu0 %v2230
          %2454 = vmatmul.bf16.gmra.mxu0 %v2021
          %v2455 = vpop.f32.mrf.mxu0
          %v2456 = vadd.f32 0.0, %v2455
          %v2457 = vpop.f32.mrf.mxu0
          %v2458 = vadd.f32 0.0, %v2457
          %2459 = vmatmul.bf16.gmra.mxu0 %v2022
          %v2460 = vpop.f32.mrf.mxu0
          %v2461 = vadd.f32 0.0, %v2460
          %v2462 = vpop.f32.mrf.mxu0
          %v2463 = vadd.f32 0.0, %v2462
          %2464 = vmatmul.bf16.gmra.mxu0 %v2023
          %v2465 = vpop.f32.mrf.mxu0
          %v2466 = vadd.f32 0.0, %v2465
          %v2467 = vpop.f32.mrf.mxu0
          %v2468 = vadd.f32 0.0, %v2467
          %2469 = vmatmul.bf16.gmra.mxu0 %v2024
          %v2470 = vpop.f32.mrf.mxu0
          %v2471 = vadd.f32 0.0, %v2470
          %v2472 = vpop.f32.mrf.mxu0
          %v2473 = vadd.f32 0.0, %v2472
          %2474 = vmatmul.bf16.gmra.mxu0 %v2025
          %v2475 = vpop.f32.mrf.mxu0
          %v2476 = vadd.f32 0.0, %v2475
          %v2477 = vpop.f32.mrf.mxu0
          %v2478 = vadd.f32 0.0, %v2477
          %2479 = vmatmul.bf16.gmra.mxu0 %v2026
          %v2480 = vpop.f32.mrf.mxu0
          %v2481 = vadd.f32 0.0, %v2480
          %v2482 = vpop.f32.mrf.mxu0
          %v2483 = vadd.f32 0.0, %v2482
          %2484 = vmatmul.bf16.gmra.mxu0 %v2027
          %v2485 = vpop.f32.mrf.mxu0
          %v2486 = vadd.f32 0.0, %v2485
          %v2487 = vpop.f32.mrf.mxu0
          %v2488 = vadd.f32 0.0, %v2487
          %2489 = vmatmul.bf16.gmra.mxu0 %v2028
          %v2490 = vpop.f32.mrf.mxu0
          %v2491 = vadd.f32 0.0, %v2490
          %v2492 = vpop.f32.mrf.mxu0
          %v2493 = vadd.f32 0.0, %v2492
          %2494 = vmatmul.bf16.gmra.mxu0 %v2029
          %v2495 = vpop.f32.mrf.mxu0
          %v2496 = vadd.f32 0.0, %v2495
          %v2497 = vpop.f32.mrf.mxu0
          %v2498 = vadd.f32 0.0, %v2497
          %2499 = vmatmul.bf16.gmra.mxu0 %v2030
          %v2500 = vpop.f32.mrf.mxu0
          %v2501 = vadd.f32 0.0, %v2500
          %v2502 = vpop.f32.mrf.mxu0
          %v2503 = vadd.f32 0.0, %v2502
          %2504 = vmatmul.bf16.gmra.mxu0 %v2031
          %v2505 = vpop.f32.mrf.mxu0
          %v2506 = vadd.f32 0.0, %v2505
          %v2507 = vpop.f32.mrf.mxu0
          %v2508 = vadd.f32 0.0, %v2507
          %2509 = vmatmul.bf16.gmra.mxu0 %v2032
          %v2510 = vpop.f32.mrf.mxu0
          %v2511 = vadd.f32 0.0, %v2510
          %v2512 = vpop.f32.mrf.mxu0
          %v2513 = vadd.f32 0.0, %v2512
          %2514 = vmatmul.bf16.gmra.mxu0 %v2033
          %v2515 = vpop.f32.mrf.mxu0
          %v2516 = vadd.f32 0.0, %v2515
          %v2517 = vpop.f32.mrf.mxu0
          %v2518 = vadd.f32 0.0, %v2517
          %2519 = vmatmul.bf16.gmra.mxu0 %v2034
          %v2520 = vpop.f32.mrf.mxu0
          %v2521 = vadd.f32 0.0, %v2520
          %v2522 = vpop.f32.mrf.mxu0
          %v2523 = vadd.f32 0.0, %v2522
          %2524 = vmatmul.bf16.gmra.mxu0 %v2035
          %v2525 = vpop.f32.mrf.mxu0
          %v2526 = vadd.f32 0.0, %v2525
          %v2527 = vpop.f32.mrf.mxu0
          %v2528 = vadd.f32 0.0, %v2527
          %2529 = vmatmul.bf16.gmra.mxu0 %v2036
          %v2530 = vpop.f32.mrf.mxu0
          %v2531 = vadd.f32 0.0, %v2530
          %v2532 = vpop.f32.mrf.mxu0
          %v2533 = vadd.f32 0.0, %v2532
          %2534 = vdwg.mxu0
          %2535 = vmatpush.bf16.msra.mxu0 %v2287
          %2536 = vmatpush.bf16.msra.mxu0 %v2279
          %2537 = vmatpush.bf16.msra.mxu0 %v2271
          %2538 = vmatpush.bf16.msra.mxu0 %v2263
          %2539 = vmatpush.bf16.msra.mxu0 %v2255
          %2540 = vmatpush.bf16.msra.mxu0 %v2247
          %2541 = vmatpush.bf16.msra.mxu0 %v2239
          %2542 = vmatpush.bf16.msra.mxu0 %v2231
          %2543 = vmatmul.bf16.gmra.mxu0 %v2021
          %v2544 = vpop.f32.mrf.mxu0
          %v2545 = vadd.f32 0.0, %v2544
          %v2546 = vpop.f32.mrf.mxu0
          %v2547 = vadd.f32 0.0, %v2546
          %2548 = vmatmul.bf16.gmra.mxu0 %v2022
          %v2549 = vpop.f32.mrf.mxu0
          %v2550 = vadd.f32 0.0, %v2549
          %v2551 = vpop.f32.mrf.mxu0
          %v2552 = vadd.f32 0.0, %v2551
          %2553 = vmatmul.bf16.gmra.mxu0 %v2023
          %v2554 = vpop.f32.mrf.mxu0
          %v2555 = vadd.f32 0.0, %v2554
          %v2556 = vpop.f32.mrf.mxu0
          %v2557 = vadd.f32 0.0, %v2556
          %2558 = vmatmul.bf16.gmra.mxu0 %v2024
          %v2559 = vpop.f32.mrf.mxu0
          %v2560 = vadd.f32 0.0, %v2559
          %v2561 = vpop.f32.mrf.mxu0
          %v2562 = vadd.f32 0.0, %v2561
          %2563 = vmatmul.bf16.gmra.mxu0 %v2025
          %v2564 = vpop.f32.mrf.mxu0
          %v2565 = vadd.f32 0.0, %v2564
          %v2566 = vpop.f32.mrf.mxu0
          %v2567 = vadd.f32 0.0, %v2566
          %2568 = vmatmul.bf16.gmra.mxu0 %v2026
          %v2569 = vpop.f32.mrf.mxu0
          %v2570 = vadd.f32 0.0, %v2569
          %v2571 = vpop.f32.mrf.mxu0
          %v2572 = vadd.f32 0.0, %v2571
          %2573 = vmatmul.bf16.gmra.mxu0 %v2027
          %v2574 = vpop.f32.mrf.mxu0
          %v2575 = vadd.f32 0.0, %v2574
          %v2576 = vpop.f32.mrf.mxu0
          %v2577 = vadd.f32 0.0, %v2576
          %2578 = vmatmul.bf16.gmra.mxu0 %v2028
          %v2579 = vpop.f32.mrf.mxu0
          %v2580 = vadd.f32 0.0, %v2579
          %v2581 = vpop.f32.mrf.mxu0
          %v2582 = vadd.f32 0.0, %v2581
          %2583 = vmatmul.bf16.gmra.mxu0 %v2029
          %v2584 = vpop.f32.mrf.mxu0
          %v2585 = vadd.f32 0.0, %v2584
          %v2586 = vpop.f32.mrf.mxu0
          %v2587 = vadd.f32 0.0, %v2586
          %2588 = vmatmul.bf16.gmra.mxu0 %v2030
          %v2589 = vpop.f32.mrf.mxu0
          %v2590 = vadd.f32 0.0, %v2589
          %v2591 = vpop.f32.mrf.mxu0
          %v2592 = vadd.f32 0.0, %v2591
          %2593 = vmatmul.bf16.gmra.mxu0 %v2031
          %v2594 = vpop.f32.mrf.mxu0
          %v2595 = vadd.f32 0.0, %v2594
          %v2596 = vpop.f32.mrf.mxu0
          %v2597 = vadd.f32 0.0, %v2596
          %2598 = vmatmul.bf16.gmra.mxu0 %v2032
          %v2599 = vpop.f32.mrf.mxu0
          %v2600 = vadd.f32 0.0, %v2599
          %v2601 = vpop.f32.mrf.mxu0
          %v2602 = vadd.f32 0.0, %v2601
          %2603 = vmatmul.bf16.gmra.mxu0 %v2033
          %v2604 = vpop.f32.mrf.mxu0
          %v2605 = vadd.f32 0.0, %v2604
          %v2606 = vpop.f32.mrf.mxu0
          %v2607 = vadd.f32 0.0, %v2606
          %2608 = vmatmul.bf16.gmra.mxu0 %v2034
          %v2609 = vpop.f32.mrf.mxu0
          %v2610 = vadd.f32 0.0, %v2609
          %v2611 = vpop.f32.mrf.mxu0
          %v2612 = vadd.f32 0.0, %v2611
          %2613 = vmatmul.bf16.gmra.mxu0 %v2035
          %v2614 = vpop.f32.mrf.mxu0
          %v2615 = vadd.f32 0.0, %v2614
          %v2616 = vpop.f32.mrf.mxu0
          %v2617 = vadd.f32 0.0, %v2616
          %2618 = vmatmul.bf16.gmra.mxu0 %v2036
          %v2619 = vpop.f32.mrf.mxu0
          %v2620 = vadd.f32 0.0, %v2619
          %v2621 = vpop.f32.mrf.mxu0
          %v2622 = vadd.f32 0.0, %v2621
          %2623 = vdwg.mxu0
          %2624 = vmatpush.bf16.msra.mxu0 %v2288
          %2625 = vmatpush.bf16.msra.mxu0 %v2280
          %2626 = vmatpush.bf16.msra.mxu0 %v2272
          %2627 = vmatpush.bf16.msra.mxu0 %v2264
          %2628 = vmatpush.bf16.msra.mxu0 %v2256
          %2629 = vmatpush.bf16.msra.mxu0 %v2248
          %2630 = vmatpush.bf16.msra.mxu0 %v2240
          %2631 = vmatpush.bf16.msra.mxu0 %v2232
          %2632 = vmatmul.bf16.gmra.mxu0 %v2021
          %v2633 = vpop.f32.mrf.mxu0
          %v2634 = vadd.f32 0.0, %v2633
          %v2635 = vpop.f32.mrf.mxu0
          %v2636 = vadd.f32 0.0, %v2635
          %2637 = vmatmul.bf16.gmra.mxu0 %v2022
          %v2638 = vpop.f32.mrf.mxu0
          %v2639 = vadd.f32 0.0, %v2638
          %v2640 = vpop.f32.mrf.mxu0
          %v2641 = vadd.f32 0.0, %v2640
          %2642 = vmatmul.bf16.gmra.mxu0 %v2023
          %v2643 = vpop.f32.mrf.mxu0
          %v2644 = vadd.f32 0.0, %v2643
          %v2645 = vpop.f32.mrf.mxu0
          %v2646 = vadd.f32 0.0, %v2645
          %2647 = vmatmul.bf16.gmra.mxu0 %v2024
          %v2648 = vpop.f32.mrf.mxu0
          %v2649 = vadd.f32 0.0, %v2648
          %v2650 = vpop.f32.mrf.mxu0
          %v2651 = vadd.f32 0.0, %v2650
          %2652 = vmatmul.bf16.gmra.mxu0 %v2025
          %v2653 = vpop.f32.mrf.mxu0
          %v2654 = vadd.f32 0.0, %v2653
          %v2655 = vpop.f32.mrf.mxu0
          %v2656 = vadd.f32 0.0, %v2655
          %2657 = vmatmul.bf16.gmra.mxu0 %v2026
          %v2658 = vpop.f32.mrf.mxu0
          %v2659 = vadd.f32 0.0, %v2658
          %v2660 = vpop.f32.mrf.mxu0
          %v2661 = vadd.f32 0.0, %v2660
          %2662 = vmatmul.bf16.gmra.mxu0 %v2027
          %v2663 = vpop.f32.mrf.mxu0
          %v2664 = vadd.f32 0.0, %v2663
          %v2665 = vpop.f32.mrf.mxu0
          %v2666 = vadd.f32 0.0, %v2665
          %2667 = vmatmul.bf16.gmra.mxu0 %v2028
          %v2668 = vpop.f32.mrf.mxu0
          %v2669 = vadd.f32 0.0, %v2668
          %v2670 = vpop.f32.mrf.mxu0
          %v2671 = vadd.f32 0.0, %v2670
          %2672 = vmatmul.bf16.gmra.mxu0 %v2029
          %v2673 = vpop.f32.mrf.mxu0
          %v2674 = vadd.f32 0.0, %v2673
          %v2675 = vpop.f32.mrf.mxu0
          %v2676 = vadd.f32 0.0, %v2675
          %2677 = vmatmul.bf16.gmra.mxu0 %v2030
          %v2678 = vpop.f32.mrf.mxu0
          %v2679 = vadd.f32 0.0, %v2678
          %v2680 = vpop.f32.mrf.mxu0
          %v2681 = vadd.f32 0.0, %v2680
          %2682 = vmatmul.bf16.gmra.mxu0 %v2031
          %v2683 = vpop.f32.mrf.mxu0
          %v2684 = vadd.f32 0.0, %v2683
          %v2685 = vpop.f32.mrf.mxu0
          %v2686 = vadd.f32 0.0, %v2685
          %2687 = vmatmul.bf16.gmra.mxu0 %v2032
          %v2688 = vpop.f32.mrf.mxu0
          %v2689 = vadd.f32 0.0, %v2688
          %v2690 = vpop.f32.mrf.mxu0
          %v2691 = vadd.f32 0.0, %v2690
          %2692 = vmatmul.bf16.gmra.mxu0 %v2033
          %v2693 = vpop.f32.mrf.mxu0
          %v2694 = vadd.f32 0.0, %v2693
          %v2695 = vpop.f32.mrf.mxu0
          %v2696 = vadd.f32 0.0, %v2695
          %2697 = vmatmul.bf16.gmra.mxu0 %v2034
          %v2698 = vpop.f32.mrf.mxu0
          %v2699 = vadd.f32 0.0, %v2698
          %v2700 = vpop.f32.mrf.mxu0
          %v2701 = vadd.f32 0.0, %v2700
          %2702 = vmatmul.bf16.gmra.mxu0 %v2035
          %v2703 = vpop.f32.mrf.mxu0
          %v2704 = vadd.f32 0.0, %v2703
          %v2705 = vpop.f32.mrf.mxu0
          %v2706 = vadd.f32 0.0, %v2705
          %2707 = vmatmul.bf16.gmra.mxu0 %v2036
          %v2708 = vpop.f32.mrf.mxu0
          %v2709 = vadd.f32 0.0, %v2708
          %v2710 = vpop.f32.mrf.mxu0
          %v2711 = vadd.f32 0.0, %v2710
          %2712 = vdwg.mxu0
          %2713 = vmatpush.bf16.msra.mxu0 %v2289
          %2714 = vmatpush.bf16.msra.mxu0 %v2281
          %2715 = vmatpush.bf16.msra.mxu0 %v2273
          %2716 = vmatpush.bf16.msra.mxu0 %v2265
          %2717 = vmatpush.bf16.msra.mxu0 %v2257
          %2718 = vmatpush.bf16.msra.mxu0 %v2249
          %2719 = vmatpush.bf16.msra.mxu0 %v2241
          %2720 = vmatpush.bf16.msra.mxu0 %v2233
          %2721 = vmatmul.bf16.gmra.mxu0 %v2021
          %v2722 = vpop.f32.mrf.mxu0
          %v2723 = vadd.f32 0.0, %v2722
          %v2724 = vpop.f32.mrf.mxu0
          %v2725 = vadd.f32 0.0, %v2724
          %2726 = vmatmul.bf16.gmra.mxu0 %v2022
          %v2727 = vpop.f32.mrf.mxu0
          %v2728 = vadd.f32 0.0, %v2727
          %v2729 = vpop.f32.mrf.mxu0
          %v2730 = vadd.f32 0.0, %v2729
          %2731 = vmatmul.bf16.gmra.mxu0 %v2023
          %v2732 = vpop.f32.mrf.mxu0
          %v2733 = vadd.f32 0.0, %v2732
          %v2734 = vpop.f32.mrf.mxu0
          %v2735 = vadd.f32 0.0, %v2734
          %2736 = vmatmul.bf16.gmra.mxu0 %v2024
          %v2737 = vpop.f32.mrf.mxu0
          %v2738 = vadd.f32 0.0, %v2737
          %v2739 = vpop.f32.mrf.mxu0
          %v2740 = vadd.f32 0.0, %v2739
          %2741 = vmatmul.bf16.gmra.mxu0 %v2025
          %v2742 = vpop.f32.mrf.mxu0
          %v2743 = vadd.f32 0.0, %v2742
          %v2744 = vpop.f32.mrf.mxu0
          %v2745 = vadd.f32 0.0, %v2744
          %2746 = vmatmul.bf16.gmra.mxu0 %v2026
          %v2747 = vpop.f32.mrf.mxu0
          %v2748 = vadd.f32 0.0, %v2747
          %v2749 = vpop.f32.mrf.mxu0
          %v2750 = vadd.f32 0.0, %v2749
          %2751 = vmatmul.bf16.gmra.mxu0 %v2027
          %v2752 = vpop.f32.mrf.mxu0
          %v2753 = vadd.f32 0.0, %v2752
          %v2754 = vpop.f32.mrf.mxu0
          %v2755 = vadd.f32 0.0, %v2754
          %2756 = vmatmul.bf16.gmra.mxu0 %v2028
          %v2757 = vpop.f32.mrf.mxu0
          %v2758 = vadd.f32 0.0, %v2757
          %v2759 = vpop.f32.mrf.mxu0
          %v2760 = vadd.f32 0.0, %v2759
          %2761 = vmatmul.bf16.gmra.mxu0 %v2029
          %v2762 = vpop.f32.mrf.mxu0
          %v2763 = vadd.f32 0.0, %v2762
          %v2764 = vpop.f32.mrf.mxu0
          %v2765 = vadd.f32 0.0, %v2764
          %2766 = vmatmul.bf16.gmra.mxu0 %v2030
          %v2767 = vpop.f32.mrf.mxu0
          %v2768 = vadd.f32 0.0, %v2767
          %v2769 = vpop.f32.mrf.mxu0
          %v2770 = vadd.f32 0.0, %v2769
          %2771 = vmatmul.bf16.gmra.mxu0 %v2031
          %v2772 = vpop.f32.mrf.mxu0
          %v2773 = vadd.f32 0.0, %v2772
          %v2774 = vpop.f32.mrf.mxu0
          %v2775 = vadd.f32 0.0, %v2774
          %2776 = vmatmul.bf16.gmra.mxu0 %v2032
          %v2777 = vpop.f32.mrf.mxu0
          %v2778 = vadd.f32 0.0, %v2777
          %v2779 = vpop.f32.mrf.mxu0
          %v2780 = vadd.f32 0.0, %v2779
          %2781 = vmatmul.bf16.gmra.mxu0 %v2033
          %v2782 = vpop.f32.mrf.mxu0
          %v2783 = vadd.f32 0.0, %v2782
          %v2784 = vpop.f32.mrf.mxu0
          %v2785 = vadd.f32 0.0, %v2784
          %2786 = vmatmul.bf16.gmra.mxu0 %v2034
          %v2787 = vpop.f32.mrf.mxu0
          %v2788 = vadd.f32 0.0, %v2787
          %v2789 = vpop.f32.mrf.mxu0
          %v2790 = vadd.f32 0.0, %v2789
          %2791 = vmatmul.bf16.gmra.mxu0 %v2035
          %v2792 = vpop.f32.mrf.mxu0
          %v2793 = vadd.f32 0.0, %v2792
          %v2794 = vpop.f32.mrf.mxu0
          %v2795 = vadd.f32 0.0, %v2794
          %2796 = vmatmul.bf16.gmra.mxu0 %v2036
          %v2797 = vpop.f32.mrf.mxu0
          %v2798 = vadd.f32 0.0, %v2797
          %v2799 = vpop.f32.mrf.mxu0
          %v2800 = vadd.f32 0.0, %v2799
          %2801 = vdwg.mxu0
          %2802 = vmatpush.bf16.msra.mxu0 %v2290
          %2803 = vmatpush.bf16.msra.mxu0 %v2282
          %2804 = vmatpush.bf16.msra.mxu0 %v2274
          %2805 = vmatpush.bf16.msra.mxu0 %v2266
          %2806 = vmatpush.bf16.msra.mxu0 %v2258
          %2807 = vmatpush.bf16.msra.mxu0 %v2250
          %2808 = vmatpush.bf16.msra.mxu0 %v2242
          %2809 = vmatpush.bf16.msra.mxu0 %v2234
          %2810 = vmatmul.bf16.gmra.mxu0 %v2021
          %v2811 = vpop.f32.mrf.mxu0
          %v2812 = vadd.f32 0.0, %v2811
          %v2813 = vpop.f32.mrf.mxu0
          %v2814 = vadd.f32 0.0, %v2813
          %2815 = vmatmul.bf16.gmra.mxu0 %v2022
          %v2816 = vpop.f32.mrf.mxu0
          %v2817 = vadd.f32 0.0, %v2816
          %v2818 = vpop.f32.mrf.mxu0
          %v2819 = vadd.f32 0.0, %v2818
          %2820 = vmatmul.bf16.gmra.mxu0 %v2023
          %v2821 = vpop.f32.mrf.mxu0
          %v2822 = vadd.f32 0.0, %v2821
          %v2823 = vpop.f32.mrf.mxu0
          %v2824 = vadd.f32 0.0, %v2823
          %2825 = vmatmul.bf16.gmra.mxu0 %v2024
          %v2826 = vpop.f32.mrf.mxu0
          %v2827 = vadd.f32 0.0, %v2826
          %v2828 = vpop.f32.mrf.mxu0
          %v2829 = vadd.f32 0.0, %v2828
          %2830 = vmatmul.bf16.gmra.mxu0 %v2025
          %v2831 = vpop.f32.mrf.mxu0
          %v2832 = vadd.f32 0.0, %v2831
          %v2833 = vpop.f32.mrf.mxu0
          %v2834 = vadd.f32 0.0, %v2833
          %2835 = vmatmul.bf16.gmra.mxu0 %v2026
          %v2836 = vpop.f32.mrf.mxu0
          %v2837 = vadd.f32 0.0, %v2836
          %v2838 = vpop.f32.mrf.mxu0
          %v2839 = vadd.f32 0.0, %v2838
          %2840 = vmatmul.bf16.gmra.mxu0 %v2027
          %v2841 = vpop.f32.mrf.mxu0
          %v2842 = vadd.f32 0.0, %v2841
          %v2843 = vpop.f32.mrf.mxu0
          %v2844 = vadd.f32 0.0, %v2843
          %2845 = vmatmul.bf16.gmra.mxu0 %v2028
          %v2846 = vpop.f32.mrf.mxu0
          %v2847 = vadd.f32 0.0, %v2846
          %v2848 = vpop.f32.mrf.mxu0
          %v2849 = vadd.f32 0.0, %v2848
          %2850 = vmatmul.bf16.gmra.mxu0 %v2029
          %v2851 = vpop.f32.mrf.mxu0
          %v2852 = vadd.f32 0.0, %v2851
          %v2853 = vpop.f32.mrf.mxu0
          %v2854 = vadd.f32 0.0, %v2853
          %2855 = vmatmul.bf16.gmra.mxu0 %v2030
          %v2856 = vpop.f32.mrf.mxu0
          %v2857 = vadd.f32 0.0, %v2856
          %v2858 = vpop.f32.mrf.mxu0
          %v2859 = vadd.f32 0.0, %v2858
          %2860 = vmatmul.bf16.gmra.mxu0 %v2031
          %v2861 = vpop.f32.mrf.mxu0
          %v2862 = vadd.f32 0.0, %v2861
          %v2863 = vpop.f32.mrf.mxu0
          %v2864 = vadd.f32 0.0, %v2863
          %2865 = vmatmul.bf16.gmra.mxu0 %v2032
          %v2866 = vpop.f32.mrf.mxu0
          %v2867 = vadd.f32 0.0, %v2866
          %v2868 = vpop.f32.mrf.mxu0
          %v2869 = vadd.f32 0.0, %v2868
          %2870 = vmatmul.bf16.gmra.mxu0 %v2033
          %v2871 = vpop.f32.mrf.mxu0
          %v2872 = vadd.f32 0.0, %v2871
          %v2873 = vpop.f32.mrf.mxu0
          %v2874 = vadd.f32 0.0, %v2873
          %2875 = vmatmul.bf16.gmra.mxu0 %v2034
          %v2876 = vpop.f32.mrf.mxu0
          %v2877 = vadd.f32 0.0, %v2876
          %v2878 = vpop.f32.mrf.mxu0
          %v2879 = vadd.f32 0.0, %v2878
          %2880 = vmatmul.bf16.gmra.mxu0 %v2035
          %v2881 = vpop.f32.mrf.mxu0
          %v2882 = vadd.f32 0.0, %v2881
          %v2883 = vpop.f32.mrf.mxu0
          %v2884 = vadd.f32 0.0, %v2883
          %2885 = vmatmul.bf16.gmra.mxu0 %v2036
          %v2886 = vpop.f32.mrf.mxu0
          %v2887 = vadd.f32 0.0, %v2886
          %v2888 = vpop.f32.mrf.mxu0
          %v2889 = vadd.f32 0.0, %v2888
          %2890 = vdwg.mxu0
          %2891 = vmatpush.bf16.msra.mxu0 %v2291
          %2892 = vmatpush.bf16.msra.mxu0 %v2283
          %2893 = vmatpush.bf16.msra.mxu0 %v2275
          %2894 = vmatpush.bf16.msra.mxu0 %v2267
          %2895 = vmatpush.bf16.msra.mxu0 %v2259
          %2896 = vmatpush.bf16.msra.mxu0 %v2251
          %2897 = vmatpush.bf16.msra.mxu0 %v2243
          %2898 = vmatpush.bf16.msra.mxu0 %v2235
          %2899 = vmatmul.bf16.gmra.mxu0 %v2021
          %v2900 = vpop.f32.mrf.mxu0
          %v2901 = vadd.f32 0.0, %v2900
          %v2902 = vpop.f32.mrf.mxu0
          %v2903 = vadd.f32 0.0, %v2902
          %2904 = vmatmul.bf16.gmra.mxu0 %v2022
          %v2905 = vpop.f32.mrf.mxu0
          %v2906 = vadd.f32 0.0, %v2905
          %v2907 = vpop.f32.mrf.mxu0
          %v2908 = vadd.f32 0.0, %v2907
          %2909 = vmatmul.bf16.gmra.mxu0 %v2023
          %v2910 = vpop.f32.mrf.mxu0
          %v2911 = vadd.f32 0.0, %v2910
          %v2912 = vpop.f32.mrf.mxu0
          %v2913 = vadd.f32 0.0, %v2912
          %2914 = vmatmul.bf16.gmra.mxu0 %v2024
          %v2915 = vpop.f32.mrf.mxu0
          %v2916 = vadd.f32 0.0, %v2915
          %v2917 = vpop.f32.mrf.mxu0
          %v2918 = vadd.f32 0.0, %v2917
          %2919 = vmatmul.bf16.gmra.mxu0 %v2025
          %v2920 = vpop.f32.mrf.mxu0
          %v2921 = vadd.f32 0.0, %v2920
          %v2922 = vpop.f32.mrf.mxu0
          %v2923 = vadd.f32 0.0, %v2922
          %2924 = vmatmul.bf16.gmra.mxu0 %v2026
          %v2925 = vpop.f32.mrf.mxu0
          %v2926 = vadd.f32 0.0, %v2925
          %v2927 = vpop.f32.mrf.mxu0
          %v2928 = vadd.f32 0.0, %v2927
          %2929 = vmatmul.bf16.gmra.mxu0 %v2027
          %v2930 = vpop.f32.mrf.mxu0
          %v2931 = vadd.f32 0.0, %v2930
          %v2932 = vpop.f32.mrf.mxu0
          %v2933 = vadd.f32 0.0, %v2932
          %2934 = vmatmul.bf16.gmra.mxu0 %v2028
          %v2935 = vpop.f32.mrf.mxu0
          %v2936 = vadd.f32 0.0, %v2935
          %v2937 = vpop.f32.mrf.mxu0
          %v2938 = vadd.f32 0.0, %v2937
          %2939 = vmatmul.bf16.gmra.mxu0 %v2029
          %v2940 = vpop.f32.mrf.mxu0
          %v2941 = vadd.f32 0.0, %v2940
          %v2942 = vpop.f32.mrf.mxu0
          %v2943 = vadd.f32 0.0, %v2942
          %2944 = vmatmul.bf16.gmra.mxu0 %v2030
          %v2945 = vpop.f32.mrf.mxu0
          %v2946 = vadd.f32 0.0, %v2945
          %v2947 = vpop.f32.mrf.mxu0
          %v2948 = vadd.f32 0.0, %v2947
          %2949 = vmatmul.bf16.gmra.mxu0 %v2031
          %v2950 = vpop.f32.mrf.mxu0
          %v2951 = vadd.f32 0.0, %v2950
          %v2952 = vpop.f32.mrf.mxu0
          %v2953 = vadd.f32 0.0, %v2952
          %2954 = vmatmul.bf16.gmra.mxu0 %v2032
          %v2955 = vpop.f32.mrf.mxu0
          %v2956 = vadd.f32 0.0, %v2955
          %v2957 = vpop.f32.mrf.mxu0
          %v2958 = vadd.f32 0.0, %v2957
          %2959 = vmatmul.bf16.gmra.mxu0 %v2033
          %v2960 = vpop.f32.mrf.mxu0
          %v2961 = vadd.f32 0.0, %v2960
          %v2962 = vpop.f32.mrf.mxu0
          %v2963 = vadd.f32 0.0, %v2962
          %2964 = vmatmul.bf16.gmra.mxu0 %v2034
          %v2965 = vpop.f32.mrf.mxu0
          %v2966 = vadd.f32 0.0, %v2965
          %v2967 = vpop.f32.mrf.mxu0
          %v2968 = vadd.f32 0.0, %v2967
          %2969 = vmatmul.bf16.gmra.mxu0 %v2035
          %v2970 = vpop.f32.mrf.mxu0
          %v2971 = vadd.f32 0.0, %v2970
          %v2972 = vpop.f32.mrf.mxu0
          %v2973 = vadd.f32 0.0, %v2972
          %2974 = vmatmul.bf16.gmra.mxu0 %v2036
          %v2975 = vpop.f32.mrf.mxu0
          %v2976 = vadd.f32 0.0, %v2975
          %v2977 = vpop.f32.mrf.mxu0
          %v2978 = vadd.f32 0.0, %v2977
          %2979 = vdwg.mxu0
          %2980 = vmatpush.bf16.msra.mxu0 %v2292
          %2981 = vmatpush.bf16.msra.mxu0 %v2284
          %2982 = vmatpush.bf16.msra.mxu0 %v2276
          %2983 = vmatpush.bf16.msra.mxu0 %v2268
          %2984 = vmatpush.bf16.msra.mxu0 %v2260
          %2985 = vmatpush.bf16.msra.mxu0 %v2252
          %2986 = vmatpush.bf16.msra.mxu0 %v2244
          %2987 = vmatpush.bf16.msra.mxu0 %v2236
          %2988 = vmatmul.bf16.gmra.mxu0 %v2021
          %v2989 = vpop.f32.mrf.mxu0
          %v2990 = vadd.f32 0.0, %v2989
          %v2991 = vpop.f32.mrf.mxu0
          %v2992 = vadd.f32 0.0, %v2991
          %2993 = vmatmul.bf16.gmra.mxu0 %v2022
          %v2994 = vpop.f32.mrf.mxu0
          %v2995 = vadd.f32 0.0, %v2994
          %v2996 = vpop.f32.mrf.mxu0
          %v2997 = vadd.f32 0.0, %v2996
          %2998 = vmatmul.bf16.gmra.mxu0 %v2023
          %v2999 = vpop.f32.mrf.mxu0
          %v3000 = vadd.f32 0.0, %v2999
          %v3001 = vpop.f32.mrf.mxu0
          %v3002 = vadd.f32 0.0, %v3001
          %3003 = vmatmul.bf16.gmra.mxu0 %v2024
          %v3004 = vpop.f32.mrf.mxu0
          %v3005 = vadd.f32 0.0, %v3004
          %v3006 = vpop.f32.mrf.mxu0
          %v3007 = vadd.f32 0.0, %v3006
          %3008 = vmatmul.bf16.gmra.mxu0 %v2025
          %v3009 = vpop.f32.mrf.mxu0
          %v3010 = vadd.f32 0.0, %v3009
          %v3011 = vpop.f32.mrf.mxu0
          %v3012 = vadd.f32 0.0, %v3011
          %3013 = vmatmul.bf16.gmra.mxu0 %v2026
          %v3014 = vpop.f32.mrf.mxu0
          %v3015 = vadd.f32 0.0, %v3014
          %v3016 = vpop.f32.mrf.mxu0
          %v3017 = vadd.f32 0.0, %v3016
          %3018 = vmatmul.bf16.gmra.mxu0 %v2027
          %v3019 = vpop.f32.mrf.mxu0
          %v3020 = vadd.f32 0.0, %v3019
          %v3021 = vpop.f32.mrf.mxu0
          %v3022 = vadd.f32 0.0, %v3021
          %3023 = vmatmul.bf16.gmra.mxu0 %v2028
          %v3024 = vpop.f32.mrf.mxu0
          %v3025 = vadd.f32 0.0, %v3024
          %v3026 = vpop.f32.mrf.mxu0
          %v3027 = vadd.f32 0.0, %v3026
          %3028 = vmatmul.bf16.gmra.mxu0 %v2029
          %v3029 = vpop.f32.mrf.mxu0
          %v3030 = vadd.f32 0.0, %v3029
          %v3031 = vpop.f32.mrf.mxu0
          %v3032 = vadd.f32 0.0, %v3031
          %3033 = vmatmul.bf16.gmra.mxu0 %v2030
          %v3034 = vpop.f32.mrf.mxu0
          %v3035 = vadd.f32 0.0, %v3034
          %v3036 = vpop.f32.mrf.mxu0
          %v3037 = vadd.f32 0.0, %v3036
          %3038 = vmatmul.bf16.gmra.mxu0 %v2031
          %v3039 = vpop.f32.mrf.mxu0
          %v3040 = vadd.f32 0.0, %v3039
          %v3041 = vpop.f32.mrf.mxu0
          %v3042 = vadd.f32 0.0, %v3041
          %3043 = vmatmul.bf16.gmra.mxu0 %v2032
          %v3044 = vpop.f32.mrf.mxu0
          %v3045 = vadd.f32 0.0, %v3044
          %v3046 = vpop.f32.mrf.mxu0
          %v3047 = vadd.f32 0.0, %v3046
          %3048 = vmatmul.bf16.gmra.mxu0 %v2033
          %v3049 = vpop.f32.mrf.mxu0
          %v3050 = vadd.f32 0.0, %v3049
          %v3051 = vpop.f32.mrf.mxu0
          %v3052 = vadd.f32 0.0, %v3051
          %3053 = vmatmul.bf16.gmra.mxu0 %v2034
          %v3054 = vpop.f32.mrf.mxu0
          %v3055 = vadd.f32 0.0, %v3054
          %v3056 = vpop.f32.mrf.mxu0
          %v3057 = vadd.f32 0.0, %v3056
          %3058 = vmatmul.bf16.gmra.mxu0 %v2035
          %v3059 = vpop.f32.mrf.mxu0
          %v3060 = vadd.f32 0.0, %v3059
          %v3061 = vpop.f32.mrf.mxu0
          %v3062 = vadd.f32 0.0, %v3061
          %3063 = vmatmul.bf16.gmra.mxu0 %v2036
          %v3064 = vpop.f32.mrf.mxu0
          %v3065 = vadd.f32 0.0, %v3064
          %v3066 = vpop.f32.mrf.mxu0
          %v3067 = vadd.f32 0.0, %v3066
          %3068 = vdwg.mxu0
          %v3069 = vmax.f32 %v2367, %v2369
          %v3070 = vmax.f32 %v3069, %v2372
          %v3071 = vmax.f32 %v3070, %v2374
          %v3072 = vmax.f32 %v3071, %v2377
          %v3073 = vmax.f32 %v3072, %v2379
          %v3074 = vmax.f32 %v3073, %v2382
          %v3075 = vmax.f32 %v3074, %v2384
          %v3076 = vmax.f32 %v3075, %v2387
          %v3077 = vmax.f32 %v3076, %v2389
          %v3078 = vmax.f32 %v3077, %v2392
          %v3079 = vmax.f32 %v3078, %v2394
          %v3080 = vmax.f32 %v3079, %v2397
          %v3081 = vmax.f32 %v3080, %v2399
          %v3082 = vmax.f32 %v3081, %v2402
          %v3083 = vmax.f32 %v3082, %v2404
          %v3084 = vmax.f32 %v3083, %v2407
          %v3085 = vmax.f32 %v3084, %v2409
          %v3086 = vmax.f32 %v3085, %v2412
          %v3087 = vmax.f32 %v3086, %v2414
          %v3088 = vmax.f32 %v3087, %v2417
          %v3089 = vmax.f32 %v3088, %v2419
          %v3090 = vmax.f32 %v3089, %v2422
          %v3091 = vmax.f32 %v3090, %v2424
          %v3092 = vmax.f32 %v3091, %v2427
          %v3093 = vmax.f32 %v3092, %v2429
          %v3094 = vmax.f32 %v3093, %v2432
          %v3095 = vmax.f32 %v3094, %v2434
          %v3096 = vmax.f32 %v3095, %v2437
          %v3097 = vmax.f32 %v3096, %v2439
          %v3098 = vmax.f32 %v3097, %v2442
          %v3099 = vmax.f32 %v3098, %v2444
          %v3100 = vrot.slane %v3099, 4
          %v3101 = vmax.f32 %v3099, %v3100
          %v3102 = vrot.slane %v3101, 2
          %v3103 = vmax.f32 %v3101, %v3102
          %v3104 = vrot.slane %v3103, 1
          %v3105 = vmax.f32 %v3103, %v3104
          %v3106 = vmax.f32 %v2456, %v2458
          %v3107 = vmax.f32 %v3106, %v2461
          %v3108 = vmax.f32 %v3107, %v2463
          %v3109 = vmax.f32 %v3108, %v2466
          %v3110 = vmax.f32 %v3109, %v2468
          %v3111 = vmax.f32 %v3110, %v2471
          %v3112 = vmax.f32 %v3111, %v2473
          %v3113 = vmax.f32 %v3112, %v2476
          %v3114 = vmax.f32 %v3113, %v2478
          %v3115 = vmax.f32 %v3114, %v2481
          %v3116 = vmax.f32 %v3115, %v2483
          %v3117 = vmax.f32 %v3116, %v2486
          %v3118 = vmax.f32 %v3117, %v2488
          %v3119 = vmax.f32 %v3118, %v2491
          %v3120 = vmax.f32 %v3119, %v2493
          %v3121 = vmax.f32 %v3120, %v2496
          %v3122 = vmax.f32 %v3121, %v2498
          %v3123 = vmax.f32 %v3122, %v2501
          %v3124 = vmax.f32 %v3123, %v2503
          %v3125 = vmax.f32 %v3124, %v2506
          %v3126 = vmax.f32 %v3125, %v2508
          %v3127 = vmax.f32 %v3126, %v2511
          %v3128 = vmax.f32 %v3127, %v2513
          %v3129 = vmax.f32 %v3128, %v2516
          %v3130 = vmax.f32 %v3129, %v2518
          %v3131 = vmax.f32 %v3130, %v2521
          %v3132 = vmax.f32 %v3131, %v2523
          %v3133 = vmax.f32 %v3132, %v2526
          %v3134 = vmax.f32 %v3133, %v2528
          %v3135 = vmax.f32 %v3134, %v2531
          %v3136 = vmax.f32 %v3135, %v2533
          %v3137 = vrot.slane %v3136, 4
          %v3138 = vmax.f32 %v3136, %v3137
          %v3139 = vrot.slane %v3138, 2
          %v3140 = vmax.f32 %v3138, %v3139
          %v3141 = vrot.slane %v3140, 1
          %v3142 = vmax.f32 %v3140, %v3141
          %v3143 = vmax.f32 %v2545, %v2547
          %v3144 = vmax.f32 %v3143, %v2550
          %v3145 = vmax.f32 %v3144, %v2552
          %v3146 = vmax.f32 %v3145, %v2555
          %v3147 = vmax.f32 %v3146, %v2557
          %v3148 = vmax.f32 %v3147, %v2560
          %v3149 = vmax.f32 %v3148, %v2562
          %v3150 = vmax.f32 %v3149, %v2565
          %v3151 = vmax.f32 %v3150, %v2567
          %v3152 = vmax.f32 %v3151, %v2570
          %v3153 = vmax.f32 %v3152, %v2572
          %v3154 = vmax.f32 %v3153, %v2575
          %v3155 = vmax.f32 %v3154, %v2577
          %v3156 = vmax.f32 %v3155, %v2580
          %v3157 = vmax.f32 %v3156, %v2582
          %v3158 = vmax.f32 %v3157, %v2585
          %v3159 = vmax.f32 %v3158, %v2587
          %v3160 = vmax.f32 %v3159, %v2590
          %v3161 = vmax.f32 %v3160, %v2592
          %v3162 = vmax.f32 %v3161, %v2595
          %v3163 = vmax.f32 %v3162, %v2597
          %v3164 = vmax.f32 %v3163, %v2600
          %v3165 = vmax.f32 %v3164, %v2602
          %v3166 = vmax.f32 %v3165, %v2605
          %v3167 = vmax.f32 %v3166, %v2607
          %v3168 = vmax.f32 %v3167, %v2610
          %v3169 = vmax.f32 %v3168, %v2612
          %v3170 = vmax.f32 %v3169, %v2615
          %v3171 = vmax.f32 %v3170, %v2617
          %v3172 = vmax.f32 %v3171, %v2620
          %v3173 = vmax.f32 %v3172, %v2622
          %v3174 = vrot.slane %v3173, 4
          %v3175 = vmax.f32 %v3173, %v3174
          %v3176 = vrot.slane %v3175, 2
          %v3177 = vmax.f32 %v3175, %v3176
          %v3178 = vrot.slane %v3177, 1
          %v3179 = vmax.f32 %v3177, %v3178
          %v3180 = vmax.f32 %v2634, %v2636
          %v3181 = vmax.f32 %v3180, %v2639
          %v3182 = vmax.f32 %v3181, %v2641
          %v3183 = vmax.f32 %v3182, %v2644
          %v3184 = vmax.f32 %v3183, %v2646
          %v3185 = vmax.f32 %v3184, %v2649
          %v3186 = vmax.f32 %v3185, %v2651
          %v3187 = vmax.f32 %v3186, %v2654
          %v3188 = vmax.f32 %v3187, %v2656
          %v3189 = vmax.f32 %v3188, %v2659
          %v3190 = vmax.f32 %v3189, %v2661
          %v3191 = vmax.f32 %v3190, %v2664
          %v3192 = vmax.f32 %v3191, %v2666
          %v3193 = vmax.f32 %v3192, %v2669
          %v3194 = vmax.f32 %v3193, %v2671
          %v3195 = vmax.f32 %v3194, %v2674
          %v3196 = vmax.f32 %v3195, %v2676
          %v3197 = vmax.f32 %v3196, %v2679
          %v3198 = vmax.f32 %v3197, %v2681
          %v3199 = vmax.f32 %v3198, %v2684
          %v3200 = vmax.f32 %v3199, %v2686
          %v3201 = vmax.f32 %v3200, %v2689
          %v3202 = vmax.f32 %v3201, %v2691
          %v3203 = vmax.f32 %v3202, %v2694
          %v3204 = vmax.f32 %v3203, %v2696
          %v3205 = vmax.f32 %v3204, %v2699
          %v3206 = vmax.f32 %v3205, %v2701
          %v3207 = vmax.f32 %v3206, %v2704
          %v3208 = vmax.f32 %v3207, %v2706
          %v3209 = vmax.f32 %v3208, %v2709
          %v3210 = vmax.f32 %v3209, %v2711
          %v3211 = vrot.slane %v3210, 4
          %v3212 = vmax.f32 %v3210, %v3211
          %v3213 = vrot.slane %v3212, 2
          %v3214 = vmax.f32 %v3212, %v3213
          %v3215 = vrot.slane %v3214, 1
          %v3216 = vmax.f32 %v3214, %v3215
          %v3217 = vmax.f32 %v2723, %v2725
          %v3218 = vmax.f32 %v3217, %v2728
          %v3219 = vmax.f32 %v3218, %v2730
          %v3220 = vmax.f32 %v3219, %v2733
          %v3221 = vmax.f32 %v3220, %v2735
          %v3222 = vmax.f32 %v3221, %v2738
          %v3223 = vmax.f32 %v3222, %v2740
          %v3224 = vmax.f32 %v3223, %v2743
          %v3225 = vmax.f32 %v3224, %v2745
          %v3226 = vmax.f32 %v3225, %v2748
          %v3227 = vmax.f32 %v3226, %v2750
          %v3228 = vmax.f32 %v3227, %v2753
          %v3229 = vmax.f32 %v3228, %v2755
          %v3230 = vmax.f32 %v3229, %v2758
          %v3231 = vmax.f32 %v3230, %v2760
          %v3232 = vmax.f32 %v3231, %v2763
          %v3233 = vmax.f32 %v3232, %v2765
          %v3234 = vmax.f32 %v3233, %v2768
          %v3235 = vmax.f32 %v3234, %v2770
          %v3236 = vmax.f32 %v3235, %v2773
          %v3237 = vmax.f32 %v3236, %v2775
          %v3238 = vmax.f32 %v3237, %v2778
          %v3239 = vmax.f32 %v3238, %v2780
          %v3240 = vmax.f32 %v3239, %v2783
          %v3241 = vmax.f32 %v3240, %v2785
          %v3242 = vmax.f32 %v3241, %v2788
          %v3243 = vmax.f32 %v3242, %v2790
          %v3244 = vmax.f32 %v3243, %v2793
          %v3245 = vmax.f32 %v3244, %v2795
          %v3246 = vmax.f32 %v3245, %v2798
          %v3247 = vmax.f32 %v3246, %v2800
          %v3248 = vrot.slane %v3247, 4
          %v3249 = vmax.f32 %v3247, %v3248
          %v3250 = vrot.slane %v3249, 2
          %v3251 = vmax.f32 %v3249, %v3250
          %v3252 = vrot.slane %v3251, 1
          %v3253 = vmax.f32 %v3251, %v3252
          %v3254 = vmax.f32 %v2812, %v2814
          %v3255 = vmax.f32 %v3254, %v2817
          %v3256 = vmax.f32 %v3255, %v2819
          %v3257 = vmax.f32 %v3256, %v2822
          %v3258 = vmax.f32 %v3257, %v2824
          %v3259 = vmax.f32 %v3258, %v2827
          %v3260 = vmax.f32 %v3259, %v2829
          %v3261 = vmax.f32 %v3260, %v2832
          %v3262 = vmax.f32 %v3261, %v2834
          %v3263 = vmax.f32 %v3262, %v2837
          %v3264 = vmax.f32 %v3263, %v2839
          %v3265 = vmax.f32 %v3264, %v2842
          %v3266 = vmax.f32 %v3265, %v2844
          %v3267 = vmax.f32 %v3266, %v2847
          %v3268 = vmax.f32 %v3267, %v2849
          %v3269 = vmax.f32 %v3268, %v2852
          %v3270 = vmax.f32 %v3269, %v2854
          %v3271 = vmax.f32 %v3270, %v2857
          %v3272 = vmax.f32 %v3271, %v2859
          %v3273 = vmax.f32 %v3272, %v2862
          %v3274 = vmax.f32 %v3273, %v2864
          %v3275 = vmax.f32 %v3274, %v2867
          %v3276 = vmax.f32 %v3275, %v2869
          %v3277 = vmax.f32 %v3276, %v2872
          %v3278 = vmax.f32 %v3277, %v2874
          %v3279 = vmax.f32 %v3278, %v2877
          %v3280 = vmax.f32 %v3279, %v2879
          %v3281 = vmax.f32 %v3280, %v2882
          %v3282 = vmax.f32 %v3281, %v2884
          %v3283 = vmax.f32 %v3282, %v2887
          %v3284 = vmax.f32 %v3283, %v2889
          %v3285 = vrot.slane %v3284, 4
          %v3286 = vmax.f32 %v3284, %v3285
          %v3287 = vrot.slane %v3286, 2
          %v3288 = vmax.f32 %v3286, %v3287
          %v3289 = vrot.slane %v3288, 1
          %v3290 = vmax.f32 %v3288, %v3289
          %v3291 = vmax.f32 %v2901, %v2903
          %v3292 = vmax.f32 %v3291, %v2906
          %v3293 = vmax.f32 %v3292, %v2908
          %v3294 = vmax.f32 %v3293, %v2911
          %v3295 = vmax.f32 %v3294, %v2913
          %v3296 = vmax.f32 %v3295, %v2916
          %v3297 = vmax.f32 %v3296, %v2918
          %v3298 = vmax.f32 %v3297, %v2921
          %v3299 = vmax.f32 %v3298, %v2923
          %v3300 = vmax.f32 %v3299, %v2926
          %v3301 = vmax.f32 %v3300, %v2928
          %v3302 = vmax.f32 %v3301, %v2931
          %v3303 = vmax.f32 %v3302, %v2933
          %v3304 = vmax.f32 %v3303, %v2936
          %v3305 = vmax.f32 %v3304, %v2938
          %v3306 = vmax.f32 %v3305, %v2941
          %v3307 = vmax.f32 %v3306, %v2943
          %v3308 = vmax.f32 %v3307, %v2946
          %v3309 = vmax.f32 %v3308, %v2948
          %v3310 = vmax.f32 %v3309, %v2951
          %v3311 = vmax.f32 %v3310, %v2953
          %v3312 = vmax.f32 %v3311, %v2956
          %v3313 = vmax.f32 %v3312, %v2958
          %v3314 = vmax.f32 %v3313, %v2961
          %v3315 = vmax.f32 %v3314, %v2963
          %v3316 = vmax.f32 %v3315, %v2966
          %v3317 = vmax.f32 %v3316, %v2968
          %v3318 = vmax.f32 %v3317, %v2971
          %v3319 = vmax.f32 %v3318, %v2973
          %v3320 = vmax.f32 %v3319, %v2976
          %v3321 = vmax.f32 %v3320, %v2978
          %v3322 = vrot.slane %v3321, 4
          %v3323 = vmax.f32 %v3321, %v3322
          %v3324 = vrot.slane %v3323, 2
          %v3325 = vmax.f32 %v3323, %v3324
          %v3326 = vrot.slane %v3325, 1
          %v3327 = vmax.f32 %v3325, %v3326
          %v3328 = vmax.f32 %v2990, %v2992
          %v3329 = vmax.f32 %v3328, %v2995
          %v3330 = vmax.f32 %v3329, %v2997
          %v3331 = vmax.f32 %v3330, %v3000
          %v3332 = vmax.f32 %v3331, %v3002
          %v3333 = vmax.f32 %v3332, %v3005
          %v3334 = vmax.f32 %v3333, %v3007
          %v3335 = vmax.f32 %v3334, %v3010
          %v3336 = vmax.f32 %v3335, %v3012
          %v3337 = vmax.f32 %v3336, %v3015
          %v3338 = vmax.f32 %v3337, %v3017
          %v3339 = vmax.f32 %v3338, %v3020
          %v3340 = vmax.f32 %v3339, %v3022
          %v3341 = vmax.f32 %v3340, %v3025
          %v3342 = vmax.f32 %v3341, %v3027
          %v3343 = vmax.f32 %v3342, %v3030
          %v3344 = vmax.f32 %v3343, %v3032
          %v3345 = vmax.f32 %v3344, %v3035
          %v3346 = vmax.f32 %v3345, %v3037
          %v3347 = vmax.f32 %v3346, %v3040
          %v3348 = vmax.f32 %v3347, %v3042
          %v3349 = vmax.f32 %v3348, %v3045
          %v3350 = vmax.f32 %v3349, %v3047
          %v3351 = vmax.f32 %v3350, %v3050
          %v3352 = vmax.f32 %v3351, %v3052
          %v3353 = vmax.f32 %v3352, %v3055
          %v3354 = vmax.f32 %v3353, %v3057
          %v3355 = vmax.f32 %v3354, %v3060
          %v3356 = vmax.f32 %v3355, %v3062
          %v3357 = vmax.f32 %v3356, %v3065
          %v3358 = vmax.f32 %v3357, %v3067
          %v3359 = vrot.slane %v3358, 4
          %v3360 = vmax.f32 %v3358, %v3359
          %v3361 = vrot.slane %v3360, 2
          %v3362 = vmax.f32 %v3360, %v3361
          %v3363 = vrot.slane %v3362, 1
          %v3364 = vmax.f32 %v3362, %v3363
          %v3373 = vrot.slane %v3142, 7
          %v3374 = vrot.slane %v3179, 6
          %v3375 = vrot.slane %v3216, 5
          %v3376 = vrot.slane %v3253, 4
          %v3377 = vrot.slane %v3290, 3
          %v3378 = vrot.slane %v3327, 2
          %v3379 = vrot.slane %v3364, 1
          %vm3380 = vcmask 1040384
          %v3381 = vsel %vm3380, %v3105, %v3373
          %vm3382 = vcmask 1042434
          %v3383 = vsel %vm3382, %v3374, %v3375
          %vm3384 = vcmask 1041408
          %v3385 = vsel %vm3384, %v3381, %v3383
          %vm3386 = vcmask 1044484
          %v3387 = vsel %vm3386, %v3376, %v3377
          %vm3388 = vcmask 1046534
          %v3389 = vsel %vm3388, %v3378, %v3379
          %vm3390 = vcmask 1045508
          %v3391 = vsel %vm3390, %v3387, %v3389
          %vm3392 = vcmask 1043456
          %v3393 = vsel %vm3392, %v3385, %v3391
          %s3395 = sshra.s32 %s699, 3
          %s3396 = sand.u32 %s699, 7
          %s3397 = sshra.s32 %s699, 3
          %s3398 = sand.u32 %s699, 7
          %s3399 = smul.u32 %s3395, 8
          %s3400 = smul.u32 %s3399, 8
          %s3401 = sadd.s32 %s3400, %s3398
          %s3402 = scalar_lea.vmem [#allocation2], %s3401
          %3403 = vst [vmem:[%s3402] ss:$8 sm:$0xf] %v3393
          %3404 = vst [vmem:[%s3402] ss:$8 sm:$0xf0] %v3393
        $region101: #{tpu_custom_call.1} parent=95 // loop_footer
          %s703 = sadd.s32 1, %s699
        $region102: #{tpu_custom_call.1} parent=95 // loop_footer_branch
          %698 = sbr.rel target = $region98
        $region103: #{tpu_custom_call.1} parent=95 // loop_exit
          _
        %v3405 = vld [vmem:[#allocation2] sm:$0xff]
        %v3406 = vld [vmem:[#allocation2 + $0x8] sm:$0xff]
        %v3407 = vld [vmem:[#allocation2 + $0x10] sm:$0xff]
        %v3408 = vld [vmem:[#allocation2 + $0x18] sm:$0xff]
        %v3409 = vld [vmem:[#allocation2 + $0x20] sm:$0xff]
        %v3410 = vld [vmem:[#allocation2 + $0x28] sm:$0xff]
        %v3411 = vld [vmem:[#allocation2 + $0x30] sm:$0xff]
        %v3412 = vld [vmem:[#allocation2 + $0x38] sm:$0xff]
        %v3413 = vld [vmem:[#allocation2 + $0x40] sm:$0xff]
        %v3414 = vld [vmem:[#allocation2 + $0x48] sm:$0xff]
        %v3415 = vld [vmem:[#allocation2 + $0x50] sm:$0xff]
        %v3416 = vld [vmem:[#allocation2 + $0x58] sm:$0xff]
        %v3417 = vld [vmem:[#allocation2 + $0x60] sm:$0xff]
        %v3418 = vld [vmem:[#allocation2 + $0x68] sm:$0xff]
        %v3419 = vld [vmem:[#allocation2 + $0x70] sm:$0xff]
        %v3420 = vld [vmem:[#allocation2 + $0x78] sm:$0xff]
        %v3421 = vld [vmem:[#allocation2 + $0x80] sm:$0xff]
        %v3422 = vld [vmem:[#allocation2 + $0x88] sm:$0xff]
        %v3423 = vld [vmem:[#allocation2 + $0x90] sm:$0xff]
        %v3424 = vld [vmem:[#allocation2 + $0x98] sm:$0xff]
        %v3425 = vld [vmem:[#allocation2 + $0xa0] sm:$0xff]
        %v3426 = vld [vmem:[#allocation2 + $0xa8] sm:$0xff]
        %v3427 = vld [vmem:[#allocation2 + $0xb0] sm:$0xff]
        %v3428 = vld [vmem:[#allocation2 + $0xb8] sm:$0xff]
        %v3429 = vld [vmem:[%s10] sm:$0xff]
        %v3431 = vperm.slane %v3429, 0
        %v3432 = vperm.slane %v3429, 1
        %v3433 = vperm.slane %v3429, 2
        %v3434 = vperm.slane %v3429, 3
        %v3435 = vperm.slane %v3429, 4
        %v3436 = vperm.slane %v3429, 5
        %v3437 = vperm.slane %v3429, 6
        %v3438 = vperm.slane %v3429, 7
        %v3447 = vadd.f32 %v3405, %v3431
        %v3448 = vadd.f32 %v3406, %v3432
        %v3449 = vadd.f32 %v3407, %v3433
        %v3450 = vadd.f32 %v3408, %v3434
        %v3451 = vadd.f32 %v3409, %v3435
        %v3452 = vadd.f32 %v3410, %v3436
        %v3453 = vadd.f32 %v3411, %v3437
        %v3454 = vadd.f32 %v3412, %v3438
        %v3455 = vadd.f32 %v3413, %v3431
        %v3456 = vadd.f32 %v3414, %v3432
        %v3457 = vadd.f32 %v3415, %v3433
        %v3458 = vadd.f32 %v3416, %v3434
        %v3459 = vadd.f32 %v3417, %v3435
        %v3460 = vadd.f32 %v3418, %v3436
        %v3461 = vadd.f32 %v3419, %v3437
        %v3462 = vadd.f32 %v3420, %v3438
        %v3463 = vadd.f32 %v3421, %v3431
        %v3464 = vadd.f32 %v3422, %v3432
        %v3465 = vadd.f32 %v3423, %v3433
        %v3466 = vadd.f32 %v3424, %v3434
        %v3467 = vadd.f32 %v3425, %v3435
        %v3468 = vadd.f32 %v3426, %v3436
        %v3469 = vadd.f32 %v3427, %v3437
        %v3470 = vadd.f32 %v3428, %v3438
        %v3471 = vmax.f32 %v3447, 0.0
        %v3472 = vmax.f32 %v3448, 0.0
        %v3473 = vmax.f32 %v3449, 0.0
        %v3474 = vmax.f32 %v3450, 0.0
        %v3475 = vmax.f32 %v3451, 0.0
        %v3476 = vmax.f32 %v3452, 0.0
        %v3477 = vmax.f32 %v3453, 0.0
        %v3478 = vmax.f32 %v3454, 0.0
        %v3479 = vmax.f32 %v3455, 0.0
        %v3480 = vmax.f32 %v3456, 0.0
        %v3481 = vmax.f32 %v3457, 0.0
        %v3482 = vmax.f32 %v3458, 0.0
        %v3483 = vmax.f32 %v3459, 0.0
        %v3484 = vmax.f32 %v3460, 0.0
        %v3485 = vmax.f32 %v3461, 0.0
        %v3486 = vmax.f32 %v3462, 0.0
        %v3487 = vmax.f32 %v3463, 0.0
        %v3488 = vmax.f32 %v3464, 0.0
        %v3489 = vmax.f32 %v3465, 0.0
        %v3490 = vmax.f32 %v3466, 0.0
        %v3491 = vmax.f32 %v3467, 0.0
        %v3492 = vmax.f32 %v3468, 0.0
        %v3493 = vmax.f32 %v3469, 0.0
        %v3494 = vmax.f32 %v3470, 0.0
        %v3495 = vpack.c.bf16 %v3479, %v3471
        %v3496 = vpack.c.bf16 %v3480, %v3472
        %v3497 = vpack.c.bf16 %v3481, %v3473
        %v3498 = vpack.c.bf16 %v3482, %v3474
        %v3499 = vpack.c.bf16 %v3483, %v3475
        %v3500 = vpack.c.bf16 %v3484, %v3476
        %v3501 = vpack.c.bf16 %v3485, %v3477
        %v3502 = vpack.c.bf16 %v3486, %v3478
        %v3503 = vpack.c.bf16 %v3487, %v3487
        %v3504 = vpack.c.bf16 %v3488, %v3488
        %v3505 = vpack.c.bf16 %v3489, %v3489
        %v3506 = vpack.c.bf16 %v3490, %v3490
        %v3507 = vpack.c.bf16 %v3491, %v3491
        %v3508 = vpack.c.bf16 %v3492, %v3492
        %v3509 = vpack.c.bf16 %v3493, %v3493
        %v3510 = vpack.c.bf16 %v3494, %v3494
        %v3511 = vld [vmem:[%s11] sm:$0xf]
        %v3512 = vld [vmem:[%s11 + $0x4] sm:$0xf]
        %v3513 = vld [vmem:[%s11 + $0x8] sm:$0xf]
        %v3514 = vld [vmem:[%s11 + $0xc] sm:$0xf]
        %v3515 = vld [vmem:[%s11 + $0x10] sm:$0xf]
        %v3516 = vld [vmem:[%s11 + $0x14] sm:$0xf]
        %v3517 = vld [vmem:[%s11 + $0x18] sm:$0xf]
        %v3518 = vld [vmem:[%s11 + $0x1c] sm:$0xf]
        %v3519 = vld [vmem:[%s11 + $0x20] sm:$0xf]
        %v3520 = vld [vmem:[%s11 + $0x24] sm:$0xf]
        %v3521 = vld [vmem:[%s11 + $0x28] sm:$0xf]
        %v3522 = vld [vmem:[%s11 + $0x2c] sm:$0xf]
        %v3523 = vld [vmem:[%s11 + $0x30] sm:$0xf]
        %v3524 = vld [vmem:[%s11 + $0x34] sm:$0xf]
        %v3525 = vld [vmem:[%s11 + $0x38] sm:$0xf]
        %v3526 = vld [vmem:[%s11 + $0x3c] sm:$0xf]
        %v3527 = vld [vmem:[%s11 + $0x40] sm:$0xf]
        %v3528 = vld [vmem:[%s11 + $0x44] sm:$0xf]
        %v3529 = vld [vmem:[%s11 + $0x48] sm:$0xf]
        %v3530 = vld [vmem:[%s11 + $0x4c] sm:$0xf]
        %v3531 = vld [vmem:[%s11 + $0x50] sm:$0xf]
        %v3532 = vld [vmem:[%s11 + $0x54] sm:$0xf]
        %v3533 = vld [vmem:[%s11 + $0x58] sm:$0xf]
        %v3534 = vld [vmem:[%s11 + $0x5c] sm:$0xf]
        %v3535 = vld [vmem:[%s11 + $0x60] sm:$0xf]
        %v3536 = vld [vmem:[%s11 + $0x64] sm:$0xf]
        %v3537 = vld [vmem:[%s11 + $0x68] sm:$0xf]
        %v3538 = vld [vmem:[%s11 + $0x6c] sm:$0xf]
        %v3539 = vld [vmem:[%s11 + $0x70] sm:$0xf]
        %v3540 = vld [vmem:[%s11 + $0x74] sm:$0xf]
        %v3541 = vld [vmem:[%s11 + $0x78] sm:$0xf]
        %v3542 = vld [vmem:[%s11 + $0x7c] sm:$0xf]
        %v3543 = vld [vmem:[%s11 + $0x80] sm:$0xf]
        %v3544 = vld [vmem:[%s11 + $0x84] sm:$0xf]
        %v3545 = vld [vmem:[%s11 + $0x88] sm:$0xf]
        %v3546 = vld [vmem:[%s11 + $0x8c] sm:$0xf]
        %v3547 = vld [vmem:[%s11 + $0x90] sm:$0xf]
        %v3548 = vld [vmem:[%s11 + $0x94] sm:$0xf]
        %v3549 = vld [vmem:[%s11 + $0x98] sm:$0xf]
        %v3550 = vld [vmem:[%s11 + $0x9c] sm:$0xf]
        %v3551 = vld [vmem:[%s11 + $0xa0] sm:$0xf]
        %v3552 = vld [vmem:[%s11 + $0xa4] sm:$0xf]
        %v3553 = vld [vmem:[%s11 + $0xa8] sm:$0xf]
        %v3554 = vld [vmem:[%s11 + $0xac] sm:$0xf]
        %v3555 = vld [vmem:[%s11 + $0xb0] sm:$0xf]
        %v3556 = vld [vmem:[%s11 + $0xb4] sm:$0xf]
        %v3557 = vld [vmem:[%s11 + $0xb8] sm:$0xf]
        %v3558 = vld [vmem:[%s11 + $0xbc] sm:$0xf]
        %v3559 = vld [vmem:[%s11 + $0xc0] sm:$0xf]
        %v3560 = vld [vmem:[%s11 + $0xc4] sm:$0xf]
        %v3561 = vld [vmem:[%s11 + $0xc8] sm:$0xf]
        %v3562 = vld [vmem:[%s11 + $0xcc] sm:$0xf]
        %v3563 = vld [vmem:[%s11 + $0xd0] sm:$0xf]
        %v3564 = vld [vmem:[%s11 + $0xd4] sm:$0xf]
        %v3565 = vld [vmem:[%s11 + $0xd8] sm:$0xf]
        %v3566 = vld [vmem:[%s11 + $0xdc] sm:$0xf]
        %v3567 = vld [vmem:[%s11 + $0xe0] sm:$0xf]
        %v3568 = vld [vmem:[%s11 + $0xe4] sm:$0xf]
        %v3569 = vld [vmem:[%s11 + $0xe8] sm:$0xf]
        %v3570 = vld [vmem:[%s11 + $0xec] sm:$0xf]
        %v3571 = vld [vmem:[%s11 + $0xf0] sm:$0xf]
        %v3572 = vld [vmem:[%s11 + $0xf4] sm:$0xf]
        %v3573 = vld [vmem:[%s11 + $0xf8] sm:$0xf]
        %v3574 = vld [vmem:[%s11 + $0xfc] sm:$0xf]
        %v3575 = vld [vmem:[%s11 + $0x100] sm:$0xf]
        %v3576 = vld [vmem:[%s11 + $0x104] sm:$0xf]
        %v3577 = vld [vmem:[%s11 + $0x108] sm:$0xf]
        %v3578 = vld [vmem:[%s11 + $0x10c] sm:$0xf]
        %v3579 = vld [vmem:[%s11 + $0x110] sm:$0xf]
        %v3580 = vld [vmem:[%s11 + $0x114] sm:$0xf]
        %v3581 = vld [vmem:[%s11 + $0x118] sm:$0xf]
        %v3582 = vld [vmem:[%s11 + $0x11c] sm:$0xf]
        %v3583 = vld [vmem:[%s11 + $0x120] sm:$0xf]
        %v3584 = vld [vmem:[%s11 + $0x124] sm:$0xf]
        %v3585 = vld [vmem:[%s11 + $0x128] sm:$0xf]
        %v3586 = vld [vmem:[%s11 + $0x12c] sm:$0xf]
        %v3587 = vld [vmem:[%s11 + $0x130] sm:$0xf]
        %v3588 = vld [vmem:[%s11 + $0x134] sm:$0xf]
        %v3589 = vld [vmem:[%s11 + $0x138] sm:$0xf]
        %v3590 = vld [vmem:[%s11 + $0x13c] sm:$0xf]
        %v3591 = vld [vmem:[%s11 + $0x140] sm:$0xf]
        %v3592 = vld [vmem:[%s11 + $0x144] sm:$0xf]
        %v3593 = vld [vmem:[%s11 + $0x148] sm:$0xf]
        %v3594 = vld [vmem:[%s11 + $0x14c] sm:$0xf]
        %v3595 = vld [vmem:[%s11 + $0x150] sm:$0xf]
        %v3596 = vld [vmem:[%s11 + $0x154] sm:$0xf]
        %v3597 = vld [vmem:[%s11 + $0x158] sm:$0xf]
        %v3598 = vld [vmem:[%s11 + $0x15c] sm:$0xf]
        %v3599 = vld [vmem:[%s11 + $0x160] sm:$0xf]
        %v3600 = vld [vmem:[%s11 + $0x164] sm:$0xf]
        %v3601 = vld [vmem:[%s11 + $0x168] sm:$0xf]
        %v3602 = vld [vmem:[%s11 + $0x16c] sm:$0xf]
        %v3603 = vld [vmem:[%s11 + $0x170] sm:$0xf]
        %v3604 = vld [vmem:[%s11 + $0x174] sm:$0xf]
        %v3605 = vld [vmem:[%s11 + $0x178] sm:$0xf]
        %v3606 = vld [vmem:[%s11 + $0x17c] sm:$0xf]
        %v3607 = vld [vmem:[%s11 + $0x180] sm:$0xf]
        %v3608 = vld [vmem:[%s11 + $0x184] sm:$0xf]
        %v3609 = vld [vmem:[%s11 + $0x188] sm:$0xf]
        %v3610 = vld [vmem:[%s11 + $0x18c] sm:$0xf]
        %v3611 = vld [vmem:[%s11 + $0x190] sm:$0xf]
        %v3612 = vld [vmem:[%s11 + $0x194] sm:$0xf]
        %v3613 = vld [vmem:[%s11 + $0x198] sm:$0xf]
        %v3614 = vld [vmem:[%s11 + $0x19c] sm:$0xf]
        %v3615 = vld [vmem:[%s11 + $0x1a0] sm:$0xf]
        %v3616 = vld [vmem:[%s11 + $0x1a4] sm:$0xf]
        %v3617 = vld [vmem:[%s11 + $0x1a8] sm:$0xf]
        %v3618 = vld [vmem:[%s11 + $0x1ac] sm:$0xf]
        %v3619 = vld [vmem:[%s11 + $0x1b0] sm:$0xf]
        %v3620 = vld [vmem:[%s11 + $0x1b4] sm:$0xf]
        %v3621 = vld [vmem:[%s11 + $0x1b8] sm:$0xf]
        %v3622 = vld [vmem:[%s11 + $0x1bc] sm:$0xf]
        %v3623 = vld [vmem:[%s11 + $0x1c0] sm:$0xf]
        %v3624 = vld [vmem:[%s11 + $0x1c4] sm:$0xf]
        %v3625 = vld [vmem:[%s11 + $0x1c8] sm:$0xf]
        %v3626 = vld [vmem:[%s11 + $0x1cc] sm:$0xf]
        %v3627 = vld [vmem:[%s11 + $0x1d0] sm:$0xf]
        %v3628 = vld [vmem:[%s11 + $0x1d4] sm:$0xf]
        %v3629 = vld [vmem:[%s11 + $0x1d8] sm:$0xf]
        %v3630 = vld [vmem:[%s11 + $0x1dc] sm:$0xf]
        %v3631 = vld [vmem:[%s11 + $0x1e0] sm:$0xf]
        %v3632 = vld [vmem:[%s11 + $0x1e4] sm:$0xf]
        %v3633 = vld [vmem:[%s11 + $0x1e8] sm:$0xf]
        %v3634 = vld [vmem:[%s11 + $0x1ec] sm:$0xf]
        %v3635 = vld [vmem:[%s11 + $0x1f0] sm:$0xf]
        %v3636 = vld [vmem:[%s11 + $0x1f4] sm:$0xf]
        %v3637 = vld [vmem:[%s11 + $0x1f8] sm:$0xf]
        %v3638 = vld [vmem:[%s11 + $0x1fc] sm:$0xf]
        %v3639 = vld [vmem:[%s12] sm:$0x1]
        %v3641 = vperm.slane %v3639, 0
        %v3771 = vunpack.c.l.b16 %v3511
        %v3772 = vunpack.c.l.b16 %v3512
        %v3773 = vunpack.c.l.b16 %v3513
        %v3774 = vunpack.c.l.b16 %v3514
        %v3775 = vunpack.c.l.b16 %v3515
        %v3776 = vunpack.c.l.b16 %v3516
        %v3777 = vunpack.c.l.b16 %v3517
        %v3778 = vunpack.c.l.b16 %v3518
        %v3779 = vunpack.c.l.b16 %v3519
        %v3780 = vunpack.c.l.b16 %v3520
        %v3781 = vunpack.c.l.b16 %v3521
        %v3782 = vunpack.c.l.b16 %v3522
        %v3783 = vunpack.c.l.b16 %v3523
        %v3784 = vunpack.c.l.b16 %v3524
        %v3785 = vunpack.c.l.b16 %v3525
        %v3786 = vunpack.c.l.b16 %v3526
        %v3787 = vunpack.c.l.b16 %v3527
        %v3788 = vunpack.c.l.b16 %v3528
        %v3789 = vunpack.c.l.b16 %v3529
        %v3790 = vunpack.c.l.b16 %v3530
        %v3791 = vunpack.c.l.b16 %v3531
        %v3792 = vunpack.c.l.b16 %v3532
        %v3793 = vunpack.c.l.b16 %v3533
        %v3794 = vunpack.c.l.b16 %v3534
        %v3795 = vunpack.c.l.b16 %v3535
        %v3796 = vunpack.c.l.b16 %v3536
        %v3797 = vunpack.c.l.b16 %v3537
        %v3798 = vunpack.c.l.b16 %v3538
        %v3799 = vunpack.c.l.b16 %v3539
        %v3800 = vunpack.c.l.b16 %v3540
        %v3801 = vunpack.c.l.b16 %v3541
        %v3802 = vunpack.c.l.b16 %v3542
        %v3803 = vunpack.c.l.b16 %v3543
        %v3804 = vunpack.c.l.b16 %v3544
        %v3805 = vunpack.c.l.b16 %v3545
        %v3806 = vunpack.c.l.b16 %v3546
        %v3807 = vunpack.c.l.b16 %v3547
        %v3808 = vunpack.c.l.b16 %v3548
        %v3809 = vunpack.c.l.b16 %v3549
        %v3810 = vunpack.c.l.b16 %v3550
        %v3811 = vunpack.c.l.b16 %v3551
        %v3812 = vunpack.c.l.b16 %v3552
        %v3813 = vunpack.c.l.b16 %v3553
        %v3814 = vunpack.c.l.b16 %v3554
        %v3815 = vunpack.c.l.b16 %v3555
        %v3816 = vunpack.c.l.b16 %v3556
        %v3817 = vunpack.c.l.b16 %v3557
        %v3818 = vunpack.c.l.b16 %v3558
        %v3819 = vunpack.c.l.b16 %v3559
        %v3820 = vunpack.c.l.b16 %v3560
        %v3821 = vunpack.c.l.b16 %v3561
        %v3822 = vunpack.c.l.b16 %v3562
        %v3823 = vunpack.c.l.b16 %v3563
        %v3824 = vunpack.c.l.b16 %v3564
        %v3825 = vunpack.c.l.b16 %v3565
        %v3826 = vunpack.c.l.b16 %v3566
        %v3827 = vunpack.c.l.b16 %v3567
        %v3828 = vunpack.c.l.b16 %v3568
        %v3829 = vunpack.c.l.b16 %v3569
        %v3830 = vunpack.c.l.b16 %v3570
        %v3831 = vunpack.c.l.b16 %v3571
        %v3832 = vunpack.c.l.b16 %v3572
        %v3833 = vunpack.c.l.b16 %v3573
        %v3834 = vunpack.c.l.b16 %v3574
        %v3835 = vunpack.c.l.b16 %v3575
        %v3836 = vunpack.c.l.b16 %v3576
        %v3837 = vunpack.c.l.b16 %v3577
        %v3838 = vunpack.c.l.b16 %v3578
        %v3839 = vunpack.c.l.b16 %v3579
        %v3840 = vunpack.c.l.b16 %v3580
        %v3841 = vunpack.c.l.b16 %v3581
        %v3842 = vunpack.c.l.b16 %v3582
        %v3843 = vunpack.c.l.b16 %v3583
        %v3844 = vunpack.c.l.b16 %v3584
        %v3845 = vunpack.c.l.b16 %v3585
        %v3846 = vunpack.c.l.b16 %v3586
        %v3847 = vunpack.c.l.b16 %v3587
        %v3848 = vunpack.c.l.b16 %v3588
        %v3849 = vunpack.c.l.b16 %v3589
        %v3850 = vunpack.c.l.b16 %v3590
        %v3851 = vunpack.c.l.b16 %v3591
        %v3852 = vunpack.c.l.b16 %v3592
        %v3853 = vunpack.c.l.b16 %v3593
        %v3854 = vunpack.c.l.b16 %v3594
        %v3855 = vunpack.c.l.b16 %v3595
        %v3856 = vunpack.c.l.b16 %v3596
        %v3857 = vunpack.c.l.b16 %v3597
        %v3858 = vunpack.c.l.b16 %v3598
        %v3859 = vunpack.c.l.b16 %v3599
        %v3860 = vunpack.c.l.b16 %v3600
        %v3861 = vunpack.c.l.b16 %v3601
        %v3862 = vunpack.c.l.b16 %v3602
        %v3863 = vunpack.c.l.b16 %v3603
        %v3864 = vunpack.c.l.b16 %v3604
        %v3865 = vunpack.c.l.b16 %v3605
        %v3866 = vunpack.c.l.b16 %v3606
        %v3867 = vunpack.c.l.b16 %v3607
        %v3868 = vunpack.c.l.b16 %v3608
        %v3869 = vunpack.c.l.b16 %v3609
        %v3870 = vunpack.c.l.b16 %v3610
        %v3871 = vunpack.c.l.b16 %v3611
        %v3872 = vunpack.c.l.b16 %v3612
        %v3873 = vunpack.c.l.b16 %v3613
        %v3874 = vunpack.c.l.b16 %v3614
        %v3875 = vunpack.c.l.b16 %v3615
        %v3876 = vunpack.c.l.b16 %v3616
        %v3877 = vunpack.c.l.b16 %v3617
        %v3878 = vunpack.c.l.b16 %v3618
        %v3879 = vunpack.c.l.b16 %v3619
        %v3880 = vunpack.c.l.b16 %v3620
        %v3881 = vunpack.c.l.b16 %v3621
        %v3882 = vunpack.c.l.b16 %v3622
        %v3883 = vunpack.c.l.b16 %v3623
        %v3884 = vunpack.c.l.b16 %v3624
        %v3885 = vunpack.c.l.b16 %v3625
        %v3886 = vunpack.c.l.b16 %v3626
        %v3887 = vunpack.c.l.b16 %v3627
        %v3888 = vunpack.c.l.b16 %v3628
        %v3889 = vunpack.c.l.b16 %v3629
        %v3890 = vunpack.c.l.b16 %v3630
        %v3891 = vunpack.c.l.b16 %v3631
        %v3892 = vunpack.c.l.b16 %v3632
        %v3893 = vunpack.c.l.b16 %v3633
        %v3894 = vunpack.c.l.b16 %v3634
        %v3895 = vunpack.c.l.b16 %v3635
        %v3896 = vunpack.c.l.b16 %v3636
        %v3897 = vunpack.c.l.b16 %v3637
        %v3898 = vunpack.c.l.b16 %v3638
        %v3899 = vpack.c.b16 %v3772, %v3771
        %v3900 = vpack.c.b16 %v3774, %v3773
        %v3901 = vpack.c.b16 %v3776, %v3775
        %v3902 = vpack.c.b16 %v3778, %v3777
        %v3903 = vpack.c.b16 %v3780, %v3779
        %v3904 = vpack.c.b16 %v3782, %v3781
        %v3905 = vpack.c.b16 %v3784, %v3783
        %v3906 = vpack.c.b16 %v3786, %v3785
        %v3907 = vpack.c.b16 %v3788, %v3787
        %v3908 = vpack.c.b16 %v3790, %v3789
        %v3909 = vpack.c.b16 %v3792, %v3791
        %v3910 = vpack.c.b16 %v3794, %v3793
        %v3911 = vpack.c.b16 %v3796, %v3795
        %v3912 = vpack.c.b16 %v3798, %v3797
        %v3913 = vpack.c.b16 %v3800, %v3799
        %v3914 = vpack.c.b16 %v3802, %v3801
        %v3915 = vpack.c.b16 %v3804, %v3803
        %v3916 = vpack.c.b16 %v3806, %v3805
        %v3917 = vpack.c.b16 %v3808, %v3807
        %v3918 = vpack.c.b16 %v3810, %v3809
        %v3919 = vpack.c.b16 %v3812, %v3811
        %v3920 = vpack.c.b16 %v3814, %v3813
        %v3921 = vpack.c.b16 %v3816, %v3815
        %v3922 = vpack.c.b16 %v3818, %v3817
        %v3923 = vpack.c.b16 %v3820, %v3819
        %v3924 = vpack.c.b16 %v3822, %v3821
        %v3925 = vpack.c.b16 %v3824, %v3823
        %v3926 = vpack.c.b16 %v3826, %v3825
        %v3927 = vpack.c.b16 %v3828, %v3827
        %v3928 = vpack.c.b16 %v3830, %v3829
        %v3929 = vpack.c.b16 %v3832, %v3831
        %v3930 = vpack.c.b16 %v3834, %v3833
        %v3931 = vpack.c.b16 %v3836, %v3835
        %v3932 = vpack.c.b16 %v3838, %v3837
        %v3933 = vpack.c.b16 %v3840, %v3839
        %v3934 = vpack.c.b16 %v3842, %v3841
        %v3935 = vpack.c.b16 %v3844, %v3843
        %v3936 = vpack.c.b16 %v3846, %v3845
        %v3937 = vpack.c.b16 %v3848, %v3847
        %v3938 = vpack.c.b16 %v3850, %v3849
        %v3939 = vpack.c.b16 %v3852, %v3851
        %v3940 = vpack.c.b16 %v3854, %v3853
        %v3941 = vpack.c.b16 %v3856, %v3855
        %v3942 = vpack.c.b16 %v3858, %v3857
        %v3943 = vpack.c.b16 %v3860, %v3859
        %v3944 = vpack.c.b16 %v3862, %v3861
        %v3945 = vpack.c.b16 %v3864, %v3863
        %v3946 = vpack.c.b16 %v3866, %v3865
        %v3947 = vpack.c.b16 %v3868, %v3867
        %v3948 = vpack.c.b16 %v3870, %v3869
        %v3949 = vpack.c.b16 %v3872, %v3871
        %v3950 = vpack.c.b16 %v3874, %v3873
        %v3951 = vpack.c.b16 %v3876, %v3875
        %v3952 = vpack.c.b16 %v3878, %v3877
        %v3953 = vpack.c.b16 %v3880, %v3879
        %v3954 = vpack.c.b16 %v3882, %v3881
        %v3955 = vpack.c.b16 %v3884, %v3883
        %v3956 = vpack.c.b16 %v3886, %v3885
        %v3957 = vpack.c.b16 %v3888, %v3887
        %v3958 = vpack.c.b16 %v3890, %v3889
        %v3959 = vpack.c.b16 %v3892, %v3891
        %v3960 = vpack.c.b16 %v3894, %v3893
        %v3961 = vpack.c.b16 %v3896, %v3895
        %v3962 = vpack.c.b16 %v3898, %v3897
        %4027 = vmatpush.bf16.msra.mxu0 %v3906
        %4028 = vmatpush.bf16.msra.mxu0 %v3905
        %4029 = vmatpush.bf16.msra.mxu0 %v3904
        %4030 = vmatpush.bf16.msra.mxu0 %v3903
        %4031 = vmatpush.bf16.msra.mxu0 %v3902
        %4032 = vmatpush.bf16.msra.mxu0 %v3901
        %4033 = vmatpush.bf16.msra.mxu0 %v3900
        %4034 = vmatpush.bf16.msra.mxu0 %v3899
        %4035 = vmatmul.bf16.gmra.mxu0 %v3495
        %v4036 = vpop.f32.mrf.mxu0
        %v4037 = vadd.f32 %v3641, %v4036
        %v4038 = vpop.f32.mrf.mxu0
        %v4039 = vadd.f32 %v3641, %v4038
        %4040 = vmatmul.bf16.gmra.mxu0 %v3503
        %v4041 = vpop.f32.mrf.mxu0
        %v4042 = vadd.f32 %v3641, %v4041
        %v4043 = vpop.f32.mrf.mxu0
        %4044 = vdwg.mxu0
        %4045 = vmatpush.bf16.msra.mxu0 %v3914
        %4046 = vmatpush.bf16.msra.mxu0 %v3913
        %4047 = vmatpush.bf16.msra.mxu0 %v3912
        %4048 = vmatpush.bf16.msra.mxu0 %v3911
        %4049 = vmatpush.bf16.msra.mxu0 %v3910
        %4050 = vmatpush.bf16.msra.mxu0 %v3909
        %4051 = vmatpush.bf16.msra.mxu0 %v3908
        %4052 = vmatpush.bf16.msra.mxu0 %v3907
        %4053 = vmatmul.bf16.gmra.mxu0 %v3496
        %v4054 = vpop.f32.mrf.mxu0
        %v4055 = vadd.f32 %v4037, %v4054
        %v4056 = vpop.f32.mrf.mxu0
        %v4057 = vadd.f32 %v4039, %v4056
        %4058 = vmatmul.bf16.gmra.mxu0 %v3504
        %v4059 = vpop.f32.mrf.mxu0
        %v4060 = vadd.f32 %v4042, %v4059
        %v4061 = vpop.f32.mrf.mxu0
        %4062 = vdwg.mxu0
        %4063 = vmatpush.bf16.msra.mxu0 %v3922
        %4064 = vmatpush.bf16.msra.mxu0 %v3921
        %4065 = vmatpush.bf16.msra.mxu0 %v3920
        %4066 = vmatpush.bf16.msra.mxu0 %v3919
        %4067 = vmatpush.bf16.msra.mxu0 %v3918
        %4068 = vmatpush.bf16.msra.mxu0 %v3917
        %4069 = vmatpush.bf16.msra.mxu0 %v3916
        %4070 = vmatpush.bf16.msra.mxu0 %v3915
        %4071 = vmatmul.bf16.gmra.mxu0 %v3497
        %v4072 = vpop.f32.mrf.mxu0
        %v4073 = vadd.f32 %v4055, %v4072
        %v4074 = vpop.f32.mrf.mxu0
        %v4075 = vadd.f32 %v4057, %v4074
        %4076 = vmatmul.bf16.gmra.mxu0 %v3505
        %v4077 = vpop.f32.mrf.mxu0
        %v4078 = vadd.f32 %v4060, %v4077
        %v4079 = vpop.f32.mrf.mxu0
        %4080 = vdwg.mxu0
        %4081 = vmatpush.bf16.msra.mxu0 %v3930
        %4082 = vmatpush.bf16.msra.mxu0 %v3929
        %4083 = vmatpush.bf16.msra.mxu0 %v3928
        %4084 = vmatpush.bf16.msra.mxu0 %v3927
        %4085 = vmatpush.bf16.msra.mxu0 %v3926
        %4086 = vmatpush.bf16.msra.mxu0 %v3925
        %4087 = vmatpush.bf16.msra.mxu0 %v3924
        %4088 = vmatpush.bf16.msra.mxu0 %v3923
        %4089 = vmatmul.bf16.gmra.mxu0 %v3498
        %v4090 = vpop.f32.mrf.mxu0
        %v4091 = vadd.f32 %v4073, %v4090
        %v4092 = vpop.f32.mrf.mxu0
        %v4093 = vadd.f32 %v4075, %v4092
        %4094 = vmatmul.bf16.gmra.mxu0 %v3506
        %v4095 = vpop.f32.mrf.mxu0
        %v4096 = vadd.f32 %v4078, %v4095
        %v4097 = vpop.f32.mrf.mxu0
        %4098 = vdwg.mxu0
        %4099 = vmatpush.bf16.msra.mxu0 %v3938
        %4100 = vmatpush.bf16.msra.mxu0 %v3937
        %4101 = vmatpush.bf16.msra.mxu0 %v3936
        %4102 = vmatpush.bf16.msra.mxu0 %v3935
        %4103 = vmatpush.bf16.msra.mxu0 %v3934
        %4104 = vmatpush.bf16.msra.mxu0 %v3933
        %4105 = vmatpush.bf16.msra.mxu0 %v3932
        %4106 = vmatpush.bf16.msra.mxu0 %v3931
        %4107 = vmatmul.bf16.gmra.mxu0 %v3499
        %v4108 = vpop.f32.mrf.mxu0
        %v4109 = vadd.f32 %v4091, %v4108
        %v4110 = vpop.f32.mrf.mxu0
        %v4111 = vadd.f32 %v4093, %v4110
        %4112 = vmatmul.bf16.gmra.mxu0 %v3507
        %v4113 = vpop.f32.mrf.mxu0
        %v4114 = vadd.f32 %v4096, %v4113
        %v4115 = vpop.f32.mrf.mxu0
        %4116 = vdwg.mxu0
        %4117 = vmatpush.bf16.msra.mxu0 %v3946
        %4118 = vmatpush.bf16.msra.mxu0 %v3945
        %4119 = vmatpush.bf16.msra.mxu0 %v3944
        %4120 = vmatpush.bf16.msra.mxu0 %v3943
        %4121 = vmatpush.bf16.msra.mxu0 %v3942
        %4122 = vmatpush.bf16.msra.mxu0 %v3941
        %4123 = vmatpush.bf16.msra.mxu0 %v3940
        %4124 = vmatpush.bf16.msra.mxu0 %v3939
        %4125 = vmatmul.bf16.gmra.mxu0 %v3500
        %v4126 = vpop.f32.mrf.mxu0
        %v4127 = vadd.f32 %v4109, %v4126
        %v4128 = vpop.f32.mrf.mxu0
        %v4129 = vadd.f32 %v4111, %v4128
        %4130 = vmatmul.bf16.gmra.mxu0 %v3508
        %v4131 = vpop.f32.mrf.mxu0
        %v4132 = vadd.f32 %v4114, %v4131
        %v4133 = vpop.f32.mrf.mxu0
        %4134 = vdwg.mxu0
        %4135 = vmatpush.bf16.msra.mxu0 %v3954
        %4136 = vmatpush.bf16.msra.mxu0 %v3953
        %4137 = vmatpush.bf16.msra.mxu0 %v3952
        %4138 = vmatpush.bf16.msra.mxu0 %v3951
        %4139 = vmatpush.bf16.msra.mxu0 %v3950
        %4140 = vmatpush.bf16.msra.mxu0 %v3949
        %4141 = vmatpush.bf16.msra.mxu0 %v3948
        %4142 = vmatpush.bf16.msra.mxu0 %v3947
        %4143 = vmatmul.bf16.gmra.mxu0 %v3501
        %v4144 = vpop.f32.mrf.mxu0
        %v4145 = vadd.f32 %v4127, %v4144
        %v4146 = vpop.f32.mrf.mxu0
        %v4147 = vadd.f32 %v4129, %v4146
        %4148 = vmatmul.bf16.gmra.mxu0 %v3509
        %v4149 = vpop.f32.mrf.mxu0
        %v4150 = vadd.f32 %v4132, %v4149
        %v4151 = vpop.f32.mrf.mxu0
        %4152 = vdwg.mxu0
        %4153 = vmatpush.bf16.msra.mxu0 %v3962
        %4154 = vmatpush.bf16.msra.mxu0 %v3961
        %4155 = vmatpush.bf16.msra.mxu0 %v3960
        %4156 = vmatpush.bf16.msra.mxu0 %v3959
        %4157 = vmatpush.bf16.msra.mxu0 %v3958
        %4158 = vmatpush.bf16.msra.mxu0 %v3957
        %4159 = vmatpush.bf16.msra.mxu0 %v3956
        %4160 = vmatpush.bf16.msra.mxu0 %v3955
        %4161 = vmatmul.bf16.gmra.mxu0 %v3502
        %v4162 = vpop.f32.mrf.mxu0
        %v4163 = vadd.f32 %v4145, %v4162
        %v4164 = vpop.f32.mrf.mxu0
        %v4165 = vadd.f32 %v4147, %v4164
        %4166 = vmatmul.bf16.gmra.mxu0 %v3510
        %v4167 = vpop.f32.mrf.mxu0
        %v4168 = vadd.f32 %v4150, %v4167
        %v4169 = vpop.f32.mrf.mxu0
        %4170 = vdwg.mxu0
        %v4171 = vmax.f32 %v4163, 0.0
        %v4172 = vmax.f32 %v4165, 0.0
        %v4173 = vmax.f32 %v4168, 0.0
        %v4174 = vpack.c.bf16 %v4172, %v4171
        %v4175 = vpack.c.bf16 %v4173, %v4173
        %v4176 = vld [vmem:[%s13] sm:$0xf]
        %v4177 = vld [vmem:[%s13 + $0x4] sm:$0xf]
        %v4178 = vld [vmem:[%s13 + $0x8] sm:$0xf]
        %v4179 = vld [vmem:[%s13 + $0xc] sm:$0xf]
        %v4180 = vld [vmem:[%s13 + $0x10] sm:$0xf]
        %v4181 = vld [vmem:[%s13 + $0x14] sm:$0xf]
        %v4182 = vld [vmem:[%s13 + $0x18] sm:$0xf]
        %v4183 = vld [vmem:[%s13 + $0x1c] sm:$0xf]
        %v4184 = vld [vmem:[%s14] sm:$0x1]
        %v4186 = vperm.slane %v4184, 0
        %v4196 = vunpack.c.l.b16 %v4176
        %v4197 = vunpack.c.l.b16 %v4177
        %v4198 = vunpack.c.l.b16 %v4178
        %v4199 = vunpack.c.l.b16 %v4179
        %v4200 = vunpack.c.l.b16 %v4180
        %v4201 = vunpack.c.l.b16 %v4181
        %v4202 = vunpack.c.l.b16 %v4182
        %v4203 = vunpack.c.l.b16 %v4183
        %v4204 = vpack.c.b16 %v4197, %v4196
        %v4205 = vpack.c.b16 %v4199, %v4198
        %v4206 = vpack.c.b16 %v4201, %v4200
        %v4207 = vpack.c.b16 %v4203, %v4202
        %vm4212 = vcmask 523264
        %v4214 = vsel %vm4212, %v4174, 0
        %v4217 = vsel %vm4212, %v4175, 0
        %4219 = vmatpush.bf16.msra.mxu0 0
        %4220 = vmatpush.bf16.msra.mxu0 0
        %4221 = vmatpush.bf16.msra.mxu0 0
        %4222 = vmatpush.bf16.msra.mxu0 0
        %4223 = vmatpush.bf16.msra.mxu0 %v4207
        %4224 = vmatpush.bf16.msra.mxu0 %v4206
        %4225 = vmatpush.bf16.msra.mxu0 %v4205
        %4226 = vmatpush.bf16.msra.mxu0 %v4204
        %4227 = vmatmul.bf16.gmra.mxu0 %v4214
        %v4228 = vpop.f32.mrf.mxu0
        %v4229 = vadd.f32 %v4186, %v4228
        %v4230 = vpop.f32.mrf.mxu0
        %v4231 = vadd.f32 %v4186, %v4230
        %4232 = vmatmul.bf16.gmra.mxu0 %v4217
        %v4233 = vpop.f32.mrf.mxu0
        %v4234 = vadd.f32 %v4186, %v4233
        %v4235 = vpop.f32.mrf.mxu0
        %4236 = vdwg.mxu0
        %v4237 = vmax.f32 %v4229, 0.0
        %v4238 = vmax.f32 %v4231, 0.0
        %v4239 = vmax.f32 %v4234, 0.0
        %v4240 = vpack.c.bf16 %v4238, %v4237
        %v4241 = vpack.c.bf16 %v4239, %v4239
        %v4242 = vld [vmem:[%s15] sm:$0xff]
        %v4243 = vld [vmem:[%s15 + $0x8] sm:$0xff]
        %v4244 = vld [vmem:[%s15 + $0x10] sm:$0xff]
        %v4245 = vld [vmem:[%s15 + $0x18] sm:$0xff]
        %v4246 = vld [vmem:[%s15 + $0x20] sm:$0xff]
        %v4247 = vld [vmem:[%s15 + $0x28] sm:$0xff]
        %v4248 = vld [vmem:[%s15 + $0x30] sm:$0xff]
        %v4249 = vld [vmem:[%s15 + $0x38] sm:$0xff]
        %v4250 = vld [vmem:[%s15 + $0x40] sm:$0xff]
        %v4251 = vld [vmem:[%s15 + $0x48] sm:$0xff]
        %v4252 = vld [vmem:[%s15 + $0x50] sm:$0xff]
        %v4253 = vld [vmem:[%s15 + $0x58] sm:$0xff]
        %v4254 = vld [vmem:[%s15 + $0x60] sm:$0xff]
        %v4255 = vld [vmem:[%s15 + $0x68] sm:$0xff]
        %v4256 = vld [vmem:[%s15 + $0x70] sm:$0xff]
        %v4257 = vld [vmem:[%s15 + $0x78] sm:$0xff]
        %v4258 = vld [vmem:[%s16] sm:$0x3]
        %v4260 = vperm.slane %v4258, 0
        %v4261 = vperm.slane %v4258, 1
        %v4280 = vunpack.c.l.b16 %v4242
        %v4281 = vunpack.c.h.b16 %v4242
        %v4282 = vunpack.c.l.b16 %v4243
        %v4283 = vunpack.c.h.b16 %v4243
        %v4284 = vunpack.c.l.b16 %v4244
        %v4285 = vunpack.c.h.b16 %v4244
        %v4286 = vunpack.c.l.b16 %v4245
        %v4287 = vunpack.c.h.b16 %v4245
        %v4288 = vunpack.c.l.b16 %v4246
        %v4289 = vunpack.c.h.b16 %v4246
        %v4290 = vunpack.c.l.b16 %v4247
        %v4291 = vunpack.c.h.b16 %v4247
        %v4292 = vunpack.c.l.b16 %v4248
        %v4293 = vunpack.c.h.b16 %v4248
        %v4294 = vunpack.c.l.b16 %v4249
        %v4295 = vunpack.c.h.b16 %v4249
        %v4296 = vunpack.c.l.b16 %v4250
        %v4297 = vunpack.c.h.b16 %v4250
        %v4298 = vunpack.c.l.b16 %v4251
        %v4299 = vunpack.c.h.b16 %v4251
        %v4300 = vunpack.c.l.b16 %v4252
        %v4301 = vunpack.c.h.b16 %v4252
        %v4302 = vunpack.c.l.b16 %v4253
        %v4303 = vunpack.c.h.b16 %v4253
        %v4304 = vunpack.c.l.b16 %v4254
        %v4305 = vunpack.c.h.b16 %v4254
        %v4306 = vunpack.c.l.b16 %v4255
        %v4307 = vunpack.c.h.b16 %v4255
        %v4308 = vunpack.c.l.b16 %v4256
        %v4309 = vunpack.c.h.b16 %v4256
        %v4310 = vunpack.c.l.b16 %v4257
        %v4311 = vunpack.c.h.b16 %v4257
        %v4312 = vpack.c.b16 %v4282, %v4280
        %v4313 = vpack.c.b16 %v4283, %v4281
        %v4314 = vpack.c.b16 %v4286, %v4284
        %v4315 = vpack.c.b16 %v4287, %v4285
        %v4316 = vpack.c.b16 %v4290, %v4288
        %v4317 = vpack.c.b16 %v4291, %v4289
        %v4318 = vpack.c.b16 %v4294, %v4292
        %v4319 = vpack.c.b16 %v4295, %v4293
        %v4320 = vpack.c.b16 %v4298, %v4296
        %v4321 = vpack.c.b16 %v4299, %v4297
        %v4322 = vpack.c.b16 %v4302, %v4300
        %v4323 = vpack.c.b16 %v4303, %v4301
        %v4324 = vpack.c.b16 %v4306, %v4304
        %v4325 = vpack.c.b16 %v4307, %v4305
        %v4326 = vpack.c.b16 %v4310, %v4308
        %v4327 = vpack.c.b16 %v4311, %v4309
        %4344 = vmatpush.bf16.msra.mxu0 %v4326
        %4345 = vmatpush.bf16.msra.mxu0 %v4324
        %4346 = vmatpush.bf16.msra.mxu0 %v4322
        %4347 = vmatpush.bf16.msra.mxu0 %v4320
        %4348 = vmatpush.bf16.msra.mxu0 %v4318
        %4349 = vmatpush.bf16.msra.mxu0 %v4316
        %4350 = vmatpush.bf16.msra.mxu0 %v4314
        %4351 = vmatpush.bf16.msra.mxu0 %v4312
        %4352 = vmatmul.bf16.gmra.mxu0 %v4240
        %v4353 = vpop.f32.mrf.mxu0
        %v4354 = vadd.f32 %v4260, %v4353
        %v4355 = vpop.f32.mrf.mxu0
        %v4356 = vadd.f32 %v4260, %v4355
        %4357 = vmatmul.bf16.gmra.mxu0 %v4241
        %v4358 = vpop.f32.mrf.mxu0
        %v4359 = vadd.f32 %v4260, %v4358
        %v4360 = vpop.f32.mrf.mxu0
        %4361 = vdwg.mxu0
        %4362 = vmatpush.bf16.msra.mxu0 %v4327
        %4363 = vmatpush.bf16.msra.mxu0 %v4325
        %4364 = vmatpush.bf16.msra.mxu0 %v4323
        %4365 = vmatpush.bf16.msra.mxu0 %v4321
        %4366 = vmatpush.bf16.msra.mxu0 %v4319
        %4367 = vmatpush.bf16.msra.mxu0 %v4317
        %4368 = vmatpush.bf16.msra.mxu0 %v4315
        %4369 = vmatpush.bf16.msra.mxu0 %v4313
        %4370 = vmatmul.bf16.gmra.mxu0 %v4240
        %v4371 = vpop.f32.mrf.mxu0
        %v4372 = vadd.f32 %v4261, %v4371
        %v4373 = vpop.f32.mrf.mxu0
        %v4374 = vadd.f32 %v4261, %v4373
        %4375 = vmatmul.bf16.gmra.mxu0 %v4241
        %v4376 = vpop.f32.mrf.mxu0
        %v4377 = vadd.f32 %v4261, %v4376
        %v4378 = vpop.f32.mrf.mxu0
        %4379 = vdwg.mxu0
        %v4380 = vld [vmem:[%s17] sm:$0x3]
        %v4382 = vperm.slane %v4380, 0
        %v4383 = vperm.slane %v4380, 1
        %v4386 = vmul.f32 %v4354, %v4382
        %v4387 = vmul.f32 %v4372, %v4383
        %v4388 = vmul.f32 %v4356, %v4382
        %v4389 = vmul.f32 %v4374, %v4383
        %v4390 = vmul.f32 %v4359, %v4382
        %v4391 = vmul.f32 %v4377, %v4383
        %v4392 = vld [vmem:[%s18] sm:$0x3]
        %v4394 = vperm.slane %v4392, 0
        %v4395 = vperm.slane %v4392, 1
        %v4398 = vadd.f32 %v4386, %v4394
        %v4399 = vadd.f32 %v4387, %v4395
        %v4400 = vadd.f32 %v4388, %v4394
        %v4401 = vadd.f32 %v4389, %v4395
        %v4402 = vadd.f32 %v4390, %v4394
        %v4403 = vadd.f32 %v4391, %v4395
        %4404 = vst [vmem:[%s596] sm:$0xff] %v4398
        %4405 = vst [vmem:[%s596 + $0x8] sm:$0xff] %v4399
        %4406 = vst [vmem:[%s596 + $0x10] sm:$0xff] %v4400
        %4407 = vst [vmem:[%s596 + $0x18] sm:$0xff] %v4401
        %4408 = vst [vmem:[%s596 + $0x20] sm:$0xff] %v4402
        %4409 = vst [vmem:[%s596 + $0x28] sm:$0xff] %v4403
        %s4410 = sand.u32 %s445, 1
        %s4411 = scalar_lea.sflag [#allocation4], %s4410
        %s4412 = sand.u32 %s445, 1
        %s4413 = smul.addr %s4412, 48
        %s4414 = scalar_lea.vmem [#allocation3], %s4413
        // Predicated region
        $region104: #{tpu_custom_call.1} parent=95 // pred_check
          %p4415 = pneg %p455
        $region105: #{tpu_custom_call.1} parent=95 // pred_check_branch
          %4417 = sbr.rel (%p4415) target = $region107
        $region106: #{tpu_custom_call.1} parent=95 // pred_region
          %s4418 = smul.u32 3, %s33
          %4420 = vsyncadd %s4411, 0
          %s4421 = smul.addr %s4418, 2
          %s4422 = smul.addr %s4421, 8
          %s4423 = scalar_lea.hbm %s19, %s4422
          %s4424 = sshll.u32 %s4414, 4
          %s4425 = int_to_ptr.vmem [resolvable:$true] %s4424
          %s4426 = sshll.u32 %s4423, 4
          %s4427 = int_to_ptr.hbm [resolvable:$true] %s4426
          %4432 = dma.vmem_to_hbm [thread:$0]  %s4425, 768, %s4427, %s4411, 256, 256, 16
        $region107: #{tpu_custom_call.1} parent=95 // pred_fallthru
          _
      $region96: #{tpu_custom_call.1} parent=5 // pred_fallthru
        _
      %p4433 = scmp.le.s32.totalorder 2, %s28
      // Predicated region
      $region108: #{tpu_custom_call.1} parent=5 // pred_check
        %p4434 = pneg %p4433
      $region109: #{tpu_custom_call.1} parent=5 // pred_check_branch
        %4436 = sbr.rel (%p4434) target = $region111
      $region110: #{tpu_custom_call.1} parent=5 // pred_region
        %s4437 = ssub.s32 %s28, 2
        // Predicated region
        $region112: #{tpu_custom_call.1} parent=110 // pred_check
          %p4438 = pneg %p461
        $region113: #{tpu_custom_call.1} parent=110 // pred_check_branch
          %4440 = sbr.rel (%p4438) target = $region115
        $region114: #{tpu_custom_call.1} parent=110 // pred_region
          %s4441 = sand.u32 %s446, 1
          %s4442 = scalar_lea.sflag [#allocation4], %s4441
          %s4443 = sand.u32 %s446, 1
          %s4444 = smul.addr %s4443, 48
          %s4445 = scalar_lea.vmem [#allocation3], %s4444
          %4447 = dma.done %s4442, 768
        $region115: #{tpu_custom_call.1} parent=110 // pred_fallthru
          _
      $region111: #{tpu_custom_call.1} parent=5 // pred_fallthru
        _
    $region6: #{tpu_custom_call.1} parent=1 // loop_footer
      %s32 = sadd.s32 1, %s28
    $region7: #{tpu_custom_call.1} parent=1 // loop_footer_branch
      %27 = sbr.rel target = $region3
    $region8: #{tpu_custom_call.1} parent=1 // loop_exit
      _
    %4448 = vsyncpa [#allocation4], 1
    %s4449 = scalar_lea.sflag [#allocation4], 1
    %4450 = vsyncpa %s4449, 1

</llo_original>
